<compile_context>
chip_gen: v7x
topology: tpu7x:2x2x1
jax: 0.10.0
libtpu: 0.0.40
codegen_flags: <defaults>
</compile_context>

<pallas_src>
from functools import partial

import jax
import jax.numpy as jnp
from jax.experimental import pallas as pl
from jax.experimental.pallas import tpu as pltpu


# --------------------------- attention core (per batch) ---------------------------

def _heads_batched_attention(q, k, v, num_heads):
    """Scaled-dot-product attention for one batch element, all heads batched.

    q: (L, E) f32 (softmax scale already folded into the Q projection),
    k, v: (S, E) f32.  Returns (L, E) f32 with heads re-merged lane-dense.
    """
    L, E = q.shape
    D = E // num_heads

    # (T, E) -> (H, T, D): gather each head's static lane slice onto a new
    # leading batch axis so QK^T and PV run as one head-batched MXU stream.
    def split_heads(x):
        return jnp.concatenate(
            [x[:, h * D:(h + 1) * D][None] for h in range(num_heads)], axis=0)

    qh, kh, vh = split_heads(q), split_heads(k), split_heads(v)       # (H, *, D)

    s = jnp.einsum("hld,hsd->hls", qh, kh,
                   preferred_element_type=jnp.float32)                # (H, L, S)
    m = jnp.max(s, axis=-1, keepdims=True)
    p = jnp.exp(s - m)
    denom = jnp.sum(p, axis=-1, keepdims=True)
    o = jnp.einsum("hls,hsd->hld", p, vh,
                   preferred_element_type=jnp.float32)                # (H, L, D)
    o = o / denom                                                     # exact divide
    # (H, L, D) -> (L, E): heads back into the lane dim.
    return jnp.concatenate([o[h] for h in range(num_heads)], axis=-1)


# --------------------------------- kernels ----------------------------------------

def _mha_kernel(xq_ref, xk_ref, xv_ref,
                wq_ref, bq_ref, wk_ref, bk_ref, wv_ref, bv_ref,
                wo_ref, bo_ref, o_ref,
                *, num_heads, q_len, kv_len, batch, compute_dtype):
    """Fused MHA, whole problem in one invocation.

    xq: (L*N, E), xk/xv: (S*N, E), rows ordered (seq, batch) -- the native
    (seq, batch, E) layout flattened.  Weights are pre-transposed to (in, out)
    with the softmax scale folded into wq/bq.  Output block: (L, N, E).
    """
    f32 = jnp.float32
    E = xq_ref.shape[-1]

    # In-projections over ALL (seq, batch) rows at once: one matmul per tensor.
    xq = xq_ref[...].astype(compute_dtype)
    xk = xk_ref[...].astype(compute_dtype)
    xv = xv_ref[...].astype(compute_dtype)
    q = jnp.dot(xq, wq_ref[...], preferred_element_type=f32) + bq_ref[...]   # (L*N, E)
    k = jnp.dot(xk, wk_ref[...], preferred_element_type=f32) + bk_ref[...]   # (S*N, E)
    v = jnp.dot(xv, wv_ref[...], preferred_element_type=f32) + bv_ref[...]   # (S*N, E)

    # Re-expose the batch axis (leading-dim split; the lane dim E is untouched).
    q = q.reshape(q_len, batch, E)
    k = k.reshape(kv_len, batch, E)
    v = v.reshape(kv_len, batch, E)

    wo = wo_ref[...]
    bo = bo_ref[...]
    for n in range(batch):                           # tiny static batch: unrolled
        o_n = _heads_batched_attention(q[:, n, :], k[:, n, :], v[:, n, :],
                                       num_heads)                     # (L, E)
        y_n = jnp.dot(o_n.astype(compute_dtype), wo,
                      preferred_element_type=f32) + bo                # (L, E)
        o_ref[:, n, :] = y_n.astype(o_ref.dtype)


def _mha_self_kernel(x_ref, wqkv_ref, bqkv_ref, wo_ref, bo_ref, o_ref,
                     *, num_heads, q_len, batch, compute_dtype):
    """Self-attention fast path: one packed (E, 3E) in-projection matmul."""
    f32 = jnp.float32
    E = o_ref.shape[-1]

    x = x_ref[...].astype(compute_dtype)                              # (L*N, E)
    qkv = jnp.dot(x, wqkv_ref[...], preferred_element_type=f32) + bqkv_ref[...]
    q = qkv[:, :E].reshape(q_len, batch, E)
    k = qkv[:, E:2 * E].reshape(q_len, batch, E)
    v = qkv[:, 2 * E:].reshape(q_len, batch, E)

    wo = wo_ref[...]
    bo = bo_ref[...]
    for n in range(batch):
        o_n = _heads_batched_attention(q[:, n, :], k[:, n, :], v[:, n, :],
                                       num_heads)
        y_n = jnp.dot(o_n.astype(compute_dtype), wo,
                      preferred_element_type=f32) + bo
        o_ref[:, n, :] = y_n.astype(o_ref.dtype)


# ------------------------------ module forward pass -------------------------------

def multi_head_attention(query, key, value, params, num_heads, *,
                         compute_dtype=jnp.float32):
    """Equivalent of MultiHeadAttention.forward (returns attn_output only)."""
    w_in, b_in, w_out, b_out = params
    L, N, E = query.shape
    S = key.shape[0]
    assert E % num_heads == 0, "embed_dim must be divisible by num_heads"
    D = E // num_heads
    scale = 1.0 / (D ** 0.5)

    # One-time parameter prep: split the packed QKV weight, transpose to
    # (in, out) so the kernel never transposes, fold the softmax scale into the
    # Q projection, and pre-cast matmul weights to compute_dtype (biases f32).
    wq_t = (w_in[:E] * scale).T.astype(compute_dtype)             # (E, E)
    wk_t = w_in[E:2 * E].T.astype(compute_dtype)                  # (E, E)
    wv_t = w_in[2 * E:].T.astype(compute_dtype)                   # (E, E)
    wo_t = w_out.T.astype(compute_dtype)                          # (E, E)
    bq = (b_in[:E] * scale).reshape(1, E).astype(jnp.float32)
    bk = b_in[E:2 * E].reshape(1, E).astype(jnp.float32)
    bv = b_in[2 * E:].reshape(1, E).astype(jnp.float32)
    bo = b_out.reshape(1, E).astype(jnp.float32)

    # Free leading-dim collapse (no transpose, no extra relayout kernel).
    xq = query.reshape(L * N, E)

    out_shape = jax.ShapeDtypeStruct((L, N, E), query.dtype)
    # Real footprint here is <1 MiB; explicit limit is generous but safe on all
    # of v5e / v6e / v7x.
    compiler_params = pltpu.CompilerParams(vmem_limit_bytes=16 * 1024 * 1024)

    if (query is key) and (key is value):
        # Self-attention fast path: fused (E, 3E) in-projection.
        w_qkv = jnp.concatenate([wq_t, wk_t, wv_t], axis=1)       # (E, 3E)
        b_qkv = jnp.concatenate([bq, bk, bv], axis=1)             # (1, 3E)
        kernel = partial(_mha_self_kernel, num_heads=num_heads, q_len=L,
                         batch=N, compute_dtype=compute_dtype)
        return pl.pallas_call(kernel, out_shape=out_shape,
                              compiler_params=compiler_params)(
            xq, w_qkv, b_qkv, wo_t, bo)

    xk = key.reshape(S * N, E)
    xv = value.reshape(S * N, E)
    kernel = partial(_mha_kernel, num_heads=num_heads, q_len=L, kv_len=S,
                     batch=N, compute_dtype=compute_dtype)
    return pl.pallas_call(kernel, out_shape=out_shape,
                          compiler_params=compiler_params)(
        xq, xk, xv, wq_t, bq, wk_t, bk, wv_t, bv, wo_t, bo)


# --------------------------------- pure-JAX ref ------------------------------------

def reference(query, key, value, params, num_heads):
    """Pure-JAX reference matching torch.nn.MultiheadAttention's forward."""
    w_in, b_in, w_out, b_out = params
    L, N, E = query.shape
    S = key.shape[0]
    D = E // num_heads
    scale = 1.0 / (D ** 0.5)
    hp = jax.lax.Precision.HIGHEST

    def lin(x, w, b):
        return jnp.dot(x, w.T, precision=hp) + b

    q = lin(query.reshape(L * N, E), w_in[:E], b_in[:E]) * scale
    k = lin(key.reshape(S * N, E), w_in[E:2 * E], b_in[E:2 * E])
    v = lin(value.reshape(S * N, E), w_in[2 * E:], b_in[2 * E:])
    q = q.reshape(L, N * num_heads, D).transpose(1, 0, 2)
    k = k.reshape(S, N * num_heads, D).transpose(1, 0, 2)
    v = v.reshape(S, N * num_heads, D).transpose(1, 0, 2)
    s = jnp.einsum("bld,bsd->bls", q, k, precision=hp)
    p = jax.nn.softmax(s, axis=-1)
    o = jnp.einsum("bls,bsd->bld", p, v, precision=hp)
    o = o.transpose(1, 0, 2).reshape(L * N, E)
    o = lin(o, w_out, b_out)
    return o.reshape(L, N, E)


# ------------------------------------- main ----------------------------------------

if __name__ == "__main__":
    L = 8       # target sequence length
    S = 8       # source sequence length
    N = 2       # batch
    E = 32      # embed_dim
    H = 4       # num_heads

    root = jax.random.PRNGKey(0)
    k_q, k_k, k_v, k_wi, k_bi, k_wo, k_bo = jax.random.split(root, 7)

    query = jax.random.normal(k_q, (L, N, E), dtype=jnp.float32)
    key = jax.random.normal(k_k, (S, N, E), dtype=jnp.float32)
    value = jax.random.normal(k_v, (S, N, E), dtype=jnp.float32)

    # Deterministic parameter init (xavier-uniform-like weights, small random
    # biases so the bias/scale-folding paths are actually exercised).
    bound_in = (6.0 / (3 * E + E)) ** 0.5
    w_in = jax.random.uniform(k_wi, (3 * E, E), jnp.float32, -bound_in, bound_in)
    b_in = 0.1 * jax.random.normal(k_bi, (3 * E,), jnp.float32)
    bound_out = (6.0 / (E + E)) ** 0.5
    w_out = jax.random.uniform(k_wo, (E, E), jnp.float32, -bound_out, bound_out)
    b_out = 0.1 * jax.random.normal(k_bo, (E,), jnp.float32)
    params = (w_in, b_in, w_out, b_out)

    # Cross-attention (general) path.
    out = jax.block_until_ready(multi_head_attention(query, key, value, params, H))
    ref = reference(query, key, value, params, H)
    assert out.shape == (L, N, E)
    assert jnp.allclose(out, ref, rtol=1e-4, atol=1e-4), "general path mismatch"

    # Self-attention fast path (packed QKV in-projection).
    out_sa = jax.block_until_ready(
        multi_head_attention(query, query, query, params, H))
    ref_sa = reference(query, query, query, params, H)
    assert jnp.allclose(out_sa, ref_sa, rtol=1e-4, atol=1e-4), "self-attn path mismatch"

    print("KERNEL_OK")
</pallas_src>

<mosaic_0001>
module attributes {stable_mosaic.version = 11 : i64} {
  func.func @_mha_kernel(%arg0: memref<16x32xf32, #tpu.memory_space<vmem>>, %arg1: memref<16x32xf32, #tpu.memory_space<vmem>>, %arg2: memref<16x32xf32, #tpu.memory_space<vmem>>, %arg3: memref<32x32xf32, #tpu.memory_space<vmem>>, %arg4: memref<1x32xf32, #tpu.memory_space<vmem>>, %arg5: memref<32x32xf32, #tpu.memory_space<vmem>>, %arg6: memref<1x32xf32, #tpu.memory_space<vmem>>, %arg7: memref<32x32xf32, #tpu.memory_space<vmem>>, %arg8: memref<1x32xf32, #tpu.memory_space<vmem>>, %arg9: memref<32x32xf32, #tpu.memory_space<vmem>>, %arg10: memref<1x32xf32, #tpu.memory_space<vmem>>, %arg11: memref<8x2x32xf32, #tpu.memory_space<vmem>>) attributes {dimension_semantics = [], scalar_prefetch = 0 : i64, scratch_operands = 0 : i64, tpu.core_type = #tpu.core_type<tc>} {
    %c0 = arith.constant 0 : index
    %c0_0 = arith.constant 0 : index
    %0 = vector.load %arg0[%c0, %c0_0] : memref<16x32xf32, #tpu.memory_space<vmem>>, vector<16x32xf32>
    %c0_1 = arith.constant 0 : index
    %c0_2 = arith.constant 0 : index
    %1 = vector.load %arg1[%c0_1, %c0_2] : memref<16x32xf32, #tpu.memory_space<vmem>>, vector<16x32xf32>
    %c0_3 = arith.constant 0 : index
    %c0_4 = arith.constant 0 : index
    %2 = vector.load %arg2[%c0_3, %c0_4] : memref<16x32xf32, #tpu.memory_space<vmem>>, vector<16x32xf32>
    %c0_5 = arith.constant 0 : index
    %c0_6 = arith.constant 0 : index
    %3 = vector.load %arg3[%c0_5, %c0_6] : memref<32x32xf32, #tpu.memory_space<vmem>>, vector<32x32xf32>
    %cst = arith.constant dense<0.000000e+00> : vector<16x32xf32>
    %4 = tpu.matmul %0, %3, %cst {dimension_numbers = #tpu.dot_dimension_numbers<[1], [0], [0], [1], [0, 0, 1, 1], [], []>} : vector<16x32xf32>, vector<32x32xf32>, vector<16x32xf32> -> vector<16x32xf32>
    %c0_7 = arith.constant 0 : index
    %c0_8 = arith.constant 0 : index
    %5 = vector.load %arg4[%c0_7, %c0_8] : memref<1x32xf32, #tpu.memory_space<vmem>>, vector<1x32xf32>
    %6 = vector.broadcast %5 : vector<1x32xf32> to vector<16x32xf32>
    %7 = arith.addf %4, %6 : vector<16x32xf32>
    %c0_9 = arith.constant 0 : index
    %c0_10 = arith.constant 0 : index
    %8 = vector.load %arg5[%c0_9, %c0_10] : memref<32x32xf32, #tpu.memory_space<vmem>>, vector<32x32xf32>
    %cst_11 = arith.constant dense<0.000000e+00> : vector<16x32xf32>
    %9 = tpu.matmul %1, %8, %cst_11 {dimension_numbers = #tpu.dot_dimension_numbers<[1], [0], [0], [1], [0, 0, 1, 1], [], []>} : vector<16x32xf32>, vector<32x32xf32>, vector<16x32xf32> -> vector<16x32xf32>
    %c0_12 = arith.constant 0 : index
    %c0_13 = arith.constant 0 : index
    %10 = vector.load %arg6[%c0_12, %c0_13] : memref<1x32xf32, #tpu.memory_space<vmem>>, vector<1x32xf32>
    %11 = vector.broadcast %10 : vector<1x32xf32> to vector<16x32xf32>
    %12 = arith.addf %9, %11 : vector<16x32xf32>
    %c0_14 = arith.constant 0 : index
    %c0_15 = arith.constant 0 : index
    %13 = vector.load %arg7[%c0_14, %c0_15] : memref<32x32xf32, #tpu.memory_space<vmem>>, vector<32x32xf32>
    %cst_16 = arith.constant dense<0.000000e+00> : vector<16x32xf32>
    %14 = tpu.matmul %2, %13, %cst_16 {dimension_numbers = #tpu.dot_dimension_numbers<[1], [0], [0], [1], [0, 0, 1, 1], [], []>} : vector<16x32xf32>, vector<32x32xf32>, vector<16x32xf32> -> vector<16x32xf32>
    %c0_17 = arith.constant 0 : index
    %c0_18 = arith.constant 0 : index
    %15 = vector.load %arg8[%c0_17, %c0_18] : memref<1x32xf32, #tpu.memory_space<vmem>>, vector<1x32xf32>
    %16 = vector.broadcast %15 : vector<1x32xf32> to vector<16x32xf32>
    %17 = arith.addf %14, %16 : vector<16x32xf32>
    %18 = vector.shape_cast %7 : vector<16x32xf32> to vector<8x2x32xf32>
    %19 = vector.shape_cast %12 : vector<16x32xf32> to vector<8x2x32xf32>
    %20 = vector.shape_cast %17 : vector<16x32xf32> to vector<8x2x32xf32>
    %c0_19 = arith.constant 0 : index
    %c0_20 = arith.constant 0 : index
    %21 = vector.load %arg9[%c0_19, %c0_20] : memref<32x32xf32, #tpu.memory_space<vmem>>, vector<32x32xf32>
    %c0_21 = arith.constant 0 : index
    %c0_22 = arith.constant 0 : index
    %22 = vector.load %arg10[%c0_21, %c0_22] : memref<1x32xf32, #tpu.memory_space<vmem>>, vector<1x32xf32>
    %23 = vector.extract_strided_slice %18 {offsets = [0, 0, 0], sizes = [8, 1, 32], strides = [1, 1, 1]} : vector<8x2x32xf32> to vector<8x1x32xf32>
    %24 = vector.shape_cast %23 : vector<8x1x32xf32> to vector<8x32xf32>
    %25 = vector.extract_strided_slice %19 {offsets = [0, 0, 0], sizes = [8, 1, 32], strides = [1, 1, 1]} : vector<8x2x32xf32> to vector<8x1x32xf32>
    %26 = vector.shape_cast %25 : vector<8x1x32xf32> to vector<8x32xf32>
    %27 = vector.extract_strided_slice %20 {offsets = [0, 0, 0], sizes = [8, 1, 32], strides = [1, 1, 1]} : vector<8x2x32xf32> to vector<8x1x32xf32>
    %28 = vector.shape_cast %27 : vector<8x1x32xf32> to vector<8x32xf32>
    %29 = vector.extract_strided_slice %24 {offsets = [0, 0], sizes = [8, 8], strides = [1, 1]} : vector<8x32xf32> to vector<8x8xf32>
    %30 = vector.shape_cast %29 : vector<8x8xf32> to vector<1x8x8xf32>
    %31 = vector.extract_strided_slice %24 {offsets = [0, 8], sizes = [8, 8], strides = [1, 1]} : vector<8x32xf32> to vector<8x8xf32>
    %32 = vector.shape_cast %31 : vector<8x8xf32> to vector<1x8x8xf32>
    %33 = vector.extract_strided_slice %24 {offsets = [0, 16], sizes = [8, 8], strides = [1, 1]} : vector<8x32xf32> to vector<8x8xf32>
    %34 = vector.shape_cast %33 : vector<8x8xf32> to vector<1x8x8xf32>
    %35 = vector.extract_strided_slice %24 {offsets = [0, 24], sizes = [8, 8], strides = [1, 1]} : vector<8x32xf32> to vector<8x8xf32>
    %36 = vector.shape_cast %35 : vector<8x8xf32> to vector<1x8x8xf32>
    %37 = tpu.concatenate %30, %32, %34, %36 in 0 : vector<1x8x8xf32>, vector<1x8x8xf32>, vector<1x8x8xf32>, vector<1x8x8xf32> -> vector<4x8x8xf32>
    %38 = vector.extract_strided_slice %26 {offsets = [0, 0], sizes = [8, 8], strides = [1, 1]} : vector<8x32xf32> to vector<8x8xf32>
    %39 = vector.shape_cast %38 : vector<8x8xf32> to vector<1x8x8xf32>
    %40 = vector.extract_strided_slice %26 {offsets = [0, 8], sizes = [8, 8], strides = [1, 1]} : vector<8x32xf32> to vector<8x8xf32>
    %41 = vector.shape_cast %40 : vector<8x8xf32> to vector<1x8x8xf32>
    %42 = vector.extract_strided_slice %26 {offsets = [0, 16], sizes = [8, 8], strides = [1, 1]} : vector<8x32xf32> to vector<8x8xf32>
    %43 = vector.shape_cast %42 : vector<8x8xf32> to vector<1x8x8xf32>
    %44 = vector.extract_strided_slice %26 {offsets = [0, 24], sizes = [8, 8], strides = [1, 1]} : vector<8x32xf32> to vector<8x8xf32>
    %45 = vector.shape_cast %44 : vector<8x8xf32> to vector<1x8x8xf32>
    %46 = tpu.concatenate %39, %41, %43, %45 in 0 : vector<1x8x8xf32>, vector<1x8x8xf32>, vector<1x8x8xf32>, vector<1x8x8xf32> -> vector<4x8x8xf32>
    %47 = vector.extract_strided_slice %28 {offsets = [0, 0], sizes = [8, 8], strides = [1, 1]} : vector<8x32xf32> to vector<8x8xf32>
    %48 = vector.shape_cast %47 : vector<8x8xf32> to vector<1x8x8xf32>
    %49 = vector.extract_strided_slice %28 {offsets = [0, 8], sizes = [8, 8], strides = [1, 1]} : vector<8x32xf32> to vector<8x8xf32>
    %50 = vector.shape_cast %49 : vector<8x8xf32> to vector<1x8x8xf32>
    %51 = vector.extract_strided_slice %28 {offsets = [0, 16], sizes = [8, 8], strides = [1, 1]} : vector<8x32xf32> to vector<8x8xf32>
    %52 = vector.shape_cast %51 : vector<8x8xf32> to vector<1x8x8xf32>
    %53 = vector.extract_strided_slice %28 {offsets = [0, 24], sizes = [8, 8], strides = [1, 1]} : vector<8x32xf32> to vector<8x8xf32>
    %54 = vector.shape_cast %53 : vector<8x8xf32> to vector<1x8x8xf32>
    %55 = tpu.concatenate %48, %50, %52, %54 in 0 : vector<1x8x8xf32>, vector<1x8x8xf32>, vector<1x8x8xf32>, vector<1x8x8xf32> -> vector<4x8x8xf32>
    "tpu.trace_start"() <{level = 10 : i32, message = "hld,hsd->hls"}> : () -> ()
    %cst_23 = arith.constant dense<0.000000e+00> : vector<4x8x8xf32>
    %56 = tpu.matmul %37, %46, %cst_23 {dimension_numbers = #tpu.dot_dimension_numbers<[2], [2], [1], [1], [0, 0, 0, 1, 1, 1], [0], [0]>} : vector<4x8x8xf32>, vector<4x8x8xf32>, vector<4x8x8xf32> -> vector<4x8x8xf32>
    "tpu.trace_stop"() : () -> ()
    %cst_24 = arith.constant dense<0xFF800000> : vector<4x8xf32>
    %57 = vector.multi_reduction <maximumf>, %56, %cst_24 [2] : vector<4x8x8xf32> to vector<4x8xf32>
    %58 = vector.shape_cast %57 : vector<4x8xf32> to vector<4x8x1xf32>
    %59 = vector.broadcast %58 : vector<4x8x1xf32> to vector<4x8x8xf32>
    %60 = arith.subf %56, %59 : vector<4x8x8xf32>
    %61 = math.exp %60 : vector<4x8x8xf32>
    %cst_25 = arith.constant dense<0.000000e+00> : vector<4x8xf32>
    %62 = vector.multi_reduction <add>, %61, %cst_25 [2] : vector<4x8x8xf32> to vector<4x8xf32>
    %63 = vector.shape_cast %62 : vector<4x8xf32> to vector<4x8x1xf32>
    "tpu.trace_start"() <{level = 10 : i32, message = "hls,hsd->hld"}> : () -> ()
    %cst_26 = arith.constant dense<0.000000e+00> : vector<4x8x8xf32>
    %64 = tpu.matmul %61, %55, %cst_26 {dimension_numbers = #tpu.dot_dimension_numbers<[2], [1], [1], [2], [0, 0, 0, 1, 1, 2], [0], [0]>} : vector<4x8x8xf32>, vector<4x8x8xf32>, vector<4x8x8xf32> -> vector<4x8x8xf32>
    "tpu.trace_stop"() : () -> ()
    %65 = vector.broadcast %63 : vector<4x8x1xf32> to vector<4x8x8xf32>
    %66 = arith.divf %64, %65 : vector<4x8x8xf32>
    %67 = vector.extract_strided_slice %66 {offsets = [0, 0, 0], sizes = [1, 8, 8], strides = [1, 1, 1]} : vector<4x8x8xf32> to vector<1x8x8xf32>
    %68 = vector.shape_cast %67 : vector<1x8x8xf32> to vector<8x8xf32>
    %69 = vector.extract_strided_slice %66 {offsets = [1, 0, 0], sizes = [1, 8, 8], strides = [1, 1, 1]} : vector<4x8x8xf32> to vector<1x8x8xf32>
    %70 = vector.shape_cast %69 : vector<1x8x8xf32> to vector<8x8xf32>
    %71 = vector.extract_strided_slice %66 {offsets = [2, 0, 0], sizes = [1, 8, 8], strides = [1, 1, 1]} : vector<4x8x8xf32> to vector<1x8x8xf32>
    %72 = vector.shape_cast %71 : vector<1x8x8xf32> to vector<8x8xf32>
    %73 = vector.extract_strided_slice %66 {offsets = [3, 0, 0], sizes = [1, 8, 8], strides = [1, 1, 1]} : vector<4x8x8xf32> to vector<1x8x8xf32>
    %74 = vector.shape_cast %73 : vector<1x8x8xf32> to vector<8x8xf32>
    %75 = tpu.concatenate %68, %70, %72, %74 in 1 : vector<8x8xf32>, vector<8x8xf32>, vector<8x8xf32>, vector<8x8xf32> -> vector<8x32xf32>
    %cst_27 = arith.constant dense<0.000000e+00> : vector<8x32xf32>
    %76 = tpu.matmul %75, %21, %cst_27 {dimension_numbers = #tpu.dot_dimension_numbers<[1], [0], [0], [1], [0, 0, 1, 1], [], []>} : vector<8x32xf32>, vector<32x32xf32>, vector<8x32xf32> -> vector<8x32xf32>
    %77 = vector.broadcast %22 : vector<1x32xf32> to vector<8x32xf32>
    %78 = arith.addf %76, %77 : vector<8x32xf32>
    %c0_28 = arith.constant 0 : index
    %c0_29 = arith.constant 0 : index
    %c0_30 = arith.constant 0 : index
    %79 = vector.load %arg11[%c0_28, %c0_29, %c0_30] : memref<8x2x32xf32, #tpu.memory_space<vmem>>, vector<8x1x32xf32>
    %80 = vector.shape_cast %79 : vector<8x1x32xf32> to vector<8x32xf32>
    %81 = vector.shape_cast %78 : vector<8x32xf32> to vector<8x1x32xf32>
    tpu.vector_store %arg11[%c0_28, %c0_29, %c0_30], %81 {strides = array<i32>} : memref<8x2x32xf32, #tpu.memory_space<vmem>>, vector<8x1x32xf32>,
    %82 = vector.extract_strided_slice %18 {offsets = [0, 1, 0], sizes = [8, 1, 32], strides = [1, 1, 1]} : vector<8x2x32xf32> to vector<8x1x32xf32>
    %83 = vector.shape_cast %82 : vector<8x1x32xf32> to vector<8x32xf32>
    %84 = vector.extract_strided_slice %19 {offsets = [0, 1, 0], sizes = [8, 1, 32], strides = [1, 1, 1]} : vector<8x2x32xf32> to vector<8x1x32xf32>
    %85 = vector.shape_cast %84 : vector<8x1x32xf32> to vector<8x32xf32>
    %86 = vector.extract_strided_slice %20 {offsets = [0, 1, 0], sizes = [8, 1, 32], strides = [1, 1, 1]} : vector<8x2x32xf32> to vector<8x1x32xf32>
    %87 = vector.shape_cast %86 : vector<8x1x32xf32> to vector<8x32xf32>
    %88 = vector.extract_strided_slice %83 {offsets = [0, 0], sizes = [8, 8], strides = [1, 1]} : vector<8x32xf32> to vector<8x8xf32>
    %89 = vector.shape_cast %88 : vector<8x8xf32> to vector<1x8x8xf32>
    %90 = vector.extract_strided_slice %83 {offsets = [0, 8], sizes = [8, 8], strides = [1, 1]} : vector<8x32xf32> to vector<8x8xf32>
    %91 = vector.shape_cast %90 : vector<8x8xf32> to vector<1x8x8xf32>
    %92 = vector.extract_strided_slice %83 {offsets = [0, 16], sizes = [8, 8], strides = [1, 1]} : vector<8x32xf32> to vector<8x8xf32>
    %93 = vector.shape_cast %92 : vector<8x8xf32> to vector<1x8x8xf32>
    %94 = vector.extract_strided_slice %83 {offsets = [0, 24], sizes = [8, 8], strides = [1, 1]} : vector<8x32xf32> to vector<8x8xf32>
    %95 = vector.shape_cast %94 : vector<8x8xf32> to vector<1x8x8xf32>
    %96 = tpu.concatenate %89, %91, %93, %95 in 0 : vector<1x8x8xf32>, vector<1x8x8xf32>, vector<1x8x8xf32>, vector<1x8x8xf32> -> vector<4x8x8xf32>
    %97 = vector.extract_strided_slice %85 {offsets = [0, 0], sizes = [8, 8], strides = [1, 1]} : vector<8x32xf32> to vector<8x8xf32>
    %98 = vector.shape_cast %97 : vector<8x8xf32> to vector<1x8x8xf32>
    %99 = vector.extract_strided_slice %85 {offsets = [0, 8], sizes = [8, 8], strides = [1, 1]} : vector<8x32xf32> to vector<8x8xf32>
    %100 = vector.shape_cast %99 : vector<8x8xf32> to vector<1x8x8xf32>
    %101 = vector.extract_strided_slice %85 {offsets = [0, 16], sizes = [8, 8], strides = [1, 1]} : vector<8x32xf32> to vector<8x8xf32>
    %102 = vector.shape_cast %101 : vector<8x8xf32> to vector<1x8x8xf32>
    %103 = vector.extract_strided_slice %85 {offsets = [0, 24], sizes = [8, 8], strides = [1, 1]} : vector<8x32xf32> to vector<8x8xf32>
    %104 = vector.shape_cast %103 : vector<8x8xf32> to vector<1x8x8xf32>
    %105 = tpu.concatenate %98, %100, %102, %104 in 0 : vector<1x8x8xf32>, vector<1x8x8xf32>, vector<1x8x8xf32>, vector<1x8x8xf32> -> vector<4x8x8xf32>
    %106 = vector.extract_strided_slice %87 {offsets = [0, 0], sizes = [8, 8], strides = [1, 1]} : vector<8x32xf32> to vector<8x8xf32>
    %107 = vector.shape_cast %106 : vector<8x8xf32> to vector<1x8x8xf32>
    %108 = vector.extract_strided_slice %87 {offsets = [0, 8], sizes = [8, 8], strides = [1, 1]} : vector<8x32xf32> to vector<8x8xf32>
    %109 = vector.shape_cast %108 : vector<8x8xf32> to vector<1x8x8xf32>
    %110 = vector.extract_strided_slice %87 {offsets = [0, 16], sizes = [8, 8], strides = [1, 1]} : vector<8x32xf32> to vector<8x8xf32>
    %111 = vector.shape_cast %110 : vector<8x8xf32> to vector<1x8x8xf32>
    %112 = vector.extract_strided_slice %87 {offsets = [0, 24], sizes = [8, 8], strides = [1, 1]} : vector<8x32xf32> to vector<8x8xf32>
    %113 = vector.shape_cast %112 : vector<8x8xf32> to vector<1x8x8xf32>
    %114 = tpu.concatenate %107, %109, %111, %113 in 0 : vector<1x8x8xf32>, vector<1x8x8xf32>, vector<1x8x8xf32>, vector<1x8x8xf32> -> vector<4x8x8xf32>
    "tpu.trace_start"() <{level = 10 : i32, message = "hld,hsd->hls"}> : () -> ()
    %cst_31 = arith.constant dense<0.000000e+00> : vector<4x8x8xf32>
    %115 = tpu.matmul %96, %105, %cst_31 {dimension_numbers = #tpu.dot_dimension_numbers<[2], [2], [1], [1], [0, 0, 0, 1, 1, 1], [0], [0]>} : vector<4x8x8xf32>, vector<4x8x8xf32>, vector<4x8x8xf32> -> vector<4x8x8xf32>
    "tpu.trace_stop"() : () -> ()
    %cst_32 = arith.constant dense<0xFF800000> : vector<4x8xf32>
    %116 = vector.multi_reduction <maximumf>, %115, %cst_32 [2] : vector<4x8x8xf32> to vector<4x8xf32>
    %117 = vector.shape_cast %116 : vector<4x8xf32> to vector<4x8x1xf32>
    %118 = vector.broadcast %117 : vector<4x8x1xf32> to vector<4x8x8xf32>
    %119 = arith.subf %115, %118 : vector<4x8x8xf32>
    %120 = math.exp %119 : vector<4x8x8xf32>
    %cst_33 = arith.constant dense<0.000000e+00> : vector<4x8xf32>
    %121 = vector.multi_reduction <add>, %120, %cst_33 [2] : vector<4x8x8xf32> to vector<4x8xf32>
    %122 = vector.shape_cast %121 : vector<4x8xf32> to vector<4x8x1xf32>
    "tpu.trace_start"() <{level = 10 : i32, message = "hls,hsd->hld"}> : () -> ()
    %cst_34 = arith.constant dense<0.000000e+00> : vector<4x8x8xf32>
    %123 = tpu.matmul %120, %114, %cst_34 {dimension_numbers = #tpu.dot_dimension_numbers<[2], [1], [1], [2], [0, 0, 0, 1, 1, 2], [0], [0]>} : vector<4x8x8xf32>, vector<4x8x8xf32>, vector<4x8x8xf32> -> vector<4x8x8xf32>
    "tpu.trace_stop"() : () -> ()
    %124 = vector.broadcast %122 : vector<4x8x1xf32> to vector<4x8x8xf32>
    %125 = arith.divf %123, %124 : vector<4x8x8xf32>
    %126 = vector.extract_strided_slice %125 {offsets = [0, 0, 0], sizes = [1, 8, 8], strides = [1, 1, 1]} : vector<4x8x8xf32> to vector<1x8x8xf32>
    %127 = vector.shape_cast %126 : vector<1x8x8xf32> to vector<8x8xf32>
    %128 = vector.extract_strided_slice %125 {offsets = [1, 0, 0], sizes = [1, 8, 8], strides = [1, 1, 1]} : vector<4x8x8xf32> to vector<1x8x8xf32>
    %129 = vector.shape_cast %128 : vector<1x8x8xf32> to vector<8x8xf32>
    %130 = vector.extract_strided_slice %125 {offsets = [2, 0, 0], sizes = [1, 8, 8], strides = [1, 1, 1]} : vector<4x8x8xf32> to vector<1x8x8xf32>
    %131 = vector.shape_cast %130 : vector<1x8x8xf32> to vector<8x8xf32>
    %132 = vector.extract_strided_slice %125 {offsets = [3, 0, 0], sizes = [1, 8, 8], strides = [1, 1, 1]} : vector<4x8x8xf32> to vector<1x8x8xf32>
    %133 = vector.shape_cast %132 : vector<1x8x8xf32> to vector<8x8xf32>
    %134 = tpu.concatenate %127, %129, %131, %133 in 1 : vector<8x8xf32>, vector<8x8xf32>, vector<8x8xf32>, vector<8x8xf32> -> vector<8x32xf32>
    %cst_35 = arith.constant dense<0.000000e+00> : vector<8x32xf32>
    %135 = tpu.matmul %134, %21, %cst_35 {dimension_numbers = #tpu.dot_dimension_numbers<[1], [0], [0], [1], [0, 0, 1, 1], [], []>} : vector<8x32xf32>, vector<32x32xf32>, vector<8x32xf32> -> vector<8x32xf32>
    %136 = vector.broadcast %22 : vector<1x32xf32> to vector<8x32xf32>
    %137 = arith.addf %135, %136 : vector<8x32xf32>
    %c0_36 = arith.constant 0 : index
    %c1 = arith.constant 1 : index
    %c0_37 = arith.constant 0 : index
    %138 = vector.load %arg11[%c0_36, %c1, %c0_37] : memref<8x2x32xf32, #tpu.memory_space<vmem>>, vector<8x1x32xf32>
    %139 = vector.shape_cast %138 : vector<8x1x32xf32> to vector<8x32xf32>
    %140 = vector.shape_cast %137 : vector<8x32xf32> to vector<8x1x32xf32>
    tpu.vector_store %arg11[%c0_36, %c1, %c0_37], %140 {strides = array<i32>} : memref<8x2x32xf32, #tpu.memory_space<vmem>>, vector<8x1x32xf32>,
    return
  }
}

</mosaic_0001>

<llo_original>
// kernel: tpu_custom_call.1
$region0: #{tpu_custom_call.1}
  #allocation0 [shape = 'u32[]', space=smem, size = 0x4, offset = 0x4, fixed_abs, tag = 'smem constant byte address 0x4 - core index']
  #allocation1 [shape = 'u32[144,128]{1,0:T(1,128)}', space=vmem, size = 0x12000, scoped, tag = 'internal scratch']
  %s0 = inlined_call_operand.hbm [shape: f32[16,32], index: 0, kind: input, shape index: {}]
  %s1 = inlined_call_operand.hbm [shape: f32[16,32], index: 1, kind: input, shape index: {}]
  %s2 = inlined_call_operand.hbm [shape: f32[16,32], index: 2, kind: input, shape index: {}]
  %s3 = inlined_call_operand.hbm [shape: f32[32,32], index: 3, kind: input, shape index: {}]
  %s4 = inlined_call_operand.vmem [shape: f32[1,32], index: 4, kind: input, shape index: {}]
  %s5 = inlined_call_operand.hbm [shape: f32[32,32], index: 5, kind: input, shape index: {}]
  %s6 = inlined_call_operand.vmem [shape: f32[1,32], index: 6, kind: input, shape index: {}]
  %s7 = inlined_call_operand.hbm [shape: f32[32,32], index: 7, kind: input, shape index: {}]
  %s8 = inlined_call_operand.hbm [shape: f32[1,32], index: 8, kind: input, shape index: {}]
  %s9 = inlined_call_operand.vmem [shape: f32[32,32], index: 9, kind: input, shape index: {}]
  %s10 = inlined_call_operand.vmem [shape: f32[1,32], index: 10, kind: input, shape index: {}]
  %s11 = inlined_call_operand.hbm [shape: f32[8,2,32], index: 11, kind: output, shape index: {}]
  %s12 = sld [smem:[#allocation0]]
  $region82: #{tpu_custom_call.1} parent=0
    _
  %s14 = ssub.s32 1, %s12
  %s15 = scalar_select 0, %s14, %s12
  $region1: #{tpu_custom_call.1} parent=0
    #allocation2 [shape = 'u8[8192]{0}', space=vmem, size = 0x2000, scoped, tag = 'input window, operand 0, single buffered']
    #allocation3 [shape = 's32[1]{0}', space=sflag, size = 0x4, scoped, tag = 'scoped memory for tpu_custom_call.1']
    #allocation4 [shape = 's32[1]{0}', space=sflag, size = 0x4, scoped, tag = 'scoped memory for tpu_custom_call.1']
    #allocation5 [shape = 'u8[8192]{0}', space=vmem, size = 0x2000, scoped, tag = 'input window, operand 1, single buffered']
    #allocation6 [shape = 's32[1]{0}', space=sflag, size = 0x4, scoped, tag = 'scoped memory for tpu_custom_call.1']
    #allocation7 [shape = 'u8[8192]{0}', space=vmem, size = 0x2000, scoped, tag = 'input window, operand 2, single buffered']
    #allocation8 [shape = 'u8[16384]{0}', space=vmem, size = 0x4000, scoped, tag = 'input window, operand 3, single buffered']
    #allocation9 [shape = 's32[1]{0}', space=sflag, size = 0x4, scoped, tag = 'scoped memory for tpu_custom_call.1']
    #allocation10 [shape = 'u8[16384]{0}', space=vmem, size = 0x4000, scoped, tag = 'input window, operand 5, single buffered']
    #allocation11 [shape = 'u8[16384]{0}', space=vmem, size = 0x4000, scoped, tag = 'input window, operand 7, single buffered']
    #allocation12 [shape = 's32[1]{0}', space=sflag, size = 0x4, scoped, tag = 'scoped memory for tpu_custom_call.1']
    #allocation13 [shape = 'u8[512]{0}', space=vmem, size = 0x400, scoped, tag = 'input window, operand 8, single buffered']
    #allocation14 [shape = 'u8[8192]{0}', space=vmem, size = 0x2000, scoped, tag = 'output window, operand 0, single buffered']
    %16 = vsyncpa [#allocation3], 0
    %17 = vsyncpa [#allocation6], 0
    %18 = vsyncpa [#allocation9], 0
    %19 = vsyncpa [#allocation12], 0
    %20 = vsyncpa [#allocation4], 0
    // Predicated region
    $region2: #{tpu_custom_call.1} parent=1 // pred_check
      _
    $region3: #{tpu_custom_call.1} parent=1 // pred_check_branch
      %22 = sbr.rel (0) target = $region5
    $region4: #{tpu_custom_call.1} parent=1 // pred_region
      %s24 = ssub.s32 256, 256
      %25 = vsyncadd [#allocation3], %s24
      %s26 = sshll.u32 [#allocation2], 4
      %s27 = int_to_ptr.vmem [resolvable:$true] %s26
      %32 = dma.hbm_to_vmem [thread:$0]  %s0, 256, %s27, [#allocation3], 128, 128, 8
    $region5: #{tpu_custom_call.1} parent=1 // pred_fallthru
      _
    // Predicated region
    $region6: #{tpu_custom_call.1} parent=1 // pred_check
      _
    $region7: #{tpu_custom_call.1} parent=1 // pred_check_branch
      %34 = sbr.rel (0) target = $region9
    $region8: #{tpu_custom_call.1} parent=1 // pred_region
      %s36 = ssub.s32 256, 256
      %37 = vsyncadd [#allocation6], %s36
      %s38 = sshll.u32 [#allocation5], 4
      %s39 = int_to_ptr.vmem [resolvable:$true] %s38
      %44 = dma.hbm_to_vmem [thread:$0]  %s1, 256, %s39, [#allocation6], 128, 128, 8
    $region9: #{tpu_custom_call.1} parent=1 // pred_fallthru
      _
    // Predicated region
    $region10: #{tpu_custom_call.1} parent=1 // pred_check
      _
    $region11: #{tpu_custom_call.1} parent=1 // pred_check_branch
      %46 = sbr.rel (0) target = $region13
    $region12: #{tpu_custom_call.1} parent=1 // pred_region
      %s48 = ssub.s32 256, 256
      %49 = vsyncadd [#allocation6], %s48
      %s50 = sshll.u32 [#allocation7], 4
      %s51 = int_to_ptr.vmem [resolvable:$true] %s50
      %56 = dma.hbm_to_vmem [thread:$0]  %s2, 256, %s51, [#allocation6], 128, 128, 8
    $region13: #{tpu_custom_call.1} parent=1 // pred_fallthru
      _
    // Predicated region
    $region14: #{tpu_custom_call.1} parent=1 // pred_check
      _
    $region15: #{tpu_custom_call.1} parent=1 // pred_check_branch
      %58 = sbr.rel (0) target = $region17
    $region16: #{tpu_custom_call.1} parent=1 // pred_region
      %s60 = ssub.s32 512, 512
      %61 = vsyncadd [#allocation9], %s60
      %s62 = sshll.u32 [#allocation8], 4
      %s63 = int_to_ptr.vmem [resolvable:$true] %s62
      %68 = dma.hbm_to_vmem [thread:$0]  %s3, 512, %s63, [#allocation9], 128, 128, 8
    $region17: #{tpu_custom_call.1} parent=1 // pred_fallthru
      _
    // Predicated region
    $region18: #{tpu_custom_call.1} parent=1 // pred_check
      _
    $region19: #{tpu_custom_call.1} parent=1 // pred_check_branch
      %70 = sbr.rel (0) target = $region21
    $region20: #{tpu_custom_call.1} parent=1 // pred_region
      _
    $region21: #{tpu_custom_call.1} parent=1 // pred_fallthru
      _
    // Predicated region
    $region22: #{tpu_custom_call.1} parent=1 // pred_check
      _
    $region23: #{tpu_custom_call.1} parent=1 // pred_check_branch
      %72 = sbr.rel (0) target = $region25
    $region24: #{tpu_custom_call.1} parent=1 // pred_region
      %s74 = ssub.s32 512, 512
      %75 = vsyncadd [#allocation9], %s74
      %s76 = sshll.u32 [#allocation10], 4
      %s77 = int_to_ptr.vmem [resolvable:$true] %s76
      %82 = dma.hbm_to_vmem [thread:$0]  %s5, 512, %s77, [#allocation9], 128, 128, 8
    $region25: #{tpu_custom_call.1} parent=1 // pred_fallthru
      _
    // Predicated region
    $region26: #{tpu_custom_call.1} parent=1 // pred_check
      _
    $region27: #{tpu_custom_call.1} parent=1 // pred_check_branch
      %84 = sbr.rel (0) target = $region29
    $region28: #{tpu_custom_call.1} parent=1 // pred_region
      _
    $region29: #{tpu_custom_call.1} parent=1 // pred_fallthru
      _
    // Predicated region
    $region30: #{tpu_custom_call.1} parent=1 // pred_check
      _
    $region31: #{tpu_custom_call.1} parent=1 // pred_check_branch
      %86 = sbr.rel (0) target = $region33
    $region32: #{tpu_custom_call.1} parent=1 // pred_region
      %s88 = ssub.s32 512, 512
      %89 = vsyncadd [#allocation12], %s88
      %s90 = sshll.u32 [#allocation11], 4
      %s91 = int_to_ptr.vmem [resolvable:$true] %s90
      %96 = dma.hbm_to_vmem [thread:$0]  %s7, 512, %s91, [#allocation12], 128, 128, 8
    $region33: #{tpu_custom_call.1} parent=1 // pred_fallthru
      _
    // Predicated region
    $region34: #{tpu_custom_call.1} parent=1 // pred_check
      _
    $region35: #{tpu_custom_call.1} parent=1 // pred_check_branch
      %98 = sbr.rel (0) target = $region37
    $region36: #{tpu_custom_call.1} parent=1 // pred_region
      %s100 = ssub.s32 16, 16
      %101 = vsyncadd [#allocation12], %s100
      %s103 = sshll.u32 [#allocation13], 4
      %s104 = int_to_ptr.vmem [resolvable:$true] %s103
      %106 = dma.hbm_to_vmem [thread:$0]  %s8, 16, %s104, [#allocation12]
    $region37: #{tpu_custom_call.1} parent=1 // pred_fallthru
      _
    // Predicated region
    $region38: #{tpu_custom_call.1} parent=1 // pred_check
      _
    $region39: #{tpu_custom_call.1} parent=1 // pred_check_branch
      %108 = sbr.rel (0) target = $region41
    $region40: #{tpu_custom_call.1} parent=1 // pred_region
      _
    $region41: #{tpu_custom_call.1} parent=1 // pred_fallthru
      _
    // Predicated region
    $region42: #{tpu_custom_call.1} parent=1 // pred_check
      _
    $region43: #{tpu_custom_call.1} parent=1 // pred_check_branch
      %110 = sbr.rel (0) target = $region45
    $region44: #{tpu_custom_call.1} parent=1 // pred_region
      _
    $region45: #{tpu_custom_call.1} parent=1 // pred_fallthru
      _
    // Predicated region
    $region46: #{tpu_custom_call.1} parent=1 // pred_check
      _
    $region47: #{tpu_custom_call.1} parent=1 // pred_check_branch
      %112 = sbr.rel (0) target = $region49
    $region48: #{tpu_custom_call.1} parent=1 // pred_region
      %113 = dma.done [#allocation3], 256
    $region49: #{tpu_custom_call.1} parent=1 // pred_fallthru
      _
    // Predicated region
    $region50: #{tpu_custom_call.1} parent=1 // pred_check
      _
    $region51: #{tpu_custom_call.1} parent=1 // pred_check_branch
      %115 = sbr.rel (0) target = $region53
    $region52: #{tpu_custom_call.1} parent=1 // pred_region
      %116 = dma.done [#allocation6], 256
    $region53: #{tpu_custom_call.1} parent=1 // pred_fallthru
      _
    // Predicated region
    $region54: #{tpu_custom_call.1} parent=1 // pred_check
      _
    $region55: #{tpu_custom_call.1} parent=1 // pred_check_branch
      %118 = sbr.rel (0) target = $region57
    $region56: #{tpu_custom_call.1} parent=1 // pred_region
      %119 = dma.done [#allocation6], 256
    $region57: #{tpu_custom_call.1} parent=1 // pred_fallthru
      _
    // Predicated region
    $region58: #{tpu_custom_call.1} parent=1 // pred_check
      _
    $region59: #{tpu_custom_call.1} parent=1 // pred_check_branch
      %121 = sbr.rel (0) target = $region61
    $region60: #{tpu_custom_call.1} parent=1 // pred_region
      %122 = dma.done [#allocation9], 512
    $region61: #{tpu_custom_call.1} parent=1 // pred_fallthru
      _
    // Predicated region
    $region62: #{tpu_custom_call.1} parent=1 // pred_check
      _
    $region63: #{tpu_custom_call.1} parent=1 // pred_check_branch
      %124 = sbr.rel (0) target = $region65
    $region64: #{tpu_custom_call.1} parent=1 // pred_region
      %125 = dma.done [#allocation9], 512
    $region65: #{tpu_custom_call.1} parent=1 // pred_fallthru
      _
    // Predicated region
    $region66: #{tpu_custom_call.1} parent=1 // pred_check
      _
    $region67: #{tpu_custom_call.1} parent=1 // pred_check_branch
      %127 = sbr.rel (0) target = $region69
    $region68: #{tpu_custom_call.1} parent=1 // pred_region
      %128 = dma.done [#allocation12], 512
    $region69: #{tpu_custom_call.1} parent=1 // pred_fallthru
      _
    // Predicated region
    $region70: #{tpu_custom_call.1} parent=1 // pred_check
      _
    $region71: #{tpu_custom_call.1} parent=1 // pred_check_branch
      %130 = sbr.rel (0) target = $region73
    $region72: #{tpu_custom_call.1} parent=1 // pred_region
      %131 = dma.done [#allocation12], 16
    $region73: #{tpu_custom_call.1} parent=1 // pred_fallthru
      _
    %v132 = vld [vmem:[#allocation2] sm:$0xff]
    %v133 = vld [vmem:[#allocation2 + $0x8] sm:$0xff]
    %v134 = vld [vmem:[#allocation5] sm:$0xff]
    %v135 = vld [vmem:[#allocation5 + $0x8] sm:$0xff]
    %v136 = vld [vmem:[#allocation7] sm:$0xff]
    %v137 = vld [vmem:[#allocation7 + $0x8] sm:$0xff]
    %v138 = vld [vmem:[#allocation8] sm:$0xff]
    %v139 = vld [vmem:[#allocation8 + $0x8] sm:$0xff]
    %v140 = vld [vmem:[#allocation8 + $0x10] sm:$0xff]
    %v141 = vld [vmem:[#allocation8 + $0x18] sm:$0xff]
    %v142 = vld [vmem:[%s4] sm:$0x1]
    %v144 = vlaneseq
    %v145 = vshrl.u32 %v144, 7
    %v146 = vsub.s32 0, %v145
    %v147 = vrot.slane %v142, %v146
    %vm149 = vcmask 261120
    %v151 = vsel %vm149, %v132, 0
    %v154 = vsel %vm149, %v133, 0
    %156 = vmatprep.subr.mxu0 0.0
    %157 = vmatpush1.msra.mxu0 %v138
    %158 = vmatprep.subr.mxu0 0.0
    %159 = vmatpush1.msra.mxu0 %v139
    %160 = vmatprep.subr.mxu0 0.0
    %161 = vmatpush1.msra.mxu0 %v140
    %162 = vmatprep.subr.mxu0 0.0
    %163 = vmatpush1.msra.mxu0 %v141
    %164 = vmatprep.subr.mxu0 0.0
    %165 = vmatpush1.msra.mxu0 0.0
    %166 = vmatprep.subr.mxu0 0.0
    %167 = vmatpush1.msra.mxu0 0.0
    %168 = vmatprep.subr.mxu0 0.0
    %169 = vmatpush1.msra.mxu0 0.0
    %170 = vmatprep.subr.mxu0 0.0
    %171 = vmatpush1.msra.mxu0 0.0
    %172 = vmatprep.subr.mxu0 0.0
    %173 = vmatpush1.msra.mxu0 0.0
    %174 = vmatprep.subr.mxu0 0.0
    %175 = vmatpush1.msra.mxu0 0.0
    %176 = vmatprep.subr.mxu0 0.0
    %177 = vmatpush1.msra.mxu0 0.0
    %178 = vmatprep.subr.mxu0 0.0
    %179 = vmatpush1.msra.mxu0 0.0
    %180 = vmatprep.subr.mxu0 0.0
    %181 = vmatpush1.msra.mxu0 0.0
    %182 = vmatprep.subr.mxu0 0.0
    %183 = vmatpush1.msra.mxu0 0.0
    %184 = vmatprep.subr.mxu0 0.0
    %185 = vmatpush1.msra.mxu0 0.0
    %186 = vmatprep.subr.mxu0 0.0
    %187 = vmatpush1.msra.mxu0 0.0
    %188 = vmatprep.subr.mxu0 0.0
    %189 = vmatpush1.msra.mxu0 0.0
    %190 = vmatprep.subr.mxu0 0.0
    %191 = vmatpush1.msra.mxu0 0.0
    %192 = vmatprep.subr.mxu0 0.0
    %193 = vmatpush1.msra.mxu0 0.0
    %194 = vmatprep.subr.mxu0 0.0
    %195 = vmatpush1.msra.mxu0 0.0
    %196 = vmatprep.subr.mxu0 0.0
    %197 = vmatpush1.msra.mxu0 0.0
    %198 = vmatprep.subr.mxu0 0.0
    %199 = vmatpush1.msra.mxu0 0.0
    %200 = vmatprep.subr.mxu0 0.0
    %201 = vmatpush1.msra.mxu0 0.0
    %202 = vmatprep.subr.mxu0 0.0
    %203 = vmatpush1.msra.mxu0 0.0
    %204 = vmatprep.subr.mxu0 0.0
    %205 = vmatpush1.msra.mxu0 0.0
    %206 = vmatprep.subr.mxu0 0.0
    %207 = vmatpush1.msra.mxu0 0.0
    %208 = vmatprep.subr.mxu0 0.0
    %209 = vmatpush1.msra.mxu0 0.0
    %210 = vmatprep.subr.mxu0 0.0
    %211 = vmatpush1.msra.mxu0 0.0
    %212 = vmatprep.subr.mxu0 0.0
    %213 = vmatpush1.msra.mxu0 0.0
    %214 = vmatprep.subr.mxu0 0.0
    %215 = vmatpush1.msra.mxu0 0.0
    %216 = vmatprep.subr.mxu0 0.0
    %217 = vmatpush1.msra.mxu0 0.0
    %218 = vmatprep.subr.mxu0 0.0
    %219 = vmatpush1.msra.mxu0 0.0
    %220 = vmatprep.mubr.f32.mxu0 0.0
    %221 = vmatmul.mubr.f32.gmra.mrb[0].mxu0 %v151
    %v222 = vpop.f32.mrb[0].mxu0
    %v223 = vadd.f32 %v147, %v222
    %v224 = vpop.f32.mrb[0].mxu0
    %225 = vmatprep.mubr.f32.mxu0 0.0
    %226 = vmatmul.mubr.f32.gmra.mrb[0].mxu0 %v154
    %v227 = vpop.f32.mrb[0].mxu0
    %v228 = vadd.f32 %v147, %v227
    %v229 = vpop.f32.mrb[0].mxu0
    %230 = vdwg.mxu0
    %v231 = vld [vmem:[#allocation10] sm:$0xff]
    %v232 = vld [vmem:[#allocation10 + $0x8] sm:$0xff]
    %v233 = vld [vmem:[#allocation10 + $0x10] sm:$0xff]
    %v234 = vld [vmem:[#allocation10 + $0x18] sm:$0xff]
    %v235 = vld [vmem:[%s6] sm:$0x1]
    %v237 = vlaneseq
    %v238 = vshrl.u32 %v237, 7
    %v239 = vsub.s32 0, %v238
    %v240 = vrot.slane %v235, %v239
    %v243 = vsel %vm149, %v134, 0
    %v246 = vsel %vm149, %v135, 0
    %248 = vmatprep.subr.mxu0 0.0
    %249 = vmatpush1.msra.mxu0 %v231
    %250 = vmatprep.subr.mxu0 0.0
    %251 = vmatpush1.msra.mxu0 %v232
    %252 = vmatprep.subr.mxu0 0.0
    %253 = vmatpush1.msra.mxu0 %v233
    %254 = vmatprep.subr.mxu0 0.0
    %255 = vmatpush1.msra.mxu0 %v234
    %256 = vmatprep.subr.mxu0 0.0
    %257 = vmatpush1.msra.mxu0 0.0
    %258 = vmatprep.subr.mxu0 0.0
    %259 = vmatpush1.msra.mxu0 0.0
    %260 = vmatprep.subr.mxu0 0.0
    %261 = vmatpush1.msra.mxu0 0.0
    %262 = vmatprep.subr.mxu0 0.0
    %263 = vmatpush1.msra.mxu0 0.0
    %264 = vmatprep.subr.mxu0 0.0
    %265 = vmatpush1.msra.mxu0 0.0
    %266 = vmatprep.subr.mxu0 0.0
    %267 = vmatpush1.msra.mxu0 0.0
    %268 = vmatprep.subr.mxu0 0.0
    %269 = vmatpush1.msra.mxu0 0.0
    %270 = vmatprep.subr.mxu0 0.0
    %271 = vmatpush1.msra.mxu0 0.0
    %272 = vmatprep.subr.mxu0 0.0
    %273 = vmatpush1.msra.mxu0 0.0
    %274 = vmatprep.subr.mxu0 0.0
    %275 = vmatpush1.msra.mxu0 0.0
    %276 = vmatprep.subr.mxu0 0.0
    %277 = vmatpush1.msra.mxu0 0.0
    %278 = vmatprep.subr.mxu0 0.0
    %279 = vmatpush1.msra.mxu0 0.0
    %280 = vmatprep.subr.mxu0 0.0
    %281 = vmatpush1.msra.mxu0 0.0
    %282 = vmatprep.subr.mxu0 0.0
    %283 = vmatpush1.msra.mxu0 0.0
    %284 = vmatprep.subr.mxu0 0.0
    %285 = vmatpush1.msra.mxu0 0.0
    %286 = vmatprep.subr.mxu0 0.0
    %287 = vmatpush1.msra.mxu0 0.0
    %288 = vmatprep.subr.mxu0 0.0
    %289 = vmatpush1.msra.mxu0 0.0
    %290 = vmatprep.subr.mxu0 0.0
    %291 = vmatpush1.msra.mxu0 0.0
    %292 = vmatprep.subr.mxu0 0.0
    %293 = vmatpush1.msra.mxu0 0.0
    %294 = vmatprep.subr.mxu0 0.0
    %295 = vmatpush1.msra.mxu0 0.0
    %296 = vmatprep.subr.mxu0 0.0
    %297 = vmatpush1.msra.mxu0 0.0
    %298 = vmatprep.subr.mxu0 0.0
    %299 = vmatpush1.msra.mxu0 0.0
    %300 = vmatprep.subr.mxu0 0.0
    %301 = vmatpush1.msra.mxu0 0.0
    %302 = vmatprep.subr.mxu0 0.0
    %303 = vmatpush1.msra.mxu0 0.0
    %304 = vmatprep.subr.mxu0 0.0
    %305 = vmatpush1.msra.mxu0 0.0
    %306 = vmatprep.subr.mxu0 0.0
    %307 = vmatpush1.msra.mxu0 0.0
    %308 = vmatprep.subr.mxu0 0.0
    %309 = vmatpush1.msra.mxu0 0.0
    %310 = vmatprep.subr.mxu0 0.0
    %311 = vmatpush1.msra.mxu0 0.0
    %312 = vmatprep.mubr.f32.mxu0 0.0
    %313 = vmatmul.mubr.f32.gmra.mrb[0].mxu0 %v243
    %v314 = vpop.f32.mrb[0].mxu0
    %v315 = vadd.f32 %v240, %v314
    %v316 = vpop.f32.mrb[0].mxu0
    %317 = vmatprep.mubr.f32.mxu0 0.0
    %318 = vmatmul.mubr.f32.gmra.mrb[0].mxu0 %v246
    %v319 = vpop.f32.mrb[0].mxu0
    %v320 = vadd.f32 %v240, %v319
    %v321 = vpop.f32.mrb[0].mxu0
    %322 = vdwg.mxu0
    %v323 = vld [vmem:[#allocation11] sm:$0xff]
    %v324 = vld [vmem:[#allocation11 + $0x8] sm:$0xff]
    %v325 = vld [vmem:[#allocation11 + $0x10] sm:$0xff]
    %v326 = vld [vmem:[#allocation11 + $0x18] sm:$0xff]
    %v327 = vld [vmem:[#allocation13] sm:$0x1]
    %v329 = vlaneseq
    %v330 = vshrl.u32 %v329, 7
    %v331 = vsub.s32 0, %v330
    %v332 = vrot.slane %v327, %v331
    %v335 = vsel %vm149, %v136, 0
    %v338 = vsel %vm149, %v137, 0
    %340 = vmatprep.subr.mxu0 0.0
    %341 = vmatpush1.msra.mxu0 %v323
    %342 = vmatprep.subr.mxu0 0.0
    %343 = vmatpush1.msra.mxu0 %v324
    %344 = vmatprep.subr.mxu0 0.0
    %345 = vmatpush1.msra.mxu0 %v325
    %346 = vmatprep.subr.mxu0 0.0
    %347 = vmatpush1.msra.mxu0 %v326
    %348 = vmatprep.subr.mxu0 0.0
    %349 = vmatpush1.msra.mxu0 0.0
    %350 = vmatprep.subr.mxu0 0.0
    %351 = vmatpush1.msra.mxu0 0.0
    %352 = vmatprep.subr.mxu0 0.0
    %353 = vmatpush1.msra.mxu0 0.0
    %354 = vmatprep.subr.mxu0 0.0
    %355 = vmatpush1.msra.mxu0 0.0
    %356 = vmatprep.subr.mxu0 0.0
    %357 = vmatpush1.msra.mxu0 0.0
    %358 = vmatprep.subr.mxu0 0.0
    %359 = vmatpush1.msra.mxu0 0.0
    %360 = vmatprep.subr.mxu0 0.0
    %361 = vmatpush1.msra.mxu0 0.0
    %362 = vmatprep.subr.mxu0 0.0
    %363 = vmatpush1.msra.mxu0 0.0
    %364 = vmatprep.subr.mxu0 0.0
    %365 = vmatpush1.msra.mxu0 0.0
    %366 = vmatprep.subr.mxu0 0.0
    %367 = vmatpush1.msra.mxu0 0.0
    %368 = vmatprep.subr.mxu0 0.0
    %369 = vmatpush1.msra.mxu0 0.0
    %370 = vmatprep.subr.mxu0 0.0
    %371 = vmatpush1.msra.mxu0 0.0
    %372 = vmatprep.subr.mxu0 0.0
    %373 = vmatpush1.msra.mxu0 0.0
    %374 = vmatprep.subr.mxu0 0.0
    %375 = vmatpush1.msra.mxu0 0.0
    %376 = vmatprep.subr.mxu0 0.0
    %377 = vmatpush1.msra.mxu0 0.0
    %378 = vmatprep.subr.mxu0 0.0
    %379 = vmatpush1.msra.mxu0 0.0
    %380 = vmatprep.subr.mxu0 0.0
    %381 = vmatpush1.msra.mxu0 0.0
    %382 = vmatprep.subr.mxu0 0.0
    %383 = vmatpush1.msra.mxu0 0.0
    %384 = vmatprep.subr.mxu0 0.0
    %385 = vmatpush1.msra.mxu0 0.0
    %386 = vmatprep.subr.mxu0 0.0
    %387 = vmatpush1.msra.mxu0 0.0
    %388 = vmatprep.subr.mxu0 0.0
    %389 = vmatpush1.msra.mxu0 0.0
    %390 = vmatprep.subr.mxu0 0.0
    %391 = vmatpush1.msra.mxu0 0.0
    %392 = vmatprep.subr.mxu0 0.0
    %393 = vmatpush1.msra.mxu0 0.0
    %394 = vmatprep.subr.mxu0 0.0
    %395 = vmatpush1.msra.mxu0 0.0
    %396 = vmatprep.subr.mxu0 0.0
    %397 = vmatpush1.msra.mxu0 0.0
    %398 = vmatprep.subr.mxu0 0.0
    %399 = vmatpush1.msra.mxu0 0.0
    %400 = vmatprep.subr.mxu0 0.0
    %401 = vmatpush1.msra.mxu0 0.0
    %402 = vmatprep.subr.mxu0 0.0
    %403 = vmatpush1.msra.mxu0 0.0
    %404 = vmatprep.mubr.f32.mxu0 0.0
    %405 = vmatmul.mubr.f32.gmra.mrb[0].mxu0 %v335
    %v406 = vpop.f32.mrb[0].mxu0
    %v407 = vadd.f32 %v332, %v406
    %v408 = vpop.f32.mrb[0].mxu0
    %409 = vmatprep.mubr.f32.mxu0 0.0
    %410 = vmatmul.mubr.f32.gmra.mrb[0].mxu0 %v338
    %v411 = vpop.f32.mrb[0].mxu0
    %v412 = vadd.f32 %v332, %v411
    %v413 = vpop.f32.mrb[0].mxu0
    %414 = vdwg.mxu0
    %v417 = vcombine.high %v223, %v223
    %v419 = vunpack.c.l.s4 1983009808
    %v420 = vunpack.c.0.s8 %v419
    %v421 = vlaneseq
    %v422 = vshrl.u32 %v421, 7
    %v423 = vsub.s32 %v420, %v422
    %v424 = vrot.slane %v223, %v423
    %v426 = vunpack.c.l.s4 1983009808
    %v427 = vunpack.c.0.s8 %v426
    %v428 = vlaneseq
    %v429 = vshrl.u32 %v428, 7
    %v430 = vsub.s32 %v427, %v429
    %v431 = vrot.slane %v417, %v430
    %v432 = vcombine.high %v424, %v424
    %v433 = vcombine.high %v431, %v431
    %v434 = vcombine.high %v228, %v228
    %v436 = vunpack.c.l.s4 1983009808
    %v437 = vunpack.c.0.s8 %v436
    %v438 = vlaneseq
    %v439 = vshrl.u32 %v438, 7
    %v440 = vsub.s32 %v437, %v439
    %v441 = vrot.slane %v228, %v440
    %v443 = vunpack.c.l.s4 1983009808
    %v444 = vunpack.c.0.s8 %v443
    %v445 = vlaneseq
    %v446 = vshrl.u32 %v445, 7
    %v447 = vsub.s32 %v444, %v446
    %v448 = vrot.slane %v434, %v447
    %v449 = vcombine.high %v441, %v441
    %v450 = vcombine.high %v448, %v448
    %v453 = vcombine.high %v315, %v315
    %v455 = vunpack.c.l.s4 1983009808
    %v456 = vunpack.c.0.s8 %v455
    %v457 = vlaneseq
    %v458 = vshrl.u32 %v457, 7
    %v459 = vsub.s32 %v456, %v458
    %v460 = vrot.slane %v315, %v459
    %v462 = vunpack.c.l.s4 1983009808
    %v463 = vunpack.c.0.s8 %v462
    %v464 = vlaneseq
    %v465 = vshrl.u32 %v464, 7
    %v466 = vsub.s32 %v463, %v465
    %v467 = vrot.slane %v453, %v466
    %v468 = vcombine.high %v460, %v460
    %v469 = vcombine.high %v467, %v467
    %v470 = vcombine.high %v320, %v320
    %v472 = vunpack.c.l.s4 1983009808
    %v473 = vunpack.c.0.s8 %v472
    %v474 = vlaneseq
    %v475 = vshrl.u32 %v474, 7
    %v476 = vsub.s32 %v473, %v475
    %v477 = vrot.slane %v320, %v476
    %v479 = vunpack.c.l.s4 1983009808
    %v480 = vunpack.c.0.s8 %v479
    %v481 = vlaneseq
    %v482 = vshrl.u32 %v481, 7
    %v483 = vsub.s32 %v480, %v482
    %v484 = vrot.slane %v470, %v483
    %v485 = vcombine.high %v477, %v477
    %v486 = vcombine.high %v484, %v484
    %v489 = vcombine.high %v407, %v407
    %v491 = vunpack.c.l.s4 1983009808
    %v492 = vunpack.c.0.s8 %v491
    %v493 = vlaneseq
    %v494 = vshrl.u32 %v493, 7
    %v495 = vsub.s32 %v492, %v494
    %v496 = vrot.slane %v407, %v495
    %v498 = vunpack.c.l.s4 1983009808
    %v499 = vunpack.c.0.s8 %v498
    %v500 = vlaneseq
    %v501 = vshrl.u32 %v500, 7
    %v502 = vsub.s32 %v499, %v501
    %v503 = vrot.slane %v489, %v502
    %v504 = vcombine.high %v496, %v496
    %v505 = vcombine.high %v503, %v503
    %v506 = vcombine.high %v412, %v412
    %v508 = vunpack.c.l.s4 1983009808
    %v509 = vunpack.c.0.s8 %v508
    %v510 = vlaneseq
    %v511 = vshrl.u32 %v510, 7
    %v512 = vsub.s32 %v509, %v511
    %v513 = vrot.slane %v412, %v512
    %v515 = vunpack.c.l.s4 1983009808
    %v516 = vunpack.c.0.s8 %v515
    %v517 = vlaneseq
    %v518 = vshrl.u32 %v517, 7
    %v519 = vsub.s32 %v516, %v518
    %v520 = vrot.slane %v506, %v519
    %v521 = vcombine.high %v513, %v513
    %v522 = vcombine.high %v520, %v520
    %v523 = vld [vmem:[%s9] sm:$0xff]
    %v524 = vld [vmem:[%s9 + $0x8] sm:$0xff]
    %v525 = vld [vmem:[%s9 + $0x10] sm:$0xff]
    %v526 = vld [vmem:[%s9 + $0x18] sm:$0xff]
    %v527 = vld [vmem:[%s10] sm:$0x1]
    %528 = vrot.lane.b32.xlu0 %v424, 120
    %v529 = vpop.permute.xlu0 %528
    %530 = vrot.lane.b32.xlu0 %v432, 120
    %v531 = vpop.permute.xlu0 %530
    %532 = vrot.lane.b32.xlu0 %v431, 120
    %v533 = vpop.permute.xlu0 %532
    %534 = vrot.lane.b32.xlu0 %v433, 120
    %v535 = vpop.permute.xlu0 %534
    %536 = vrot.lane.b32.xlu0 %v441, 120
    %v537 = vpop.permute.xlu0 %536
    %538 = vrot.lane.b32.xlu0 %v449, 120
    %v539 = vpop.permute.xlu0 %538
    %540 = vrot.lane.b32.xlu0 %v448, 120
    %v541 = vpop.permute.xlu0 %540
    %542 = vrot.lane.b32.xlu0 %v450, 120
    %v543 = vpop.permute.xlu0 %542
    %544 = vrot.lane.b32.xlu0 %v424, 112
    %v545 = vpop.permute.xlu0 %544
    %546 = vrot.lane.b32.xlu0 %v432, 112
    %v547 = vpop.permute.xlu0 %546
    %548 = vrot.lane.b32.xlu0 %v431, 112
    %v549 = vpop.permute.xlu0 %548
    %550 = vrot.lane.b32.xlu0 %v433, 112
    %v551 = vpop.permute.xlu0 %550
    %552 = vrot.lane.b32.xlu0 %v441, 112
    %v553 = vpop.permute.xlu0 %552
    %554 = vrot.lane.b32.xlu0 %v449, 112
    %v555 = vpop.permute.xlu0 %554
    %556 = vrot.lane.b32.xlu0 %v448, 112
    %v557 = vpop.permute.xlu0 %556
    %558 = vrot.lane.b32.xlu0 %v450, 112
    %v559 = vpop.permute.xlu0 %558
    %560 = vrot.lane.b32.xlu0 %v424, 104
    %v561 = vpop.permute.xlu0 %560
    %562 = vrot.lane.b32.xlu0 %v432, 104
    %v563 = vpop.permute.xlu0 %562
    %564 = vrot.lane.b32.xlu0 %v431, 104
    %v565 = vpop.permute.xlu0 %564
    %566 = vrot.lane.b32.xlu0 %v433, 104
    %v567 = vpop.permute.xlu0 %566
    %568 = vrot.lane.b32.xlu0 %v441, 104
    %v569 = vpop.permute.xlu0 %568
    %570 = vrot.lane.b32.xlu0 %v449, 104
    %v571 = vpop.permute.xlu0 %570
    %572 = vrot.lane.b32.xlu0 %v448, 104
    %v573 = vpop.permute.xlu0 %572
    %574 = vrot.lane.b32.xlu0 %v450, 104
    %v575 = vpop.permute.xlu0 %574
    %576 = vrot.lane.b32.xlu0 %v460, 120
    %v577 = vpop.permute.xlu0 %576
    %578 = vrot.lane.b32.xlu0 %v468, 120
    %v579 = vpop.permute.xlu0 %578
    %580 = vrot.lane.b32.xlu0 %v467, 120
    %v581 = vpop.permute.xlu0 %580
    %582 = vrot.lane.b32.xlu0 %v469, 120
    %v583 = vpop.permute.xlu0 %582
    %584 = vrot.lane.b32.xlu0 %v477, 120
    %v585 = vpop.permute.xlu0 %584
    %586 = vrot.lane.b32.xlu0 %v485, 120
    %v587 = vpop.permute.xlu0 %586
    %588 = vrot.lane.b32.xlu0 %v484, 120
    %v589 = vpop.permute.xlu0 %588
    %590 = vrot.lane.b32.xlu0 %v486, 120
    %v591 = vpop.permute.xlu0 %590
    %592 = vrot.lane.b32.xlu0 %v460, 112
    %v593 = vpop.permute.xlu0 %592
    %594 = vrot.lane.b32.xlu0 %v468, 112
    %v595 = vpop.permute.xlu0 %594
    %596 = vrot.lane.b32.xlu0 %v467, 112
    %v597 = vpop.permute.xlu0 %596
    %598 = vrot.lane.b32.xlu0 %v469, 112
    %v599 = vpop.permute.xlu0 %598
    %600 = vrot.lane.b32.xlu0 %v477, 112
    %v601 = vpop.permute.xlu0 %600
    %602 = vrot.lane.b32.xlu0 %v485, 112
    %v603 = vpop.permute.xlu0 %602
    %604 = vrot.lane.b32.xlu0 %v484, 112
    %v605 = vpop.permute.xlu0 %604
    %606 = vrot.lane.b32.xlu0 %v486, 112
    %v607 = vpop.permute.xlu0 %606
    %608 = vrot.lane.b32.xlu0 %v460, 104
    %v609 = vpop.permute.xlu0 %608
    %610 = vrot.lane.b32.xlu0 %v468, 104
    %v611 = vpop.permute.xlu0 %610
    %612 = vrot.lane.b32.xlu0 %v467, 104
    %v613 = vpop.permute.xlu0 %612
    %614 = vrot.lane.b32.xlu0 %v469, 104
    %v615 = vpop.permute.xlu0 %614
    %616 = vrot.lane.b32.xlu0 %v477, 104
    %v617 = vpop.permute.xlu0 %616
    %618 = vrot.lane.b32.xlu0 %v485, 104
    %v619 = vpop.permute.xlu0 %618
    %620 = vrot.lane.b32.xlu0 %v484, 104
    %v621 = vpop.permute.xlu0 %620
    %622 = vrot.lane.b32.xlu0 %v486, 104
    %v623 = vpop.permute.xlu0 %622
    %624 = vrot.lane.b32.xlu0 %v496, 120
    %v625 = vpop.permute.xlu0 %624
    %626 = vrot.lane.b32.xlu0 %v504, 120
    %v627 = vpop.permute.xlu0 %626
    %628 = vrot.lane.b32.xlu0 %v503, 120
    %v629 = vpop.permute.xlu0 %628
    %630 = vrot.lane.b32.xlu0 %v505, 120
    %v631 = vpop.permute.xlu0 %630
    %632 = vrot.lane.b32.xlu0 %v513, 120
    %v633 = vpop.permute.xlu0 %632
    %634 = vrot.lane.b32.xlu0 %v521, 120
    %v635 = vpop.permute.xlu0 %634
    %636 = vrot.lane.b32.xlu0 %v520, 120
    %v637 = vpop.permute.xlu0 %636
    %638 = vrot.lane.b32.xlu0 %v522, 120
    %v639 = vpop.permute.xlu0 %638
    %640 = vrot.lane.b32.xlu0 %v496, 112
    %v641 = vpop.permute.xlu0 %640
    %642 = vrot.lane.b32.xlu0 %v504, 112
    %v643 = vpop.permute.xlu0 %642
    %644 = vrot.lane.b32.xlu0 %v503, 112
    %v645 = vpop.permute.xlu0 %644
    %646 = vrot.lane.b32.xlu0 %v505, 112
    %v647 = vpop.permute.xlu0 %646
    %648 = vrot.lane.b32.xlu0 %v513, 112
    %v649 = vpop.permute.xlu0 %648
    %650 = vrot.lane.b32.xlu0 %v521, 112
    %v651 = vpop.permute.xlu0 %650
    %652 = vrot.lane.b32.xlu0 %v520, 112
    %v653 = vpop.permute.xlu0 %652
    %654 = vrot.lane.b32.xlu0 %v522, 112
    %v655 = vpop.permute.xlu0 %654
    %656 = vrot.lane.b32.xlu0 %v496, 104
    %v657 = vpop.permute.xlu0 %656
    %658 = vrot.lane.b32.xlu0 %v504, 104
    %v659 = vpop.permute.xlu0 %658
    %660 = vrot.lane.b32.xlu0 %v503, 104
    %v661 = vpop.permute.xlu0 %660
    %662 = vrot.lane.b32.xlu0 %v505, 104
    %v663 = vpop.permute.xlu0 %662
    %664 = vrot.lane.b32.xlu0 %v513, 104
    %v665 = vpop.permute.xlu0 %664
    %666 = vrot.lane.b32.xlu0 %v521, 104
    %v667 = vpop.permute.xlu0 %666
    %668 = vrot.lane.b32.xlu0 %v520, 104
    %v669 = vpop.permute.xlu0 %668
    %670 = vrot.lane.b32.xlu0 %v522, 104
    %v671 = vpop.permute.xlu0 %670
    %v672 = vlaneseq
    %v673 = vshrl.u32 %v672, 7
    %v674 = vsub.s32 0, %v673
    %v675 = vrot.slane %v424, %v674
    %v676 = vlaneseq
    %v677 = vshrl.u32 %v676, 7
    %v678 = vsub.s32 0, %v677
    %v679 = vrot.slane %v432, %v678
    %v680 = vlaneseq
    %v681 = vshrl.u32 %v680, 7
    %v682 = vsub.s32 0, %v681
    %v683 = vrot.slane %v431, %v682
    %v684 = vlaneseq
    %v685 = vshrl.u32 %v684, 7
    %v686 = vsub.s32 0, %v685
    %v687 = vrot.slane %v433, %v686
    %v688 = vlaneseq
    %v689 = vshrl.u32 %v688, 7
    %v690 = vsub.s32 0, %v689
    %v691 = vrot.slane %v441, %v690
    %v692 = vlaneseq
    %v693 = vshrl.u32 %v692, 7
    %v694 = vsub.s32 0, %v693
    %v695 = vrot.slane %v449, %v694
    %v696 = vlaneseq
    %v697 = vshrl.u32 %v696, 7
    %v698 = vsub.s32 0, %v697
    %v699 = vrot.slane %v448, %v698
    %v700 = vlaneseq
    %v701 = vshrl.u32 %v700, 7
    %v702 = vsub.s32 0, %v701
    %v703 = vrot.slane %v450, %v702
    %vm704 = vcmask 1041409
    %v705 = vsel %vm704, %v679, %v675
    %vm706 = vcmask 1042434
    %v707 = vsel %vm706, %v683, %v705
    %vm708 = vcmask 1043459
    %v709 = vsel %vm708, %v687, %v707
    %vm710 = vcmask 1044484
    %v711 = vsel %vm710, %v691, %v709
    %vm712 = vcmask 1045509
    %v713 = vsel %vm712, %v695, %v711
    %vm714 = vcmask 1046534
    %v715 = vsel %vm714, %v699, %v713
    %vm716 = vcmask 1047559
    %v717 = vsel %vm716, %v703, %v715
    %v718 = vlaneseq
    %v719 = vshrl.u32 %v718, 7
    %v720 = vsub.s32 0, %v719
    %v721 = vrot.slane %v460, %v720
    %v722 = vlaneseq
    %v723 = vshrl.u32 %v722, 7
    %v724 = vsub.s32 0, %v723
    %v725 = vrot.slane %v468, %v724
    %v726 = vlaneseq
    %v727 = vshrl.u32 %v726, 7
    %v728 = vsub.s32 0, %v727
    %v729 = vrot.slane %v467, %v728
    %v730 = vlaneseq
    %v731 = vshrl.u32 %v730, 7
    %v732 = vsub.s32 0, %v731
    %v733 = vrot.slane %v469, %v732
    %v734 = vlaneseq
    %v735 = vshrl.u32 %v734, 7
    %v736 = vsub.s32 0, %v735
    %v737 = vrot.slane %v477, %v736
    %v738 = vlaneseq
    %v739 = vshrl.u32 %v738, 7
    %v740 = vsub.s32 0, %v739
    %v741 = vrot.slane %v485, %v740
    %v742 = vlaneseq
    %v743 = vshrl.u32 %v742, 7
    %v744 = vsub.s32 0, %v743
    %v745 = vrot.slane %v484, %v744
    %v746 = vlaneseq
    %v747 = vshrl.u32 %v746, 7
    %v748 = vsub.s32 0, %v747
    %v749 = vrot.slane %v486, %v748
    %v750 = vsel %vm704, %v725, %v721
    %v751 = vsel %vm706, %v729, %v750
    %v752 = vsel %vm708, %v733, %v751
    %v753 = vsel %vm710, %v737, %v752
    %v754 = vsel %vm712, %v741, %v753
    %v755 = vsel %vm714, %v745, %v754
    %v756 = vsel %vm716, %v749, %v755
    %vm757 = vcmask 64512
    %v758 = vsel %vm757, %v717, 0
    %v760 = vsel %vm757, %v756, 0
    %762 = vmatprep.subr.mxu0 0.0
    %763 = vmatpush1.xpose.msra.mxu0 %v760
    %764 = vmatprep.subr.mxu0 0.0
    %765 = vmatpush1.xpose.msra.mxu0 0.0
    %766 = vmatprep.subr.mxu0 0.0
    %767 = vmatpush1.xpose.msra.mxu0 0.0
    %768 = vmatprep.subr.mxu0 0.0
    %769 = vmatpush1.xpose.msra.mxu0 0.0
    %770 = vmatprep.subr.mxu0 0.0
    %771 = vmatpush1.xpose.msra.mxu0 0.0
    %772 = vmatprep.subr.mxu0 0.0
    %773 = vmatpush1.xpose.msra.mxu0 0.0
    %774 = vmatprep.subr.mxu0 0.0
    %775 = vmatpush1.xpose.msra.mxu0 0.0
    %776 = vmatprep.subr.mxu0 0.0
    %777 = vmatpush1.xpose.msra.mxu0 0.0
    %778 = vmatprep.subr.mxu0 0.0
    %779 = vmatpush1.xpose.msra.mxu0 0.0
    %780 = vmatprep.subr.mxu0 0.0
    %781 = vmatpush1.xpose.msra.mxu0 0.0
    %782 = vmatprep.subr.mxu0 0.0
    %783 = vmatpush1.xpose.msra.mxu0 0.0
    %784 = vmatprep.subr.mxu0 0.0
    %785 = vmatpush1.xpose.msra.mxu0 0.0
    %786 = vmatprep.subr.mxu0 0.0
    %787 = vmatpush1.xpose.msra.mxu0 0.0
    %788 = vmatprep.subr.mxu0 0.0
    %789 = vmatpush1.xpose.msra.mxu0 0.0
    %790 = vmatprep.subr.mxu0 0.0
    %791 = vmatpush1.xpose.msra.mxu0 0.0
    %792 = vmatprep.subr.mxu0 0.0
    %793 = vmatpush1.xpose.msra.mxu0 0.0
    %794 = vmatprep.subr.mxu0 0.0
    %795 = vmatpush1.xpose.msra.mxu0 0.0
    %796 = vmatprep.subr.mxu0 0.0
    %797 = vmatpush1.xpose.msra.mxu0 0.0
    %798 = vmatprep.subr.mxu0 0.0
    %799 = vmatpush1.xpose.msra.mxu0 0.0
    %800 = vmatprep.subr.mxu0 0.0
    %801 = vmatpush1.xpose.msra.mxu0 0.0
    %802 = vmatprep.subr.mxu0 0.0
    %803 = vmatpush1.xpose.msra.mxu0 0.0
    %804 = vmatprep.subr.mxu0 0.0
    %805 = vmatpush1.xpose.msra.mxu0 0.0
    %806 = vmatprep.subr.mxu0 0.0
    %807 = vmatpush1.xpose.msra.mxu0 0.0
    %808 = vmatprep.subr.mxu0 0.0
    %809 = vmatpush1.xpose.msra.mxu0 0.0
    %810 = vmatprep.subr.mxu0 0.0
    %811 = vmatpush1.xpose.msra.mxu0 0.0
    %812 = vmatprep.subr.mxu0 0.0
    %813 = vmatpush1.xpose.msra.mxu0 0.0
    %814 = vmatprep.subr.mxu0 0.0
    %815 = vmatpush1.xpose.msra.mxu0 0.0
    %816 = vmatprep.subr.mxu0 0.0
    %817 = vmatpush1.xpose.msra.mxu0 0.0
    %818 = vmatprep.subr.mxu0 0.0
    %819 = vmatpush1.xpose.msra.mxu0 0.0
    %820 = vmatprep.subr.mxu0 0.0
    %821 = vmatpush1.xpose.msra.mxu0 0.0
    %822 = vmatprep.subr.mxu0 0.0
    %823 = vmatpush1.xpose.msra.mxu0 0.0
    %824 = vmatprep.subr.mxu0 0.0
    %825 = vmatpush1.xpose.msra.mxu0 0.0
    %826 = vmatprep.mubr.f32.mxu0 0.0
    %827 = vmatmul.mubr.f32.gmra.mrb[0].mxu0 %v758
    %v828 = vpop.f32.mrb[0].mxu0
    %v829 = vadd.f32 0.0, %v828
    %v830 = vpop.f32.mrb[0].mxu0
    %831 = vdwg.mxu0
    %v832 = vlaneseq
    %v833 = vshrl.u32 %v832, 7
    %v834 = vsub.s32 0, %v833
    %v835 = vrot.slane %v529, %v834
    %v836 = vlaneseq
    %v837 = vshrl.u32 %v836, 7
    %v838 = vsub.s32 0, %v837
    %v839 = vrot.slane %v531, %v838
    %v840 = vlaneseq
    %v841 = vshrl.u32 %v840, 7
    %v842 = vsub.s32 0, %v841
    %v843 = vrot.slane %v533, %v842
    %v844 = vlaneseq
    %v845 = vshrl.u32 %v844, 7
    %v846 = vsub.s32 0, %v845
    %v847 = vrot.slane %v535, %v846
    %v848 = vlaneseq
    %v849 = vshrl.u32 %v848, 7
    %v850 = vsub.s32 0, %v849
    %v851 = vrot.slane %v537, %v850
    %v852 = vlaneseq
    %v853 = vshrl.u32 %v852, 7
    %v854 = vsub.s32 0, %v853
    %v855 = vrot.slane %v539, %v854
    %v856 = vlaneseq
    %v857 = vshrl.u32 %v856, 7
    %v858 = vsub.s32 0, %v857
    %v859 = vrot.slane %v541, %v858
    %v860 = vlaneseq
    %v861 = vshrl.u32 %v860, 7
    %v862 = vsub.s32 0, %v861
    %v863 = vrot.slane %v543, %v862
    %v864 = vsel %vm704, %v839, %v835
    %v865 = vsel %vm706, %v843, %v864
    %v866 = vsel %vm708, %v847, %v865
    %v867 = vsel %vm710, %v851, %v866
    %v868 = vsel %vm712, %v855, %v867
    %v869 = vsel %vm714, %v859, %v868
    %v870 = vsel %vm716, %v863, %v869
    %v871 = vlaneseq
    %v872 = vshrl.u32 %v871, 7
    %v873 = vsub.s32 0, %v872
    %v874 = vrot.slane %v577, %v873
    %v875 = vlaneseq
    %v876 = vshrl.u32 %v875, 7
    %v877 = vsub.s32 0, %v876
    %v878 = vrot.slane %v579, %v877
    %v879 = vlaneseq
    %v880 = vshrl.u32 %v879, 7
    %v881 = vsub.s32 0, %v880
    %v882 = vrot.slane %v581, %v881
    %v883 = vlaneseq
    %v884 = vshrl.u32 %v883, 7
    %v885 = vsub.s32 0, %v884
    %v886 = vrot.slane %v583, %v885
    %v887 = vlaneseq
    %v888 = vshrl.u32 %v887, 7
    %v889 = vsub.s32 0, %v888
    %v890 = vrot.slane %v585, %v889
    %v891 = vlaneseq
    %v892 = vshrl.u32 %v891, 7
    %v893 = vsub.s32 0, %v892
    %v894 = vrot.slane %v587, %v893
    %v895 = vlaneseq
    %v896 = vshrl.u32 %v895, 7
    %v897 = vsub.s32 0, %v896
    %v898 = vrot.slane %v589, %v897
    %v899 = vlaneseq
    %v900 = vshrl.u32 %v899, 7
    %v901 = vsub.s32 0, %v900
    %v902 = vrot.slane %v591, %v901
    %v903 = vsel %vm704, %v878, %v874
    %v904 = vsel %vm706, %v882, %v903
    %v905 = vsel %vm708, %v886, %v904
    %v906 = vsel %vm710, %v890, %v905
    %v907 = vsel %vm712, %v894, %v906
    %v908 = vsel %vm714, %v898, %v907
    %v909 = vsel %vm716, %v902, %v908
    %v910 = vsel %vm757, %v870, 0
    %v912 = vsel %vm757, %v909, 0
    %914 = vmatprep.subr.mxu0 0.0
    %915 = vmatpush1.xpose.msra.mxu0 %v912
    %916 = vmatprep.subr.mxu0 0.0
    %917 = vmatpush1.xpose.msra.mxu0 0.0
    %918 = vmatprep.subr.mxu0 0.0
    %919 = vmatpush1.xpose.msra.mxu0 0.0
    %920 = vmatprep.subr.mxu0 0.0
    %921 = vmatpush1.xpose.msra.mxu0 0.0
    %922 = vmatprep.subr.mxu0 0.0
    %923 = vmatpush1.xpose.msra.mxu0 0.0
    %924 = vmatprep.subr.mxu0 0.0
    %925 = vmatpush1.xpose.msra.mxu0 0.0
    %926 = vmatprep.subr.mxu0 0.0
    %927 = vmatpush1.xpose.msra.mxu0 0.0
    %928 = vmatprep.subr.mxu0 0.0
    %929 = vmatpush1.xpose.msra.mxu0 0.0
    %930 = vmatprep.subr.mxu0 0.0
    %931 = vmatpush1.xpose.msra.mxu0 0.0
    %932 = vmatprep.subr.mxu0 0.0
    %933 = vmatpush1.xpose.msra.mxu0 0.0
    %934 = vmatprep.subr.mxu0 0.0
    %935 = vmatpush1.xpose.msra.mxu0 0.0
    %936 = vmatprep.subr.mxu0 0.0
    %937 = vmatpush1.xpose.msra.mxu0 0.0
    %938 = vmatprep.subr.mxu0 0.0
    %939 = vmatpush1.xpose.msra.mxu0 0.0
    %940 = vmatprep.subr.mxu0 0.0
    %941 = vmatpush1.xpose.msra.mxu0 0.0
    %942 = vmatprep.subr.mxu0 0.0
    %943 = vmatpush1.xpose.msra.mxu0 0.0
    %944 = vmatprep.subr.mxu0 0.0
    %945 = vmatpush1.xpose.msra.mxu0 0.0
    %946 = vmatprep.subr.mxu0 0.0
    %947 = vmatpush1.xpose.msra.mxu0 0.0
    %948 = vmatprep.subr.mxu0 0.0
    %949 = vmatpush1.xpose.msra.mxu0 0.0
    %950 = vmatprep.subr.mxu0 0.0
    %951 = vmatpush1.xpose.msra.mxu0 0.0
    %952 = vmatprep.subr.mxu0 0.0
    %953 = vmatpush1.xpose.msra.mxu0 0.0
    %954 = vmatprep.subr.mxu0 0.0
    %955 = vmatpush1.xpose.msra.mxu0 0.0
    %956 = vmatprep.subr.mxu0 0.0
    %957 = vmatpush1.xpose.msra.mxu0 0.0
    %958 = vmatprep.subr.mxu0 0.0
    %959 = vmatpush1.xpose.msra.mxu0 0.0
    %960 = vmatprep.subr.mxu0 0.0
    %961 = vmatpush1.xpose.msra.mxu0 0.0
    %962 = vmatprep.subr.mxu0 0.0
    %963 = vmatpush1.xpose.msra.mxu0 0.0
    %964 = vmatprep.subr.mxu0 0.0
    %965 = vmatpush1.xpose.msra.mxu0 0.0
    %966 = vmatprep.subr.mxu0 0.0
    %967 = vmatpush1.xpose.msra.mxu0 0.0
    %968 = vmatprep.subr.mxu0 0.0
    %969 = vmatpush1.xpose.msra.mxu0 0.0
    %970 = vmatprep.subr.mxu0 0.0
    %971 = vmatpush1.xpose.msra.mxu0 0.0
    %972 = vmatprep.subr.mxu0 0.0
    %973 = vmatpush1.xpose.msra.mxu0 0.0
    %974 = vmatprep.subr.mxu0 0.0
    %975 = vmatpush1.xpose.msra.mxu0 0.0
    %976 = vmatprep.subr.mxu0 0.0
    %977 = vmatpush1.xpose.msra.mxu0 0.0
    %978 = vmatprep.mubr.f32.mxu0 0.0
    %979 = vmatmul.mubr.f32.gmra.mrb[0].mxu0 %v910
    %v980 = vpop.f32.mrb[0].mxu0
    %v981 = vadd.f32 0.0, %v980
    %v982 = vpop.f32.mrb[0].mxu0
    %983 = vdwg.mxu0
    %v984 = vlaneseq
    %v985 = vshrl.u32 %v984, 7
    %v986 = vsub.s32 0, %v985
    %v987 = vrot.slane %v545, %v986
    %v988 = vlaneseq
    %v989 = vshrl.u32 %v988, 7
    %v990 = vsub.s32 0, %v989
    %v991 = vrot.slane %v547, %v990
    %v992 = vlaneseq
    %v993 = vshrl.u32 %v992, 7
    %v994 = vsub.s32 0, %v993
    %v995 = vrot.slane %v549, %v994
    %v996 = vlaneseq
    %v997 = vshrl.u32 %v996, 7
    %v998 = vsub.s32 0, %v997
    %v999 = vrot.slane %v551, %v998
    %v1000 = vlaneseq
    %v1001 = vshrl.u32 %v1000, 7
    %v1002 = vsub.s32 0, %v1001
    %v1003 = vrot.slane %v553, %v1002
    %v1004 = vlaneseq
    %v1005 = vshrl.u32 %v1004, 7
    %v1006 = vsub.s32 0, %v1005
    %v1007 = vrot.slane %v555, %v1006
    %v1008 = vlaneseq
    %v1009 = vshrl.u32 %v1008, 7
    %v1010 = vsub.s32 0, %v1009
    %v1011 = vrot.slane %v557, %v1010
    %v1012 = vlaneseq
    %v1013 = vshrl.u32 %v1012, 7
    %v1014 = vsub.s32 0, %v1013
    %v1015 = vrot.slane %v559, %v1014
    %v1016 = vsel %vm704, %v991, %v987
    %v1017 = vsel %vm706, %v995, %v1016
    %v1018 = vsel %vm708, %v999, %v1017
    %v1019 = vsel %vm710, %v1003, %v1018
    %v1020 = vsel %vm712, %v1007, %v1019
    %v1021 = vsel %vm714, %v1011, %v1020
    %v1022 = vsel %vm716, %v1015, %v1021
    %v1023 = vlaneseq
    %v1024 = vshrl.u32 %v1023, 7
    %v1025 = vsub.s32 0, %v1024
    %v1026 = vrot.slane %v593, %v1025
    %v1027 = vlaneseq
    %v1028 = vshrl.u32 %v1027, 7
    %v1029 = vsub.s32 0, %v1028
    %v1030 = vrot.slane %v595, %v1029
    %v1031 = vlaneseq
    %v1032 = vshrl.u32 %v1031, 7
    %v1033 = vsub.s32 0, %v1032
    %v1034 = vrot.slane %v597, %v1033
    %v1035 = vlaneseq
    %v1036 = vshrl.u32 %v1035, 7
    %v1037 = vsub.s32 0, %v1036
    %v1038 = vrot.slane %v599, %v1037
    %v1039 = vlaneseq
    %v1040 = vshrl.u32 %v1039, 7
    %v1041 = vsub.s32 0, %v1040
    %v1042 = vrot.slane %v601, %v1041
    %v1043 = vlaneseq
    %v1044 = vshrl.u32 %v1043, 7
    %v1045 = vsub.s32 0, %v1044
    %v1046 = vrot.slane %v603, %v1045
    %v1047 = vlaneseq
    %v1048 = vshrl.u32 %v1047, 7
    %v1049 = vsub.s32 0, %v1048
    %v1050 = vrot.slane %v605, %v1049
    %v1051 = vlaneseq
    %v1052 = vshrl.u32 %v1051, 7
    %v1053 = vsub.s32 0, %v1052
    %v1054 = vrot.slane %v607, %v1053
    %v1055 = vsel %vm704, %v1030, %v1026
    %v1056 = vsel %vm706, %v1034, %v1055
    %v1057 = vsel %vm708, %v1038, %v1056
    %v1058 = vsel %vm710, %v1042, %v1057
    %v1059 = vsel %vm712, %v1046, %v1058
    %v1060 = vsel %vm714, %v1050, %v1059
    %v1061 = vsel %vm716, %v1054, %v1060
    %v1062 = vsel %vm757, %v1022, 0
    %v1064 = vsel %vm757, %v1061, 0
    %1066 = vmatprep.subr.mxu0 0.0
    %1067 = vmatpush1.xpose.msra.mxu0 %v1064
    %1068 = vmatprep.subr.mxu0 0.0
    %1069 = vmatpush1.xpose.msra.mxu0 0.0
    %1070 = vmatprep.subr.mxu0 0.0
    %1071 = vmatpush1.xpose.msra.mxu0 0.0
    %1072 = vmatprep.subr.mxu0 0.0
    %1073 = vmatpush1.xpose.msra.mxu0 0.0
    %1074 = vmatprep.subr.mxu0 0.0
    %1075 = vmatpush1.xpose.msra.mxu0 0.0
    %1076 = vmatprep.subr.mxu0 0.0
    %1077 = vmatpush1.xpose.msra.mxu0 0.0
    %1078 = vmatprep.subr.mxu0 0.0
    %1079 = vmatpush1.xpose.msra.mxu0 0.0
    %1080 = vmatprep.subr.mxu0 0.0
    %1081 = vmatpush1.xpose.msra.mxu0 0.0
    %1082 = vmatprep.subr.mxu0 0.0
    %1083 = vmatpush1.xpose.msra.mxu0 0.0
    %1084 = vmatprep.subr.mxu0 0.0
    %1085 = vmatpush1.xpose.msra.mxu0 0.0
    %1086 = vmatprep.subr.mxu0 0.0
    %1087 = vmatpush1.xpose.msra.mxu0 0.0
    %1088 = vmatprep.subr.mxu0 0.0
    %1089 = vmatpush1.xpose.msra.mxu0 0.0
    %1090 = vmatprep.subr.mxu0 0.0
    %1091 = vmatpush1.xpose.msra.mxu0 0.0
    %1092 = vmatprep.subr.mxu0 0.0
    %1093 = vmatpush1.xpose.msra.mxu0 0.0
    %1094 = vmatprep.subr.mxu0 0.0
    %1095 = vmatpush1.xpose.msra.mxu0 0.0
    %1096 = vmatprep.subr.mxu0 0.0
    %1097 = vmatpush1.xpose.msra.mxu0 0.0
    %1098 = vmatprep.subr.mxu0 0.0
    %1099 = vmatpush1.xpose.msra.mxu0 0.0
    %1100 = vmatprep.subr.mxu0 0.0
    %1101 = vmatpush1.xpose.msra.mxu0 0.0
    %1102 = vmatprep.subr.mxu0 0.0
    %1103 = vmatpush1.xpose.msra.mxu0 0.0
    %1104 = vmatprep.subr.mxu0 0.0
    %1105 = vmatpush1.xpose.msra.mxu0 0.0
    %1106 = vmatprep.subr.mxu0 0.0
    %1107 = vmatpush1.xpose.msra.mxu0 0.0
    %1108 = vmatprep.subr.mxu0 0.0
    %1109 = vmatpush1.xpose.msra.mxu0 0.0
    %1110 = vmatprep.subr.mxu0 0.0
    %1111 = vmatpush1.xpose.msra.mxu0 0.0
    %1112 = vmatprep.subr.mxu0 0.0
    %1113 = vmatpush1.xpose.msra.mxu0 0.0
    %1114 = vmatprep.subr.mxu0 0.0
    %1115 = vmatpush1.xpose.msra.mxu0 0.0
    %1116 = vmatprep.subr.mxu0 0.0
    %1117 = vmatpush1.xpose.msra.mxu0 0.0
    %1118 = vmatprep.subr.mxu0 0.0
    %1119 = vmatpush1.xpose.msra.mxu0 0.0
    %1120 = vmatprep.subr.mxu0 0.0
    %1121 = vmatpush1.xpose.msra.mxu0 0.0
    %1122 = vmatprep.subr.mxu0 0.0
    %1123 = vmatpush1.xpose.msra.mxu0 0.0
    %1124 = vmatprep.subr.mxu0 0.0
    %1125 = vmatpush1.xpose.msra.mxu0 0.0
    %1126 = vmatprep.subr.mxu0 0.0
    %1127 = vmatpush1.xpose.msra.mxu0 0.0
    %1128 = vmatprep.subr.mxu0 0.0
    %1129 = vmatpush1.xpose.msra.mxu0 0.0
    %1130 = vmatprep.mubr.f32.mxu0 0.0
    %1131 = vmatmul.mubr.f32.gmra.mrb[0].mxu0 %v1062
    %v1132 = vpop.f32.mrb[0].mxu0
    %v1133 = vadd.f32 0.0, %v1132
    %v1134 = vpop.f32.mrb[0].mxu0
    %1135 = vdwg.mxu0
    %v1136 = vlaneseq
    %v1137 = vshrl.u32 %v1136, 7
    %v1138 = vsub.s32 0, %v1137
    %v1139 = vrot.slane %v561, %v1138
    %v1140 = vlaneseq
    %v1141 = vshrl.u32 %v1140, 7
    %v1142 = vsub.s32 0, %v1141
    %v1143 = vrot.slane %v563, %v1142
    %v1144 = vlaneseq
    %v1145 = vshrl.u32 %v1144, 7
    %v1146 = vsub.s32 0, %v1145
    %v1147 = vrot.slane %v565, %v1146
    %v1148 = vlaneseq
    %v1149 = vshrl.u32 %v1148, 7
    %v1150 = vsub.s32 0, %v1149
    %v1151 = vrot.slane %v567, %v1150
    %v1152 = vlaneseq
    %v1153 = vshrl.u32 %v1152, 7
    %v1154 = vsub.s32 0, %v1153
    %v1155 = vrot.slane %v569, %v1154
    %v1156 = vlaneseq
    %v1157 = vshrl.u32 %v1156, 7
    %v1158 = vsub.s32 0, %v1157
    %v1159 = vrot.slane %v571, %v1158
    %v1160 = vlaneseq
    %v1161 = vshrl.u32 %v1160, 7
    %v1162 = vsub.s32 0, %v1161
    %v1163 = vrot.slane %v573, %v1162
    %v1164 = vlaneseq
    %v1165 = vshrl.u32 %v1164, 7
    %v1166 = vsub.s32 0, %v1165
    %v1167 = vrot.slane %v575, %v1166
    %v1168 = vsel %vm704, %v1143, %v1139
    %v1169 = vsel %vm706, %v1147, %v1168
    %v1170 = vsel %vm708, %v1151, %v1169
    %v1171 = vsel %vm710, %v1155, %v1170
    %v1172 = vsel %vm712, %v1159, %v1171
    %v1173 = vsel %vm714, %v1163, %v1172
    %v1174 = vsel %vm716, %v1167, %v1173
    %v1175 = vlaneseq
    %v1176 = vshrl.u32 %v1175, 7
    %v1177 = vsub.s32 0, %v1176
    %v1178 = vrot.slane %v609, %v1177
    %v1179 = vlaneseq
    %v1180 = vshrl.u32 %v1179, 7
    %v1181 = vsub.s32 0, %v1180
    %v1182 = vrot.slane %v611, %v1181
    %v1183 = vlaneseq
    %v1184 = vshrl.u32 %v1183, 7
    %v1185 = vsub.s32 0, %v1184
    %v1186 = vrot.slane %v613, %v1185
    %v1187 = vlaneseq
    %v1188 = vshrl.u32 %v1187, 7
    %v1189 = vsub.s32 0, %v1188
    %v1190 = vrot.slane %v615, %v1189
    %v1191 = vlaneseq
    %v1192 = vshrl.u32 %v1191, 7
    %v1193 = vsub.s32 0, %v1192
    %v1194 = vrot.slane %v617, %v1193
    %v1195 = vlaneseq
    %v1196 = vshrl.u32 %v1195, 7
    %v1197 = vsub.s32 0, %v1196
    %v1198 = vrot.slane %v619, %v1197
    %v1199 = vlaneseq
    %v1200 = vshrl.u32 %v1199, 7
    %v1201 = vsub.s32 0, %v1200
    %v1202 = vrot.slane %v621, %v1201
    %v1203 = vlaneseq
    %v1204 = vshrl.u32 %v1203, 7
    %v1205 = vsub.s32 0, %v1204
    %v1206 = vrot.slane %v623, %v1205
    %v1207 = vsel %vm704, %v1182, %v1178
    %v1208 = vsel %vm706, %v1186, %v1207
    %v1209 = vsel %vm708, %v1190, %v1208
    %v1210 = vsel %vm710, %v1194, %v1209
    %v1211 = vsel %vm712, %v1198, %v1210
    %v1212 = vsel %vm714, %v1202, %v1211
    %v1213 = vsel %vm716, %v1206, %v1212
    %v1214 = vsel %vm757, %v1174, 0
    %v1216 = vsel %vm757, %v1213, 0
    %1218 = vmatprep.subr.mxu0 0.0
    %1219 = vmatpush1.xpose.msra.mxu0 %v1216
    %1220 = vmatprep.subr.mxu0 0.0
    %1221 = vmatpush1.xpose.msra.mxu0 0.0
    %1222 = vmatprep.subr.mxu0 0.0
    %1223 = vmatpush1.xpose.msra.mxu0 0.0
    %1224 = vmatprep.subr.mxu0 0.0
    %1225 = vmatpush1.xpose.msra.mxu0 0.0
    %1226 = vmatprep.subr.mxu0 0.0
    %1227 = vmatpush1.xpose.msra.mxu0 0.0
    %1228 = vmatprep.subr.mxu0 0.0
    %1229 = vmatpush1.xpose.msra.mxu0 0.0
    %1230 = vmatprep.subr.mxu0 0.0
    %1231 = vmatpush1.xpose.msra.mxu0 0.0
    %1232 = vmatprep.subr.mxu0 0.0
    %1233 = vmatpush1.xpose.msra.mxu0 0.0
    %1234 = vmatprep.subr.mxu0 0.0
    %1235 = vmatpush1.xpose.msra.mxu0 0.0
    %1236 = vmatprep.subr.mxu0 0.0
    %1237 = vmatpush1.xpose.msra.mxu0 0.0
    %1238 = vmatprep.subr.mxu0 0.0
    %1239 = vmatpush1.xpose.msra.mxu0 0.0
    %1240 = vmatprep.subr.mxu0 0.0
    %1241 = vmatpush1.xpose.msra.mxu0 0.0
    %1242 = vmatprep.subr.mxu0 0.0
    %1243 = vmatpush1.xpose.msra.mxu0 0.0
    %1244 = vmatprep.subr.mxu0 0.0
    %1245 = vmatpush1.xpose.msra.mxu0 0.0
    %1246 = vmatprep.subr.mxu0 0.0
    %1247 = vmatpush1.xpose.msra.mxu0 0.0
    %1248 = vmatprep.subr.mxu0 0.0
    %1249 = vmatpush1.xpose.msra.mxu0 0.0
    %1250 = vmatprep.subr.mxu0 0.0
    %1251 = vmatpush1.xpose.msra.mxu0 0.0
    %1252 = vmatprep.subr.mxu0 0.0
    %1253 = vmatpush1.xpose.msra.mxu0 0.0
    %1254 = vmatprep.subr.mxu0 0.0
    %1255 = vmatpush1.xpose.msra.mxu0 0.0
    %1256 = vmatprep.subr.mxu0 0.0
    %1257 = vmatpush1.xpose.msra.mxu0 0.0
    %1258 = vmatprep.subr.mxu0 0.0
    %1259 = vmatpush1.xpose.msra.mxu0 0.0
    %1260 = vmatprep.subr.mxu0 0.0
    %1261 = vmatpush1.xpose.msra.mxu0 0.0
    %1262 = vmatprep.subr.mxu0 0.0
    %1263 = vmatpush1.xpose.msra.mxu0 0.0
    %1264 = vmatprep.subr.mxu0 0.0
    %1265 = vmatpush1.xpose.msra.mxu0 0.0
    %1266 = vmatprep.subr.mxu0 0.0
    %1267 = vmatpush1.xpose.msra.mxu0 0.0
    %1268 = vmatprep.subr.mxu0 0.0
    %1269 = vmatpush1.xpose.msra.mxu0 0.0
    %1270 = vmatprep.subr.mxu0 0.0
    %1271 = vmatpush1.xpose.msra.mxu0 0.0
    %1272 = vmatprep.subr.mxu0 0.0
    %1273 = vmatpush1.xpose.msra.mxu0 0.0
    %1274 = vmatprep.subr.mxu0 0.0
    %1275 = vmatpush1.xpose.msra.mxu0 0.0
    %1276 = vmatprep.subr.mxu0 0.0
    %1277 = vmatpush1.xpose.msra.mxu0 0.0
    %1278 = vmatprep.subr.mxu0 0.0
    %1279 = vmatpush1.xpose.msra.mxu0 0.0
    %1280 = vmatprep.subr.mxu0 0.0
    %1281 = vmatpush1.xpose.msra.mxu0 0.0
    %1282 = vmatprep.mubr.f32.mxu0 0.0
    %1283 = vmatmul.mubr.f32.gmra.mrb[0].mxu0 %v1214
    %v1284 = vpop.f32.mrb[0].mxu0
    %v1285 = vadd.f32 0.0, %v1284
    %v1286 = vpop.f32.mrb[0].mxu0
    %1287 = vdwg.mxu0
    %v1288 = vsel %vm757, %v829, -inf
    %1289 = vmax.xlane.f32.xlu0 %v1288
    %v1290 = vpop.xlane.xlu0 %1289
    %v1291 = vsel %vm757, %v981, -inf
    %1292 = vmax.xlane.f32.xlu0 %v1291
    %v1293 = vpop.xlane.xlu0 %1292
    %v1294 = vsel %vm757, %v1133, -inf
    %1295 = vmax.xlane.f32.xlu0 %v1294
    %v1296 = vpop.xlane.xlu0 %1295
    %v1297 = vsel %vm757, %v1285, -inf
    %1298 = vmax.xlane.f32.xlu0 %v1297
    %v1299 = vpop.xlane.xlu0 %1298
    %v1300 = vsub.f32 %v829, %v1290
    %v1301 = vsub.f32 %v981, %v1293
    %v1302 = vsub.f32 %v1133, %v1296
    %v1303 = vsub.f32 %v1285, %v1299
    %v1304 = vmul.f32 %v1300, 1.442695
    %v1305 = vpow.pop %v1304
    %v1306 = vmul.f32 %v1301, 1.442695
    %v1307 = vpow.pop %v1306
    %v1308 = vmul.f32 %v1302, 1.442695
    %v1309 = vpow.pop %v1308
    %v1310 = vmul.f32 %v1303, 1.442695
    %v1311 = vpow.pop %v1310
    %v1312 = vsel %vm757, %v1305, 0.0
    %1313 = vadd.xlane.f32.xlu0 %v1312
    %v1314 = vpop.xlane.xlu0 %1313
    %v1315 = vsel %vm757, %v1307, 0.0
    %1316 = vadd.xlane.f32.xlu0 %v1315
    %v1317 = vpop.xlane.xlu0 %1316
    %v1318 = vsel %vm757, %v1309, 0.0
    %1319 = vadd.xlane.f32.xlu0 %v1318
    %v1320 = vpop.xlane.xlu0 %1319
    %v1321 = vsel %vm757, %v1311, 0.0
    %1322 = vadd.xlane.f32.xlu0 %v1321
    %v1323 = vpop.xlane.xlu0 %1322
    %v1324 = vlaneseq
    %v1325 = vshrl.u32 %v1324, 7
    %v1326 = vsub.s32 0, %v1325
    %v1327 = vrot.slane %v496, %v1326
    %v1328 = vlaneseq
    %v1329 = vshrl.u32 %v1328, 7
    %v1330 = vsub.s32 0, %v1329
    %v1331 = vrot.slane %v504, %v1330
    %v1332 = vlaneseq
    %v1333 = vshrl.u32 %v1332, 7
    %v1334 = vsub.s32 0, %v1333
    %v1335 = vrot.slane %v503, %v1334
    %v1336 = vlaneseq
    %v1337 = vshrl.u32 %v1336, 7
    %v1338 = vsub.s32 0, %v1337
    %v1339 = vrot.slane %v505, %v1338
    %v1340 = vlaneseq
    %v1341 = vshrl.u32 %v1340, 7
    %v1342 = vsub.s32 0, %v1341
    %v1343 = vrot.slane %v513, %v1342
    %v1344 = vlaneseq
    %v1345 = vshrl.u32 %v1344, 7
    %v1346 = vsub.s32 0, %v1345
    %v1347 = vrot.slane %v521, %v1346
    %v1348 = vlaneseq
    %v1349 = vshrl.u32 %v1348, 7
    %v1350 = vsub.s32 0, %v1349
    %v1351 = vrot.slane %v520, %v1350
    %v1352 = vlaneseq
    %v1353 = vshrl.u32 %v1352, 7
    %v1354 = vsub.s32 0, %v1353
    %v1355 = vrot.slane %v522, %v1354
    %v1356 = vsel %vm704, %v1331, %v1327
    %v1357 = vsel %vm706, %v1335, %v1356
    %v1358 = vsel %vm708, %v1339, %v1357
    %v1359 = vsel %vm710, %v1343, %v1358
    %v1360 = vsel %vm712, %v1347, %v1359
    %v1361 = vsel %vm714, %v1351, %v1360
    %v1362 = vsel %vm716, %v1355, %v1361
    %v1365 = vsel %vm757, %v1305, 0
    %1367 = vmatprep.subr.mxu0 0.0
    %1368 = vmatpush1.msra.mxu0 %v1362
    %1369 = vmatprep.subr.mxu0 0.0
    %1370 = vmatpush1.msra.mxu0 0.0
    %1371 = vmatprep.subr.mxu0 0.0
    %1372 = vmatpush1.msra.mxu0 0.0
    %1373 = vmatprep.subr.mxu0 0.0
    %1374 = vmatpush1.msra.mxu0 0.0
    %1375 = vmatprep.subr.mxu0 0.0
    %1376 = vmatpush1.msra.mxu0 0.0
    %1377 = vmatprep.subr.mxu0 0.0
    %1378 = vmatpush1.msra.mxu0 0.0
    %1379 = vmatprep.subr.mxu0 0.0
    %1380 = vmatpush1.msra.mxu0 0.0
    %1381 = vmatprep.subr.mxu0 0.0
    %1382 = vmatpush1.msra.mxu0 0.0
    %1383 = vmatprep.subr.mxu0 0.0
    %1384 = vmatpush1.msra.mxu0 0.0
    %1385 = vmatprep.subr.mxu0 0.0
    %1386 = vmatpush1.msra.mxu0 0.0
    %1387 = vmatprep.subr.mxu0 0.0
    %1388 = vmatpush1.msra.mxu0 0.0
    %1389 = vmatprep.subr.mxu0 0.0
    %1390 = vmatpush1.msra.mxu0 0.0
    %1391 = vmatprep.subr.mxu0 0.0
    %1392 = vmatpush1.msra.mxu0 0.0
    %1393 = vmatprep.subr.mxu0 0.0
    %1394 = vmatpush1.msra.mxu0 0.0
    %1395 = vmatprep.subr.mxu0 0.0
    %1396 = vmatpush1.msra.mxu0 0.0
    %1397 = vmatprep.subr.mxu0 0.0
    %1398 = vmatpush1.msra.mxu0 0.0
    %1399 = vmatprep.subr.mxu0 0.0
    %1400 = vmatpush1.msra.mxu0 0.0
    %1401 = vmatprep.subr.mxu0 0.0
    %1402 = vmatpush1.msra.mxu0 0.0
    %1403 = vmatprep.subr.mxu0 0.0
    %1404 = vmatpush1.msra.mxu0 0.0
    %1405 = vmatprep.subr.mxu0 0.0
    %1406 = vmatpush1.msra.mxu0 0.0
    %1407 = vmatprep.subr.mxu0 0.0
    %1408 = vmatpush1.msra.mxu0 0.0
    %1409 = vmatprep.subr.mxu0 0.0
    %1410 = vmatpush1.msra.mxu0 0.0
    %1411 = vmatprep.subr.mxu0 0.0
    %1412 = vmatpush1.msra.mxu0 0.0
    %1413 = vmatprep.subr.mxu0 0.0
    %1414 = vmatpush1.msra.mxu0 0.0
    %1415 = vmatprep.subr.mxu0 0.0
    %1416 = vmatpush1.msra.mxu0 0.0
    %1417 = vmatprep.subr.mxu0 0.0
    %1418 = vmatpush1.msra.mxu0 0.0
    %1419 = vmatprep.subr.mxu0 0.0
    %1420 = vmatpush1.msra.mxu0 0.0
    %1421 = vmatprep.subr.mxu0 0.0
    %1422 = vmatpush1.msra.mxu0 0.0
    %1423 = vmatprep.subr.mxu0 0.0
    %1424 = vmatpush1.msra.mxu0 0.0
    %1425 = vmatprep.subr.mxu0 0.0
    %1426 = vmatpush1.msra.mxu0 0.0
    %1427 = vmatprep.subr.mxu0 0.0
    %1428 = vmatpush1.msra.mxu0 0.0
    %1429 = vmatprep.subr.mxu0 0.0
    %1430 = vmatpush1.msra.mxu0 0.0
    %1431 = vmatprep.mubr.f32.mxu0 0.0
    %1432 = vmatmul.mubr.f32.gmra.mrb[0].mxu0 %v1365
    %v1433 = vpop.f32.mrb[0].mxu0
    %v1434 = vadd.f32 0.0, %v1433
    %v1435 = vpop.f32.mrb[0].mxu0
    %1436 = vdwg.mxu0
    %v1437 = vlaneseq
    %v1438 = vshrl.u32 %v1437, 7
    %v1439 = vsub.s32 0, %v1438
    %v1440 = vrot.slane %v625, %v1439
    %v1441 = vlaneseq
    %v1442 = vshrl.u32 %v1441, 7
    %v1443 = vsub.s32 0, %v1442
    %v1444 = vrot.slane %v627, %v1443
    %v1445 = vlaneseq
    %v1446 = vshrl.u32 %v1445, 7
    %v1447 = vsub.s32 0, %v1446
    %v1448 = vrot.slane %v629, %v1447
    %v1449 = vlaneseq
    %v1450 = vshrl.u32 %v1449, 7
    %v1451 = vsub.s32 0, %v1450
    %v1452 = vrot.slane %v631, %v1451
    %v1453 = vlaneseq
    %v1454 = vshrl.u32 %v1453, 7
    %v1455 = vsub.s32 0, %v1454
    %v1456 = vrot.slane %v633, %v1455
    %v1457 = vlaneseq
    %v1458 = vshrl.u32 %v1457, 7
    %v1459 = vsub.s32 0, %v1458
    %v1460 = vrot.slane %v635, %v1459
    %v1461 = vlaneseq
    %v1462 = vshrl.u32 %v1461, 7
    %v1463 = vsub.s32 0, %v1462
    %v1464 = vrot.slane %v637, %v1463
    %v1465 = vlaneseq
    %v1466 = vshrl.u32 %v1465, 7
    %v1467 = vsub.s32 0, %v1466
    %v1468 = vrot.slane %v639, %v1467
    %v1469 = vsel %vm704, %v1444, %v1440
    %v1470 = vsel %vm706, %v1448, %v1469
    %v1471 = vsel %vm708, %v1452, %v1470
    %v1472 = vsel %vm710, %v1456, %v1471
    %v1473 = vsel %vm712, %v1460, %v1472
    %v1474 = vsel %vm714, %v1464, %v1473
    %v1475 = vsel %vm716, %v1468, %v1474
    %v1478 = vsel %vm757, %v1307, 0
    %1480 = vmatprep.subr.mxu0 0.0
    %1481 = vmatpush1.msra.mxu0 %v1475
    %1482 = vmatprep.subr.mxu0 0.0
    %1483 = vmatpush1.msra.mxu0 0.0
    %1484 = vmatprep.subr.mxu0 0.0
    %1485 = vmatpush1.msra.mxu0 0.0
    %1486 = vmatprep.subr.mxu0 0.0
    %1487 = vmatpush1.msra.mxu0 0.0
    %1488 = vmatprep.subr.mxu0 0.0
    %1489 = vmatpush1.msra.mxu0 0.0
    %1490 = vmatprep.subr.mxu0 0.0
    %1491 = vmatpush1.msra.mxu0 0.0
    %1492 = vmatprep.subr.mxu0 0.0
    %1493 = vmatpush1.msra.mxu0 0.0
    %1494 = vmatprep.subr.mxu0 0.0
    %1495 = vmatpush1.msra.mxu0 0.0
    %1496 = vmatprep.subr.mxu0 0.0
    %1497 = vmatpush1.msra.mxu0 0.0
    %1498 = vmatprep.subr.mxu0 0.0
    %1499 = vmatpush1.msra.mxu0 0.0
    %1500 = vmatprep.subr.mxu0 0.0
    %1501 = vmatpush1.msra.mxu0 0.0
    %1502 = vmatprep.subr.mxu0 0.0
    %1503 = vmatpush1.msra.mxu0 0.0
    %1504 = vmatprep.subr.mxu0 0.0
    %1505 = vmatpush1.msra.mxu0 0.0
    %1506 = vmatprep.subr.mxu0 0.0
    %1507 = vmatpush1.msra.mxu0 0.0
    %1508 = vmatprep.subr.mxu0 0.0
    %1509 = vmatpush1.msra.mxu0 0.0
    %1510 = vmatprep.subr.mxu0 0.0
    %1511 = vmatpush1.msra.mxu0 0.0
    %1512 = vmatprep.subr.mxu0 0.0
    %1513 = vmatpush1.msra.mxu0 0.0
    %1514 = vmatprep.subr.mxu0 0.0
    %1515 = vmatpush1.msra.mxu0 0.0
    %1516 = vmatprep.subr.mxu0 0.0
    %1517 = vmatpush1.msra.mxu0 0.0
    %1518 = vmatprep.subr.mxu0 0.0
    %1519 = vmatpush1.msra.mxu0 0.0
    %1520 = vmatprep.subr.mxu0 0.0
    %1521 = vmatpush1.msra.mxu0 0.0
    %1522 = vmatprep.subr.mxu0 0.0
    %1523 = vmatpush1.msra.mxu0 0.0
    %1524 = vmatprep.subr.mxu0 0.0
    %1525 = vmatpush1.msra.mxu0 0.0
    %1526 = vmatprep.subr.mxu0 0.0
    %1527 = vmatpush1.msra.mxu0 0.0
    %1528 = vmatprep.subr.mxu0 0.0
    %1529 = vmatpush1.msra.mxu0 0.0
    %1530 = vmatprep.subr.mxu0 0.0
    %1531 = vmatpush1.msra.mxu0 0.0
    %1532 = vmatprep.subr.mxu0 0.0
    %1533 = vmatpush1.msra.mxu0 0.0
    %1534 = vmatprep.subr.mxu0 0.0
    %1535 = vmatpush1.msra.mxu0 0.0
    %1536 = vmatprep.subr.mxu0 0.0
    %1537 = vmatpush1.msra.mxu0 0.0
    %1538 = vmatprep.subr.mxu0 0.0
    %1539 = vmatpush1.msra.mxu0 0.0
    %1540 = vmatprep.subr.mxu0 0.0
    %1541 = vmatpush1.msra.mxu0 0.0
    %1542 = vmatprep.subr.mxu0 0.0
    %1543 = vmatpush1.msra.mxu0 0.0
    %1544 = vmatprep.mubr.f32.mxu0 0.0
    %1545 = vmatmul.mubr.f32.gmra.mrb[0].mxu0 %v1478
    %v1546 = vpop.f32.mrb[0].mxu0
    %v1547 = vadd.f32 0.0, %v1546
    %v1548 = vpop.f32.mrb[0].mxu0
    %1549 = vdwg.mxu0
    %v1550 = vlaneseq
    %v1551 = vshrl.u32 %v1550, 7
    %v1552 = vsub.s32 0, %v1551
    %v1553 = vrot.slane %v641, %v1552
    %v1554 = vlaneseq
    %v1555 = vshrl.u32 %v1554, 7
    %v1556 = vsub.s32 0, %v1555
    %v1557 = vrot.slane %v643, %v1556
    %v1558 = vlaneseq
    %v1559 = vshrl.u32 %v1558, 7
    %v1560 = vsub.s32 0, %v1559
    %v1561 = vrot.slane %v645, %v1560
    %v1562 = vlaneseq
    %v1563 = vshrl.u32 %v1562, 7
    %v1564 = vsub.s32 0, %v1563
    %v1565 = vrot.slane %v647, %v1564
    %v1566 = vlaneseq
    %v1567 = vshrl.u32 %v1566, 7
    %v1568 = vsub.s32 0, %v1567
    %v1569 = vrot.slane %v649, %v1568
    %v1570 = vlaneseq
    %v1571 = vshrl.u32 %v1570, 7
    %v1572 = vsub.s32 0, %v1571
    %v1573 = vrot.slane %v651, %v1572
    %v1574 = vlaneseq
    %v1575 = vshrl.u32 %v1574, 7
    %v1576 = vsub.s32 0, %v1575
    %v1577 = vrot.slane %v653, %v1576
    %v1578 = vlaneseq
    %v1579 = vshrl.u32 %v1578, 7
    %v1580 = vsub.s32 0, %v1579
    %v1581 = vrot.slane %v655, %v1580
    %v1582 = vsel %vm704, %v1557, %v1553
    %v1583 = vsel %vm706, %v1561, %v1582
    %v1584 = vsel %vm708, %v1565, %v1583
    %v1585 = vsel %vm710, %v1569, %v1584
    %v1586 = vsel %vm712, %v1573, %v1585
    %v1587 = vsel %vm714, %v1577, %v1586
    %v1588 = vsel %vm716, %v1581, %v1587
    %v1591 = vsel %vm757, %v1309, 0
    %1593 = vmatprep.subr.mxu0 0.0
    %1594 = vmatpush1.msra.mxu0 %v1588
    %1595 = vmatprep.subr.mxu0 0.0
    %1596 = vmatpush1.msra.mxu0 0.0
    %1597 = vmatprep.subr.mxu0 0.0
    %1598 = vmatpush1.msra.mxu0 0.0
    %1599 = vmatprep.subr.mxu0 0.0
    %1600 = vmatpush1.msra.mxu0 0.0
    %1601 = vmatprep.subr.mxu0 0.0
    %1602 = vmatpush1.msra.mxu0 0.0
    %1603 = vmatprep.subr.mxu0 0.0
    %1604 = vmatpush1.msra.mxu0 0.0
    %1605 = vmatprep.subr.mxu0 0.0
    %1606 = vmatpush1.msra.mxu0 0.0
    %1607 = vmatprep.subr.mxu0 0.0
    %1608 = vmatpush1.msra.mxu0 0.0
    %1609 = vmatprep.subr.mxu0 0.0
    %1610 = vmatpush1.msra.mxu0 0.0
    %1611 = vmatprep.subr.mxu0 0.0
    %1612 = vmatpush1.msra.mxu0 0.0
    %1613 = vmatprep.subr.mxu0 0.0
    %1614 = vmatpush1.msra.mxu0 0.0
    %1615 = vmatprep.subr.mxu0 0.0
    %1616 = vmatpush1.msra.mxu0 0.0
    %1617 = vmatprep.subr.mxu0 0.0
    %1618 = vmatpush1.msra.mxu0 0.0
    %1619 = vmatprep.subr.mxu0 0.0
    %1620 = vmatpush1.msra.mxu0 0.0
    %1621 = vmatprep.subr.mxu0 0.0
    %1622 = vmatpush1.msra.mxu0 0.0
    %1623 = vmatprep.subr.mxu0 0.0
    %1624 = vmatpush1.msra.mxu0 0.0
    %1625 = vmatprep.subr.mxu0 0.0
    %1626 = vmatpush1.msra.mxu0 0.0
    %1627 = vmatprep.subr.mxu0 0.0
    %1628 = vmatpush1.msra.mxu0 0.0
    %1629 = vmatprep.subr.mxu0 0.0
    %1630 = vmatpush1.msra.mxu0 0.0
    %1631 = vmatprep.subr.mxu0 0.0
    %1632 = vmatpush1.msra.mxu0 0.0
    %1633 = vmatprep.subr.mxu0 0.0
    %1634 = vmatpush1.msra.mxu0 0.0
    %1635 = vmatprep.subr.mxu0 0.0
    %1636 = vmatpush1.msra.mxu0 0.0
    %1637 = vmatprep.subr.mxu0 0.0
    %1638 = vmatpush1.msra.mxu0 0.0
    %1639 = vmatprep.subr.mxu0 0.0
    %1640 = vmatpush1.msra.mxu0 0.0
    %1641 = vmatprep.subr.mxu0 0.0
    %1642 = vmatpush1.msra.mxu0 0.0
    %1643 = vmatprep.subr.mxu0 0.0
    %1644 = vmatpush1.msra.mxu0 0.0
    %1645 = vmatprep.subr.mxu0 0.0
    %1646 = vmatpush1.msra.mxu0 0.0
    %1647 = vmatprep.subr.mxu0 0.0
    %1648 = vmatpush1.msra.mxu0 0.0
    %1649 = vmatprep.subr.mxu0 0.0
    %1650 = vmatpush1.msra.mxu0 0.0
    %1651 = vmatprep.subr.mxu0 0.0
    %1652 = vmatpush1.msra.mxu0 0.0
    %1653 = vmatprep.subr.mxu0 0.0
    %1654 = vmatpush1.msra.mxu0 0.0
    %1655 = vmatprep.subr.mxu0 0.0
    %1656 = vmatpush1.msra.mxu0 0.0
    %1657 = vmatprep.mubr.f32.mxu0 0.0
    %1658 = vmatmul.mubr.f32.gmra.mrb[0].mxu0 %v1591
    %v1659 = vpop.f32.mrb[0].mxu0
    %v1660 = vadd.f32 0.0, %v1659
    %v1661 = vpop.f32.mrb[0].mxu0
    %1662 = vdwg.mxu0
    %v1663 = vlaneseq
    %v1664 = vshrl.u32 %v1663, 7
    %v1665 = vsub.s32 0, %v1664
    %v1666 = vrot.slane %v657, %v1665
    %v1667 = vlaneseq
    %v1668 = vshrl.u32 %v1667, 7
    %v1669 = vsub.s32 0, %v1668
    %v1670 = vrot.slane %v659, %v1669
    %v1671 = vlaneseq
    %v1672 = vshrl.u32 %v1671, 7
    %v1673 = vsub.s32 0, %v1672
    %v1674 = vrot.slane %v661, %v1673
    %v1675 = vlaneseq
    %v1676 = vshrl.u32 %v1675, 7
    %v1677 = vsub.s32 0, %v1676
    %v1678 = vrot.slane %v663, %v1677
    %v1679 = vlaneseq
    %v1680 = vshrl.u32 %v1679, 7
    %v1681 = vsub.s32 0, %v1680
    %v1682 = vrot.slane %v665, %v1681
    %v1683 = vlaneseq
    %v1684 = vshrl.u32 %v1683, 7
    %v1685 = vsub.s32 0, %v1684
    %v1686 = vrot.slane %v667, %v1685
    %v1687 = vlaneseq
    %v1688 = vshrl.u32 %v1687, 7
    %v1689 = vsub.s32 0, %v1688
    %v1690 = vrot.slane %v669, %v1689
    %v1691 = vlaneseq
    %v1692 = vshrl.u32 %v1691, 7
    %v1693 = vsub.s32 0, %v1692
    %v1694 = vrot.slane %v671, %v1693
    %v1695 = vsel %vm704, %v1670, %v1666
    %v1696 = vsel %vm706, %v1674, %v1695
    %v1697 = vsel %vm708, %v1678, %v1696
    %v1698 = vsel %vm710, %v1682, %v1697
    %v1699 = vsel %vm712, %v1686, %v1698
    %v1700 = vsel %vm714, %v1690, %v1699
    %v1701 = vsel %vm716, %v1694, %v1700
    %v1704 = vsel %vm757, %v1311, 0
    %1706 = vmatprep.subr.mxu0 0.0
    %1707 = vmatpush1.msra.mxu0 %v1701
    %1708 = vmatprep.subr.mxu0 0.0
    %1709 = vmatpush1.msra.mxu0 0.0
    %1710 = vmatprep.subr.mxu0 0.0
    %1711 = vmatpush1.msra.mxu0 0.0
    %1712 = vmatprep.subr.mxu0 0.0
    %1713 = vmatpush1.msra.mxu0 0.0
    %1714 = vmatprep.subr.mxu0 0.0
    %1715 = vmatpush1.msra.mxu0 0.0
    %1716 = vmatprep.subr.mxu0 0.0
    %1717 = vmatpush1.msra.mxu0 0.0
    %1718 = vmatprep.subr.mxu0 0.0
    %1719 = vmatpush1.msra.mxu0 0.0
    %1720 = vmatprep.subr.mxu0 0.0
    %1721 = vmatpush1.msra.mxu0 0.0
    %1722 = vmatprep.subr.mxu0 0.0
    %1723 = vmatpush1.msra.mxu0 0.0
    %1724 = vmatprep.subr.mxu0 0.0
    %1725 = vmatpush1.msra.mxu0 0.0
    %1726 = vmatprep.subr.mxu0 0.0
    %1727 = vmatpush1.msra.mxu0 0.0
    %1728 = vmatprep.subr.mxu0 0.0
    %1729 = vmatpush1.msra.mxu0 0.0
    %1730 = vmatprep.subr.mxu0 0.0
    %1731 = vmatpush1.msra.mxu0 0.0
    %1732 = vmatprep.subr.mxu0 0.0
    %1733 = vmatpush1.msra.mxu0 0.0
    %1734 = vmatprep.subr.mxu0 0.0
    %1735 = vmatpush1.msra.mxu0 0.0
    %1736 = vmatprep.subr.mxu0 0.0
    %1737 = vmatpush1.msra.mxu0 0.0
    %1738 = vmatprep.subr.mxu0 0.0
    %1739 = vmatpush1.msra.mxu0 0.0
    %1740 = vmatprep.subr.mxu0 0.0
    %1741 = vmatpush1.msra.mxu0 0.0
    %1742 = vmatprep.subr.mxu0 0.0
    %1743 = vmatpush1.msra.mxu0 0.0
    %1744 = vmatprep.subr.mxu0 0.0
    %1745 = vmatpush1.msra.mxu0 0.0
    %1746 = vmatprep.subr.mxu0 0.0
    %1747 = vmatpush1.msra.mxu0 0.0
    %1748 = vmatprep.subr.mxu0 0.0
    %1749 = vmatpush1.msra.mxu0 0.0
    %1750 = vmatprep.subr.mxu0 0.0
    %1751 = vmatpush1.msra.mxu0 0.0
    %1752 = vmatprep.subr.mxu0 0.0
    %1753 = vmatpush1.msra.mxu0 0.0
    %1754 = vmatprep.subr.mxu0 0.0
    %1755 = vmatpush1.msra.mxu0 0.0
    %1756 = vmatprep.subr.mxu0 0.0
    %1757 = vmatpush1.msra.mxu0 0.0
    %1758 = vmatprep.subr.mxu0 0.0
    %1759 = vmatpush1.msra.mxu0 0.0
    %1760 = vmatprep.subr.mxu0 0.0
    %1761 = vmatpush1.msra.mxu0 0.0
    %1762 = vmatprep.subr.mxu0 0.0
    %1763 = vmatpush1.msra.mxu0 0.0
    %1764 = vmatprep.subr.mxu0 0.0
    %1765 = vmatpush1.msra.mxu0 0.0
    %1766 = vmatprep.subr.mxu0 0.0
    %1767 = vmatpush1.msra.mxu0 0.0
    %1768 = vmatprep.subr.mxu0 0.0
    %1769 = vmatpush1.msra.mxu0 0.0
    %1770 = vmatprep.mubr.f32.mxu0 0.0
    %1771 = vmatmul.mubr.f32.gmra.mrb[0].mxu0 %v1704
    %v1772 = vpop.f32.mrb[0].mxu0
    %v1773 = vadd.f32 0.0, %v1772
    %v1774 = vpop.f32.mrb[0].mxu0
    %1775 = vdwg.mxu0
    %v1776 = vrcp.pop %v1314
    %v1777 = vmul.f32 %v1434, %v1776
    %v1778 = vrcp.pop %v1317
    %v1779 = vmul.f32 %v1547, %v1778
    %v1780 = vrcp.pop %v1320
    %v1781 = vmul.f32 %v1660, %v1780
    %v1782 = vrcp.pop %v1323
    %v1783 = vmul.f32 %v1773, %v1782
    %1785 = vrot.lane.b32.xlu0 %v1779, 8
    %v1786 = vpop.permute.xlu0 %1785
    %1789 = vrot.lane.b32.xlu0 %v1781, 16
    %v1790 = vpop.permute.xlu0 %1789
    %1793 = vrot.lane.b32.xlu0 %v1783, 24
    %v1794 = vpop.permute.xlu0 %1793
    %v1796 = vsel %vm757, %v1777, %v1786
    %vm1797 = vcmask 130048
    %v1798 = vsel %vm1797, %v1796, %v1790
    %vm1799 = vcmask 195584
    %v1800 = vsel %vm1799, %v1798, %v1794
    %v1802 = vlaneseq
    %v1803 = vshrl.u32 %v1802, 7
    %v1804 = vsub.s32 0, %v1803
    %v1805 = vrot.slane %v527, %v1804
    %v1808 = vsel %vm149, %v1800, 0
    %1810 = vmatprep.subr.mxu0 0.0
    %1811 = vmatpush1.msra.mxu0 %v523
    %1812 = vmatprep.subr.mxu0 0.0
    %1813 = vmatpush1.msra.mxu0 %v524
    %1814 = vmatprep.subr.mxu0 0.0
    %1815 = vmatpush1.msra.mxu0 %v525
    %1816 = vmatprep.subr.mxu0 0.0
    %1817 = vmatpush1.msra.mxu0 %v526
    %1818 = vmatprep.subr.mxu0 0.0
    %1819 = vmatpush1.msra.mxu0 0.0
    %1820 = vmatprep.subr.mxu0 0.0
    %1821 = vmatpush1.msra.mxu0 0.0
    %1822 = vmatprep.subr.mxu0 0.0
    %1823 = vmatpush1.msra.mxu0 0.0
    %1824 = vmatprep.subr.mxu0 0.0
    %1825 = vmatpush1.msra.mxu0 0.0
    %1826 = vmatprep.subr.mxu0 0.0
    %1827 = vmatpush1.msra.mxu0 0.0
    %1828 = vmatprep.subr.mxu0 0.0
    %1829 = vmatpush1.msra.mxu0 0.0
    %1830 = vmatprep.subr.mxu0 0.0
    %1831 = vmatpush1.msra.mxu0 0.0
    %1832 = vmatprep.subr.mxu0 0.0
    %1833 = vmatpush1.msra.mxu0 0.0
    %1834 = vmatprep.subr.mxu0 0.0
    %1835 = vmatpush1.msra.mxu0 0.0
    %1836 = vmatprep.subr.mxu0 0.0
    %1837 = vmatpush1.msra.mxu0 0.0
    %1838 = vmatprep.subr.mxu0 0.0
    %1839 = vmatpush1.msra.mxu0 0.0
    %1840 = vmatprep.subr.mxu0 0.0
    %1841 = vmatpush1.msra.mxu0 0.0
    %1842 = vmatprep.subr.mxu0 0.0
    %1843 = vmatpush1.msra.mxu0 0.0
    %1844 = vmatprep.subr.mxu0 0.0
    %1845 = vmatpush1.msra.mxu0 0.0
    %1846 = vmatprep.subr.mxu0 0.0
    %1847 = vmatpush1.msra.mxu0 0.0
    %1848 = vmatprep.subr.mxu0 0.0
    %1849 = vmatpush1.msra.mxu0 0.0
    %1850 = vmatprep.subr.mxu0 0.0
    %1851 = vmatpush1.msra.mxu0 0.0
    %1852 = vmatprep.subr.mxu0 0.0
    %1853 = vmatpush1.msra.mxu0 0.0
    %1854 = vmatprep.subr.mxu0 0.0
    %1855 = vmatpush1.msra.mxu0 0.0
    %1856 = vmatprep.subr.mxu0 0.0
    %1857 = vmatpush1.msra.mxu0 0.0
    %1858 = vmatprep.subr.mxu0 0.0
    %1859 = vmatpush1.msra.mxu0 0.0
    %1860 = vmatprep.subr.mxu0 0.0
    %1861 = vmatpush1.msra.mxu0 0.0
    %1862 = vmatprep.subr.mxu0 0.0
    %1863 = vmatpush1.msra.mxu0 0.0
    %1864 = vmatprep.subr.mxu0 0.0
    %1865 = vmatpush1.msra.mxu0 0.0
    %1866 = vmatprep.subr.mxu0 0.0
    %1867 = vmatpush1.msra.mxu0 0.0
    %1868 = vmatprep.subr.mxu0 0.0
    %1869 = vmatpush1.msra.mxu0 0.0
    %1870 = vmatprep.subr.mxu0 0.0
    %1871 = vmatpush1.msra.mxu0 0.0
    %1872 = vmatprep.subr.mxu0 0.0
    %1873 = vmatpush1.msra.mxu0 0.0
    %1874 = vmatprep.mubr.f32.mxu0 0.0
    %1875 = vmatmul.mubr.f32.gmra.mrb[0].mxu0 %v1808
    %v1876 = vpop.f32.mrb[0].mxu0
    %v1877 = vadd.f32 %v1805, %v1876
    %v1878 = vpop.f32.mrb[0].mxu0
    %1879 = vdwg.mxu0
    %v1881 = vcombine.high %v1877, %v1877
    %v1883 = vunpack.c.l.s4 1966171168
    %v1884 = vunpack.c.0.s8 %v1883
    %v1885 = vlaneseq
    %v1886 = vshrl.u32 %v1885, 7
    %v1887 = vsub.s32 %v1884, %v1886
    %v1888 = vrot.slane %v1877, %v1887
    %v1890 = vunpack.c.l.s4 1966171168
    %v1891 = vunpack.c.0.s8 %v1890
    %v1892 = vlaneseq
    %v1893 = vshrl.u32 %v1892, 7
    %v1894 = vsub.s32 %v1891, %v1893
    %v1895 = vrot.slane %v1881, %v1894
    %v1896 = vcombine.high %v1888, %v1888
    %v1897 = vcombine.high %v1895, %v1895
    %v1899 = vunpack.c.l.s4 1966171168
    %v1900 = vunpack.c.0.s8 %v1899
    %v1901 = vlaneseq
    %v1902 = vshrl.u32 %v1901, 7
    %v1903 = vsub.s32 %v1900, %v1902
    %v1904 = vrot.slane %v1888, %v1903
    %v1906 = vunpack.c.l.s4 1966171168
    %v1907 = vunpack.c.0.s8 %v1906
    %v1908 = vlaneseq
    %v1909 = vshrl.u32 %v1908, 7
    %v1910 = vsub.s32 %v1907, %v1909
    %v1911 = vrot.slane %v1895, %v1910
    %v1913 = vunpack.c.l.s4 1966171168
    %v1914 = vunpack.c.0.s8 %v1913
    %v1915 = vlaneseq
    %v1916 = vshrl.u32 %v1915, 7
    %v1917 = vsub.s32 %v1914, %v1916
    %v1918 = vrot.slane %v1896, %v1917
    %v1920 = vunpack.c.l.s4 1966171168
    %v1921 = vunpack.c.0.s8 %v1920
    %v1922 = vlaneseq
    %v1923 = vshrl.u32 %v1922, 7
    %v1924 = vsub.s32 %v1921, %v1923
    %v1925 = vrot.slane %v1897, %v1924
    %v1926 = vcombine.high %v1904, %v1904
    %v1927 = vcombine.high %v1911, %v1911
    %v1928 = vcombine.high %v1918, %v1918
    %v1929 = vcombine.high %v1925, %v1925
    %vm1938 = vcmask 253952
    %1939 = vst.msk [vmem:[#allocation14] sm:$0x1] %vm1938, %v1904
    %1940 = vst.msk [vmem:[#allocation14 + $0x2] sm:$0x1] %vm1938, %v1918
    %1941 = vst.msk [vmem:[#allocation14 + $0x4] sm:$0x1] %vm1938, %v1926
    %1942 = vst.msk [vmem:[#allocation14 + $0x6] sm:$0x1] %vm1938, %v1928
    %1943 = vst.msk [vmem:[#allocation14 + $0x8] sm:$0x1] %vm1938, %v1911
    %1944 = vst.msk [vmem:[#allocation14 + $0xa] sm:$0x1] %vm1938, %v1925
    %1945 = vst.msk [vmem:[#allocation14 + $0xc] sm:$0x1] %vm1938, %v1927
    %1946 = vst.msk [vmem:[#allocation14 + $0xe] sm:$0x1] %vm1938, %v1929
    %v1947 = vlaneseq
    %v1948 = vshrl.u32 %v1947, 7
    %v1949 = vsub.s32 1, %v1948
    %v1950 = vrot.slane %v424, %v1949
    %v1951 = vlaneseq
    %v1952 = vshrl.u32 %v1951, 7
    %v1953 = vsub.s32 1, %v1952
    %v1954 = vrot.slane %v432, %v1953
    %v1955 = vlaneseq
    %v1956 = vshrl.u32 %v1955, 7
    %v1957 = vsub.s32 1, %v1956
    %v1958 = vrot.slane %v431, %v1957
    %v1959 = vlaneseq
    %v1960 = vshrl.u32 %v1959, 7
    %v1961 = vsub.s32 1, %v1960
    %v1962 = vrot.slane %v433, %v1961
    %v1963 = vlaneseq
    %v1964 = vshrl.u32 %v1963, 7
    %v1965 = vsub.s32 1, %v1964
    %v1966 = vrot.slane %v441, %v1965
    %v1967 = vlaneseq
    %v1968 = vshrl.u32 %v1967, 7
    %v1969 = vsub.s32 1, %v1968
    %v1970 = vrot.slane %v449, %v1969
    %v1971 = vlaneseq
    %v1972 = vshrl.u32 %v1971, 7
    %v1973 = vsub.s32 1, %v1972
    %v1974 = vrot.slane %v448, %v1973
    %v1975 = vlaneseq
    %v1976 = vshrl.u32 %v1975, 7
    %v1977 = vsub.s32 1, %v1976
    %v1978 = vrot.slane %v450, %v1977
    %v1979 = vsel %vm704, %v1954, %v1950
    %v1980 = vsel %vm706, %v1958, %v1979
    %v1981 = vsel %vm708, %v1962, %v1980
    %v1982 = vsel %vm710, %v1966, %v1981
    %v1983 = vsel %vm712, %v1970, %v1982
    %v1984 = vsel %vm714, %v1974, %v1983
    %v1985 = vsel %vm716, %v1978, %v1984
    %v1986 = vlaneseq
    %v1987 = vshrl.u32 %v1986, 7
    %v1988 = vsub.s32 1, %v1987
    %v1989 = vrot.slane %v460, %v1988
    %v1990 = vlaneseq
    %v1991 = vshrl.u32 %v1990, 7
    %v1992 = vsub.s32 1, %v1991
    %v1993 = vrot.slane %v468, %v1992
    %v1994 = vlaneseq
    %v1995 = vshrl.u32 %v1994, 7
    %v1996 = vsub.s32 1, %v1995
    %v1997 = vrot.slane %v467, %v1996
    %v1998 = vlaneseq
    %v1999 = vshrl.u32 %v1998, 7
    %v2000 = vsub.s32 1, %v1999
    %v2001 = vrot.slane %v469, %v2000
    %v2002 = vlaneseq
    %v2003 = vshrl.u32 %v2002, 7
    %v2004 = vsub.s32 1, %v2003
    %v2005 = vrot.slane %v477, %v2004
    %v2006 = vlaneseq
    %v2007 = vshrl.u32 %v2006, 7
    %v2008 = vsub.s32 1, %v2007
    %v2009 = vrot.slane %v485, %v2008
    %v2010 = vlaneseq
    %v2011 = vshrl.u32 %v2010, 7
    %v2012 = vsub.s32 1, %v2011
    %v2013 = vrot.slane %v484, %v2012
    %v2014 = vlaneseq
    %v2015 = vshrl.u32 %v2014, 7
    %v2016 = vsub.s32 1, %v2015
    %v2017 = vrot.slane %v486, %v2016
    %v2018 = vsel %vm704, %v1993, %v1989
    %v2019 = vsel %vm706, %v1997, %v2018
    %v2020 = vsel %vm708, %v2001, %v2019
    %v2021 = vsel %vm710, %v2005, %v2020
    %v2022 = vsel %vm712, %v2009, %v2021
    %v2023 = vsel %vm714, %v2013, %v2022
    %v2024 = vsel %vm716, %v2017, %v2023
    %v2025 = vsel %vm757, %v1985, 0
    %v2027 = vsel %vm757, %v2024, 0
    %2029 = vmatprep.subr.mxu0 0.0
    %2030 = vmatpush1.xpose.msra.mxu0 %v2027
    %2031 = vmatprep.subr.mxu0 0.0
    %2032 = vmatpush1.xpose.msra.mxu0 0.0
    %2033 = vmatprep.subr.mxu0 0.0
    %2034 = vmatpush1.xpose.msra.mxu0 0.0
    %2035 = vmatprep.subr.mxu0 0.0
    %2036 = vmatpush1.xpose.msra.mxu0 0.0
    %2037 = vmatprep.subr.mxu0 0.0
    %2038 = vmatpush1.xpose.msra.mxu0 0.0
    %2039 = vmatprep.subr.mxu0 0.0
    %2040 = vmatpush1.xpose.msra.mxu0 0.0
    %2041 = vmatprep.subr.mxu0 0.0
    %2042 = vmatpush1.xpose.msra.mxu0 0.0
    %2043 = vmatprep.subr.mxu0 0.0
    %2044 = vmatpush1.xpose.msra.mxu0 0.0
    %2045 = vmatprep.subr.mxu0 0.0
    %2046 = vmatpush1.xpose.msra.mxu0 0.0
    %2047 = vmatprep.subr.mxu0 0.0
    %2048 = vmatpush1.xpose.msra.mxu0 0.0
    %2049 = vmatprep.subr.mxu0 0.0
    %2050 = vmatpush1.xpose.msra.mxu0 0.0
    %2051 = vmatprep.subr.mxu0 0.0
    %2052 = vmatpush1.xpose.msra.mxu0 0.0
    %2053 = vmatprep.subr.mxu0 0.0
    %2054 = vmatpush1.xpose.msra.mxu0 0.0
    %2055 = vmatprep.subr.mxu0 0.0
    %2056 = vmatpush1.xpose.msra.mxu0 0.0
    %2057 = vmatprep.subr.mxu0 0.0
    %2058 = vmatpush1.xpose.msra.mxu0 0.0
    %2059 = vmatprep.subr.mxu0 0.0
    %2060 = vmatpush1.xpose.msra.mxu0 0.0
    %2061 = vmatprep.subr.mxu0 0.0
    %2062 = vmatpush1.xpose.msra.mxu0 0.0
    %2063 = vmatprep.subr.mxu0 0.0
    %2064 = vmatpush1.xpose.msra.mxu0 0.0
    %2065 = vmatprep.subr.mxu0 0.0
    %2066 = vmatpush1.xpose.msra.mxu0 0.0
    %2067 = vmatprep.subr.mxu0 0.0
    %2068 = vmatpush1.xpose.msra.mxu0 0.0
    %2069 = vmatprep.subr.mxu0 0.0
    %2070 = vmatpush1.xpose.msra.mxu0 0.0
    %2071 = vmatprep.subr.mxu0 0.0
    %2072 = vmatpush1.xpose.msra.mxu0 0.0
    %2073 = vmatprep.subr.mxu0 0.0
    %2074 = vmatpush1.xpose.msra.mxu0 0.0
    %2075 = vmatprep.subr.mxu0 0.0
    %2076 = vmatpush1.xpose.msra.mxu0 0.0
    %2077 = vmatprep.subr.mxu0 0.0
    %2078 = vmatpush1.xpose.msra.mxu0 0.0
    %2079 = vmatprep.subr.mxu0 0.0
    %2080 = vmatpush1.xpose.msra.mxu0 0.0
    %2081 = vmatprep.subr.mxu0 0.0
    %2082 = vmatpush1.xpose.msra.mxu0 0.0
    %2083 = vmatprep.subr.mxu0 0.0
    %2084 = vmatpush1.xpose.msra.mxu0 0.0
    %2085 = vmatprep.subr.mxu0 0.0
    %2086 = vmatpush1.xpose.msra.mxu0 0.0
    %2087 = vmatprep.subr.mxu0 0.0
    %2088 = vmatpush1.xpose.msra.mxu0 0.0
    %2089 = vmatprep.subr.mxu0 0.0
    %2090 = vmatpush1.xpose.msra.mxu0 0.0
    %2091 = vmatprep.subr.mxu0 0.0
    %2092 = vmatpush1.xpose.msra.mxu0 0.0
    %2093 = vmatprep.mubr.f32.mxu0 0.0
    %2094 = vmatmul.mubr.f32.gmra.mrb[0].mxu0 %v2025
    %v2095 = vpop.f32.mrb[0].mxu0
    %v2096 = vadd.f32 0.0, %v2095
    %v2097 = vpop.f32.mrb[0].mxu0
    %2098 = vdwg.mxu0
    %v2099 = vlaneseq
    %v2100 = vshrl.u32 %v2099, 7
    %v2101 = vsub.s32 1, %v2100
    %v2102 = vrot.slane %v529, %v2101
    %v2103 = vlaneseq
    %v2104 = vshrl.u32 %v2103, 7
    %v2105 = vsub.s32 1, %v2104
    %v2106 = vrot.slane %v531, %v2105
    %v2107 = vlaneseq
    %v2108 = vshrl.u32 %v2107, 7
    %v2109 = vsub.s32 1, %v2108
    %v2110 = vrot.slane %v533, %v2109
    %v2111 = vlaneseq
    %v2112 = vshrl.u32 %v2111, 7
    %v2113 = vsub.s32 1, %v2112
    %v2114 = vrot.slane %v535, %v2113
    %v2115 = vlaneseq
    %v2116 = vshrl.u32 %v2115, 7
    %v2117 = vsub.s32 1, %v2116
    %v2118 = vrot.slane %v537, %v2117
    %v2119 = vlaneseq
    %v2120 = vshrl.u32 %v2119, 7
    %v2121 = vsub.s32 1, %v2120
    %v2122 = vrot.slane %v539, %v2121
    %v2123 = vlaneseq
    %v2124 = vshrl.u32 %v2123, 7
    %v2125 = vsub.s32 1, %v2124
    %v2126 = vrot.slane %v541, %v2125
    %v2127 = vlaneseq
    %v2128 = vshrl.u32 %v2127, 7
    %v2129 = vsub.s32 1, %v2128
    %v2130 = vrot.slane %v543, %v2129
    %v2131 = vsel %vm704, %v2106, %v2102
    %v2132 = vsel %vm706, %v2110, %v2131
    %v2133 = vsel %vm708, %v2114, %v2132
    %v2134 = vsel %vm710, %v2118, %v2133
    %v2135 = vsel %vm712, %v2122, %v2134
    %v2136 = vsel %vm714, %v2126, %v2135
    %v2137 = vsel %vm716, %v2130, %v2136
    %v2138 = vlaneseq
    %v2139 = vshrl.u32 %v2138, 7
    %v2140 = vsub.s32 1, %v2139
    %v2141 = vrot.slane %v577, %v2140
    %v2142 = vlaneseq
    %v2143 = vshrl.u32 %v2142, 7
    %v2144 = vsub.s32 1, %v2143
    %v2145 = vrot.slane %v579, %v2144
    %v2146 = vlaneseq
    %v2147 = vshrl.u32 %v2146, 7
    %v2148 = vsub.s32 1, %v2147
    %v2149 = vrot.slane %v581, %v2148
    %v2150 = vlaneseq
    %v2151 = vshrl.u32 %v2150, 7
    %v2152 = vsub.s32 1, %v2151
    %v2153 = vrot.slane %v583, %v2152
    %v2154 = vlaneseq
    %v2155 = vshrl.u32 %v2154, 7
    %v2156 = vsub.s32 1, %v2155
    %v2157 = vrot.slane %v585, %v2156
    %v2158 = vlaneseq
    %v2159 = vshrl.u32 %v2158, 7
    %v2160 = vsub.s32 1, %v2159
    %v2161 = vrot.slane %v587, %v2160
    %v2162 = vlaneseq
    %v2163 = vshrl.u32 %v2162, 7
    %v2164 = vsub.s32 1, %v2163
    %v2165 = vrot.slane %v589, %v2164
    %v2166 = vlaneseq
    %v2167 = vshrl.u32 %v2166, 7
    %v2168 = vsub.s32 1, %v2167
    %v2169 = vrot.slane %v591, %v2168
    %v2170 = vsel %vm704, %v2145, %v2141
    %v2171 = vsel %vm706, %v2149, %v2170
    %v2172 = vsel %vm708, %v2153, %v2171
    %v2173 = vsel %vm710, %v2157, %v2172
    %v2174 = vsel %vm712, %v2161, %v2173
    %v2175 = vsel %vm714, %v2165, %v2174
    %v2176 = vsel %vm716, %v2169, %v2175
    %v2177 = vsel %vm757, %v2137, 0
    %v2179 = vsel %vm757, %v2176, 0
    %2181 = vmatprep.subr.mxu0 0.0
    %2182 = vmatpush1.xpose.msra.mxu0 %v2179
    %2183 = vmatprep.subr.mxu0 0.0
    %2184 = vmatpush1.xpose.msra.mxu0 0.0
    %2185 = vmatprep.subr.mxu0 0.0
    %2186 = vmatpush1.xpose.msra.mxu0 0.0
    %2187 = vmatprep.subr.mxu0 0.0
    %2188 = vmatpush1.xpose.msra.mxu0 0.0
    %2189 = vmatprep.subr.mxu0 0.0
    %2190 = vmatpush1.xpose.msra.mxu0 0.0
    %2191 = vmatprep.subr.mxu0 0.0
    %2192 = vmatpush1.xpose.msra.mxu0 0.0
    %2193 = vmatprep.subr.mxu0 0.0
    %2194 = vmatpush1.xpose.msra.mxu0 0.0
    %2195 = vmatprep.subr.mxu0 0.0
    %2196 = vmatpush1.xpose.msra.mxu0 0.0
    %2197 = vmatprep.subr.mxu0 0.0
    %2198 = vmatpush1.xpose.msra.mxu0 0.0
    %2199 = vmatprep.subr.mxu0 0.0
    %2200 = vmatpush1.xpose.msra.mxu0 0.0
    %2201 = vmatprep.subr.mxu0 0.0
    %2202 = vmatpush1.xpose.msra.mxu0 0.0
    %2203 = vmatprep.subr.mxu0 0.0
    %2204 = vmatpush1.xpose.msra.mxu0 0.0
    %2205 = vmatprep.subr.mxu0 0.0
    %2206 = vmatpush1.xpose.msra.mxu0 0.0
    %2207 = vmatprep.subr.mxu0 0.0
    %2208 = vmatpush1.xpose.msra.mxu0 0.0
    %2209 = vmatprep.subr.mxu0 0.0
    %2210 = vmatpush1.xpose.msra.mxu0 0.0
    %2211 = vmatprep.subr.mxu0 0.0
    %2212 = vmatpush1.xpose.msra.mxu0 0.0
    %2213 = vmatprep.subr.mxu0 0.0
    %2214 = vmatpush1.xpose.msra.mxu0 0.0
    %2215 = vmatprep.subr.mxu0 0.0
    %2216 = vmatpush1.xpose.msra.mxu0 0.0
    %2217 = vmatprep.subr.mxu0 0.0
    %2218 = vmatpush1.xpose.msra.mxu0 0.0
    %2219 = vmatprep.subr.mxu0 0.0
    %2220 = vmatpush1.xpose.msra.mxu0 0.0
    %2221 = vmatprep.subr.mxu0 0.0
    %2222 = vmatpush1.xpose.msra.mxu0 0.0
    %2223 = vmatprep.subr.mxu0 0.0
    %2224 = vmatpush1.xpose.msra.mxu0 0.0
    %2225 = vmatprep.subr.mxu0 0.0
    %2226 = vmatpush1.xpose.msra.mxu0 0.0
    %2227 = vmatprep.subr.mxu0 0.0
    %2228 = vmatpush1.xpose.msra.mxu0 0.0
    %2229 = vmatprep.subr.mxu0 0.0
    %2230 = vmatpush1.xpose.msra.mxu0 0.0
    %2231 = vmatprep.subr.mxu0 0.0
    %2232 = vmatpush1.xpose.msra.mxu0 0.0
    %2233 = vmatprep.subr.mxu0 0.0
    %2234 = vmatpush1.xpose.msra.mxu0 0.0
    %2235 = vmatprep.subr.mxu0 0.0
    %2236 = vmatpush1.xpose.msra.mxu0 0.0
    %2237 = vmatprep.subr.mxu0 0.0
    %2238 = vmatpush1.xpose.msra.mxu0 0.0
    %2239 = vmatprep.subr.mxu0 0.0
    %2240 = vmatpush1.xpose.msra.mxu0 0.0
    %2241 = vmatprep.subr.mxu0 0.0
    %2242 = vmatpush1.xpose.msra.mxu0 0.0
    %2243 = vmatprep.subr.mxu0 0.0
    %2244 = vmatpush1.xpose.msra.mxu0 0.0
    %2245 = vmatprep.mubr.f32.mxu0 0.0
    %2246 = vmatmul.mubr.f32.gmra.mrb[0].mxu0 %v2177
    %v2247 = vpop.f32.mrb[0].mxu0
    %v2248 = vadd.f32 0.0, %v2247
    %v2249 = vpop.f32.mrb[0].mxu0
    %2250 = vdwg.mxu0
    %v2251 = vlaneseq
    %v2252 = vshrl.u32 %v2251, 7
    %v2253 = vsub.s32 1, %v2252
    %v2254 = vrot.slane %v545, %v2253
    %v2255 = vlaneseq
    %v2256 = vshrl.u32 %v2255, 7
    %v2257 = vsub.s32 1, %v2256
    %v2258 = vrot.slane %v547, %v2257
    %v2259 = vlaneseq
    %v2260 = vshrl.u32 %v2259, 7
    %v2261 = vsub.s32 1, %v2260
    %v2262 = vrot.slane %v549, %v2261
    %v2263 = vlaneseq
    %v2264 = vshrl.u32 %v2263, 7
    %v2265 = vsub.s32 1, %v2264
    %v2266 = vrot.slane %v551, %v2265
    %v2267 = vlaneseq
    %v2268 = vshrl.u32 %v2267, 7
    %v2269 = vsub.s32 1, %v2268
    %v2270 = vrot.slane %v553, %v2269
    %v2271 = vlaneseq
    %v2272 = vshrl.u32 %v2271, 7
    %v2273 = vsub.s32 1, %v2272
    %v2274 = vrot.slane %v555, %v2273
    %v2275 = vlaneseq
    %v2276 = vshrl.u32 %v2275, 7
    %v2277 = vsub.s32 1, %v2276
    %v2278 = vrot.slane %v557, %v2277
    %v2279 = vlaneseq
    %v2280 = vshrl.u32 %v2279, 7
    %v2281 = vsub.s32 1, %v2280
    %v2282 = vrot.slane %v559, %v2281
    %v2283 = vsel %vm704, %v2258, %v2254
    %v2284 = vsel %vm706, %v2262, %v2283
    %v2285 = vsel %vm708, %v2266, %v2284
    %v2286 = vsel %vm710, %v2270, %v2285
    %v2287 = vsel %vm712, %v2274, %v2286
    %v2288 = vsel %vm714, %v2278, %v2287
    %v2289 = vsel %vm716, %v2282, %v2288
    %v2290 = vlaneseq
    %v2291 = vshrl.u32 %v2290, 7
    %v2292 = vsub.s32 1, %v2291
    %v2293 = vrot.slane %v593, %v2292
    %v2294 = vlaneseq
    %v2295 = vshrl.u32 %v2294, 7
    %v2296 = vsub.s32 1, %v2295
    %v2297 = vrot.slane %v595, %v2296
    %v2298 = vlaneseq
    %v2299 = vshrl.u32 %v2298, 7
    %v2300 = vsub.s32 1, %v2299
    %v2301 = vrot.slane %v597, %v2300
    %v2302 = vlaneseq
    %v2303 = vshrl.u32 %v2302, 7
    %v2304 = vsub.s32 1, %v2303
    %v2305 = vrot.slane %v599, %v2304
    %v2306 = vlaneseq
    %v2307 = vshrl.u32 %v2306, 7
    %v2308 = vsub.s32 1, %v2307
    %v2309 = vrot.slane %v601, %v2308
    %v2310 = vlaneseq
    %v2311 = vshrl.u32 %v2310, 7
    %v2312 = vsub.s32 1, %v2311
    %v2313 = vrot.slane %v603, %v2312
    %v2314 = vlaneseq
    %v2315 = vshrl.u32 %v2314, 7
    %v2316 = vsub.s32 1, %v2315
    %v2317 = vrot.slane %v605, %v2316
    %v2318 = vlaneseq
    %v2319 = vshrl.u32 %v2318, 7
    %v2320 = vsub.s32 1, %v2319
    %v2321 = vrot.slane %v607, %v2320
    %v2322 = vsel %vm704, %v2297, %v2293
    %v2323 = vsel %vm706, %v2301, %v2322
    %v2324 = vsel %vm708, %v2305, %v2323
    %v2325 = vsel %vm710, %v2309, %v2324
    %v2326 = vsel %vm712, %v2313, %v2325
    %v2327 = vsel %vm714, %v2317, %v2326
    %v2328 = vsel %vm716, %v2321, %v2327
    %v2329 = vsel %vm757, %v2289, 0
    %v2331 = vsel %vm757, %v2328, 0
    %2333 = vmatprep.subr.mxu0 0.0
    %2334 = vmatpush1.xpose.msra.mxu0 %v2331
    %2335 = vmatprep.subr.mxu0 0.0
    %2336 = vmatpush1.xpose.msra.mxu0 0.0
    %2337 = vmatprep.subr.mxu0 0.0
    %2338 = vmatpush1.xpose.msra.mxu0 0.0
    %2339 = vmatprep.subr.mxu0 0.0
    %2340 = vmatpush1.xpose.msra.mxu0 0.0
    %2341 = vmatprep.subr.mxu0 0.0
    %2342 = vmatpush1.xpose.msra.mxu0 0.0
    %2343 = vmatprep.subr.mxu0 0.0
    %2344 = vmatpush1.xpose.msra.mxu0 0.0
    %2345 = vmatprep.subr.mxu0 0.0
    %2346 = vmatpush1.xpose.msra.mxu0 0.0
    %2347 = vmatprep.subr.mxu0 0.0
    %2348 = vmatpush1.xpose.msra.mxu0 0.0
    %2349 = vmatprep.subr.mxu0 0.0
    %2350 = vmatpush1.xpose.msra.mxu0 0.0
    %2351 = vmatprep.subr.mxu0 0.0
    %2352 = vmatpush1.xpose.msra.mxu0 0.0
    %2353 = vmatprep.subr.mxu0 0.0
    %2354 = vmatpush1.xpose.msra.mxu0 0.0
    %2355 = vmatprep.subr.mxu0 0.0
    %2356 = vmatpush1.xpose.msra.mxu0 0.0
    %2357 = vmatprep.subr.mxu0 0.0
    %2358 = vmatpush1.xpose.msra.mxu0 0.0
    %2359 = vmatprep.subr.mxu0 0.0
    %2360 = vmatpush1.xpose.msra.mxu0 0.0
    %2361 = vmatprep.subr.mxu0 0.0
    %2362 = vmatpush1.xpose.msra.mxu0 0.0
    %2363 = vmatprep.subr.mxu0 0.0
    %2364 = vmatpush1.xpose.msra.mxu0 0.0
    %2365 = vmatprep.subr.mxu0 0.0
    %2366 = vmatpush1.xpose.msra.mxu0 0.0
    %2367 = vmatprep.subr.mxu0 0.0
    %2368 = vmatpush1.xpose.msra.mxu0 0.0
    %2369 = vmatprep.subr.mxu0 0.0
    %2370 = vmatpush1.xpose.msra.mxu0 0.0
    %2371 = vmatprep.subr.mxu0 0.0
    %2372 = vmatpush1.xpose.msra.mxu0 0.0
    %2373 = vmatprep.subr.mxu0 0.0
    %2374 = vmatpush1.xpose.msra.mxu0 0.0
    %2375 = vmatprep.subr.mxu0 0.0
    %2376 = vmatpush1.xpose.msra.mxu0 0.0
    %2377 = vmatprep.subr.mxu0 0.0
    %2378 = vmatpush1.xpose.msra.mxu0 0.0
    %2379 = vmatprep.subr.mxu0 0.0
    %2380 = vmatpush1.xpose.msra.mxu0 0.0
    %2381 = vmatprep.subr.mxu0 0.0
    %2382 = vmatpush1.xpose.msra.mxu0 0.0
    %2383 = vmatprep.subr.mxu0 0.0
    %2384 = vmatpush1.xpose.msra.mxu0 0.0
    %2385 = vmatprep.subr.mxu0 0.0
    %2386 = vmatpush1.xpose.msra.mxu0 0.0
    %2387 = vmatprep.subr.mxu0 0.0
    %2388 = vmatpush1.xpose.msra.mxu0 0.0
    %2389 = vmatprep.subr.mxu0 0.0
    %2390 = vmatpush1.xpose.msra.mxu0 0.0
    %2391 = vmatprep.subr.mxu0 0.0
    %2392 = vmatpush1.xpose.msra.mxu0 0.0
    %2393 = vmatprep.subr.mxu0 0.0
    %2394 = vmatpush1.xpose.msra.mxu0 0.0
    %2395 = vmatprep.subr.mxu0 0.0
    %2396 = vmatpush1.xpose.msra.mxu0 0.0
    %2397 = vmatprep.mubr.f32.mxu0 0.0
    %2398 = vmatmul.mubr.f32.gmra.mrb[0].mxu0 %v2329
    %v2399 = vpop.f32.mrb[0].mxu0
    %v2400 = vadd.f32 0.0, %v2399
    %v2401 = vpop.f32.mrb[0].mxu0
    %2402 = vdwg.mxu0
    %v2403 = vlaneseq
    %v2404 = vshrl.u32 %v2403, 7
    %v2405 = vsub.s32 1, %v2404
    %v2406 = vrot.slane %v561, %v2405
    %v2407 = vlaneseq
    %v2408 = vshrl.u32 %v2407, 7
    %v2409 = vsub.s32 1, %v2408
    %v2410 = vrot.slane %v563, %v2409
    %v2411 = vlaneseq
    %v2412 = vshrl.u32 %v2411, 7
    %v2413 = vsub.s32 1, %v2412
    %v2414 = vrot.slane %v565, %v2413
    %v2415 = vlaneseq
    %v2416 = vshrl.u32 %v2415, 7
    %v2417 = vsub.s32 1, %v2416
    %v2418 = vrot.slane %v567, %v2417
    %v2419 = vlaneseq
    %v2420 = vshrl.u32 %v2419, 7
    %v2421 = vsub.s32 1, %v2420
    %v2422 = vrot.slane %v569, %v2421
    %v2423 = vlaneseq
    %v2424 = vshrl.u32 %v2423, 7
    %v2425 = vsub.s32 1, %v2424
    %v2426 = vrot.slane %v571, %v2425
    %v2427 = vlaneseq
    %v2428 = vshrl.u32 %v2427, 7
    %v2429 = vsub.s32 1, %v2428
    %v2430 = vrot.slane %v573, %v2429
    %v2431 = vlaneseq
    %v2432 = vshrl.u32 %v2431, 7
    %v2433 = vsub.s32 1, %v2432
    %v2434 = vrot.slane %v575, %v2433
    %v2435 = vsel %vm704, %v2410, %v2406
    %v2436 = vsel %vm706, %v2414, %v2435
    %v2437 = vsel %vm708, %v2418, %v2436
    %v2438 = vsel %vm710, %v2422, %v2437
    %v2439 = vsel %vm712, %v2426, %v2438
    %v2440 = vsel %vm714, %v2430, %v2439
    %v2441 = vsel %vm716, %v2434, %v2440
    %v2442 = vlaneseq
    %v2443 = vshrl.u32 %v2442, 7
    %v2444 = vsub.s32 1, %v2443
    %v2445 = vrot.slane %v609, %v2444
    %v2446 = vlaneseq
    %v2447 = vshrl.u32 %v2446, 7
    %v2448 = vsub.s32 1, %v2447
    %v2449 = vrot.slane %v611, %v2448
    %v2450 = vlaneseq
    %v2451 = vshrl.u32 %v2450, 7
    %v2452 = vsub.s32 1, %v2451
    %v2453 = vrot.slane %v613, %v2452
    %v2454 = vlaneseq
    %v2455 = vshrl.u32 %v2454, 7
    %v2456 = vsub.s32 1, %v2455
    %v2457 = vrot.slane %v615, %v2456
    %v2458 = vlaneseq
    %v2459 = vshrl.u32 %v2458, 7
    %v2460 = vsub.s32 1, %v2459
    %v2461 = vrot.slane %v617, %v2460
    %v2462 = vlaneseq
    %v2463 = vshrl.u32 %v2462, 7
    %v2464 = vsub.s32 1, %v2463
    %v2465 = vrot.slane %v619, %v2464
    %v2466 = vlaneseq
    %v2467 = vshrl.u32 %v2466, 7
    %v2468 = vsub.s32 1, %v2467
    %v2469 = vrot.slane %v621, %v2468
    %v2470 = vlaneseq
    %v2471 = vshrl.u32 %v2470, 7
    %v2472 = vsub.s32 1, %v2471
    %v2473 = vrot.slane %v623, %v2472
    %v2474 = vsel %vm704, %v2449, %v2445
    %v2475 = vsel %vm706, %v2453, %v2474
    %v2476 = vsel %vm708, %v2457, %v2475
    %v2477 = vsel %vm710, %v2461, %v2476
    %v2478 = vsel %vm712, %v2465, %v2477
    %v2479 = vsel %vm714, %v2469, %v2478
    %v2480 = vsel %vm716, %v2473, %v2479
    %v2481 = vsel %vm757, %v2441, 0
    %v2483 = vsel %vm757, %v2480, 0
    %2485 = vmatprep.subr.mxu0 0.0
    %2486 = vmatpush1.xpose.msra.mxu0 %v2483
    %2487 = vmatprep.subr.mxu0 0.0
    %2488 = vmatpush1.xpose.msra.mxu0 0.0
    %2489 = vmatprep.subr.mxu0 0.0
    %2490 = vmatpush1.xpose.msra.mxu0 0.0
    %2491 = vmatprep.subr.mxu0 0.0
    %2492 = vmatpush1.xpose.msra.mxu0 0.0
    %2493 = vmatprep.subr.mxu0 0.0
    %2494 = vmatpush1.xpose.msra.mxu0 0.0
    %2495 = vmatprep.subr.mxu0 0.0
    %2496 = vmatpush1.xpose.msra.mxu0 0.0
    %2497 = vmatprep.subr.mxu0 0.0
    %2498 = vmatpush1.xpose.msra.mxu0 0.0
    %2499 = vmatprep.subr.mxu0 0.0
    %2500 = vmatpush1.xpose.msra.mxu0 0.0
    %2501 = vmatprep.subr.mxu0 0.0
    %2502 = vmatpush1.xpose.msra.mxu0 0.0
    %2503 = vmatprep.subr.mxu0 0.0
    %2504 = vmatpush1.xpose.msra.mxu0 0.0
    %2505 = vmatprep.subr.mxu0 0.0
    %2506 = vmatpush1.xpose.msra.mxu0 0.0
    %2507 = vmatprep.subr.mxu0 0.0
    %2508 = vmatpush1.xpose.msra.mxu0 0.0
    %2509 = vmatprep.subr.mxu0 0.0
    %2510 = vmatpush1.xpose.msra.mxu0 0.0
    %2511 = vmatprep.subr.mxu0 0.0
    %2512 = vmatpush1.xpose.msra.mxu0 0.0
    %2513 = vmatprep.subr.mxu0 0.0
    %2514 = vmatpush1.xpose.msra.mxu0 0.0
    %2515 = vmatprep.subr.mxu0 0.0
    %2516 = vmatpush1.xpose.msra.mxu0 0.0
    %2517 = vmatprep.subr.mxu0 0.0
    %2518 = vmatpush1.xpose.msra.mxu0 0.0
    %2519 = vmatprep.subr.mxu0 0.0
    %2520 = vmatpush1.xpose.msra.mxu0 0.0
    %2521 = vmatprep.subr.mxu0 0.0
    %2522 = vmatpush1.xpose.msra.mxu0 0.0
    %2523 = vmatprep.subr.mxu0 0.0
    %2524 = vmatpush1.xpose.msra.mxu0 0.0
    %2525 = vmatprep.subr.mxu0 0.0
    %2526 = vmatpush1.xpose.msra.mxu0 0.0
    %2527 = vmatprep.subr.mxu0 0.0
    %2528 = vmatpush1.xpose.msra.mxu0 0.0
    %2529 = vmatprep.subr.mxu0 0.0
    %2530 = vmatpush1.xpose.msra.mxu0 0.0
    %2531 = vmatprep.subr.mxu0 0.0
    %2532 = vmatpush1.xpose.msra.mxu0 0.0
    %2533 = vmatprep.subr.mxu0 0.0
    %2534 = vmatpush1.xpose.msra.mxu0 0.0
    %2535 = vmatprep.subr.mxu0 0.0
    %2536 = vmatpush1.xpose.msra.mxu0 0.0
    %2537 = vmatprep.subr.mxu0 0.0
    %2538 = vmatpush1.xpose.msra.mxu0 0.0
    %2539 = vmatprep.subr.mxu0 0.0
    %2540 = vmatpush1.xpose.msra.mxu0 0.0
    %2541 = vmatprep.subr.mxu0 0.0
    %2542 = vmatpush1.xpose.msra.mxu0 0.0
    %2543 = vmatprep.subr.mxu0 0.0
    %2544 = vmatpush1.xpose.msra.mxu0 0.0
    %2545 = vmatprep.subr.mxu0 0.0
    %2546 = vmatpush1.xpose.msra.mxu0 0.0
    %2547 = vmatprep.subr.mxu0 0.0
    %2548 = vmatpush1.xpose.msra.mxu0 0.0
    %2549 = vmatprep.mubr.f32.mxu0 0.0
    %2550 = vmatmul.mubr.f32.gmra.mrb[0].mxu0 %v2481
    %v2551 = vpop.f32.mrb[0].mxu0
    %v2552 = vadd.f32 0.0, %v2551
    %v2553 = vpop.f32.mrb[0].mxu0
    %2554 = vdwg.mxu0
    %v2555 = vsel %vm757, %v2096, -inf
    %2556 = vmax.xlane.f32.xlu0 %v2555
    %v2557 = vpop.xlane.xlu0 %2556
    %v2558 = vsel %vm757, %v2248, -inf
    %2559 = vmax.xlane.f32.xlu0 %v2558
    %v2560 = vpop.xlane.xlu0 %2559
    %v2561 = vsel %vm757, %v2400, -inf
    %2562 = vmax.xlane.f32.xlu0 %v2561
    %v2563 = vpop.xlane.xlu0 %2562
    %v2564 = vsel %vm757, %v2552, -inf
    %2565 = vmax.xlane.f32.xlu0 %v2564
    %v2566 = vpop.xlane.xlu0 %2565
    %v2567 = vsub.f32 %v2096, %v2557
    %v2568 = vsub.f32 %v2248, %v2560
    %v2569 = vsub.f32 %v2400, %v2563
    %v2570 = vsub.f32 %v2552, %v2566
    %v2571 = vmul.f32 %v2567, 1.442695
    %v2572 = vpow.pop %v2571
    %v2573 = vmul.f32 %v2568, 1.442695
    %v2574 = vpow.pop %v2573
    %v2575 = vmul.f32 %v2569, 1.442695
    %v2576 = vpow.pop %v2575
    %v2577 = vmul.f32 %v2570, 1.442695
    %v2578 = vpow.pop %v2577
    %v2579 = vsel %vm757, %v2572, 0.0
    %2580 = vadd.xlane.f32.xlu0 %v2579
    %v2581 = vpop.xlane.xlu0 %2580
    %v2582 = vsel %vm757, %v2574, 0.0
    %2583 = vadd.xlane.f32.xlu0 %v2582
    %v2584 = vpop.xlane.xlu0 %2583
    %v2585 = vsel %vm757, %v2576, 0.0
    %2586 = vadd.xlane.f32.xlu0 %v2585
    %v2587 = vpop.xlane.xlu0 %2586
    %v2588 = vsel %vm757, %v2578, 0.0
    %2589 = vadd.xlane.f32.xlu0 %v2588
    %v2590 = vpop.xlane.xlu0 %2589
    %v2591 = vlaneseq
    %v2592 = vshrl.u32 %v2591, 7
    %v2593 = vsub.s32 1, %v2592
    %v2594 = vrot.slane %v496, %v2593
    %v2595 = vlaneseq
    %v2596 = vshrl.u32 %v2595, 7
    %v2597 = vsub.s32 1, %v2596
    %v2598 = vrot.slane %v504, %v2597
    %v2599 = vlaneseq
    %v2600 = vshrl.u32 %v2599, 7
    %v2601 = vsub.s32 1, %v2600
    %v2602 = vrot.slane %v503, %v2601
    %v2603 = vlaneseq
    %v2604 = vshrl.u32 %v2603, 7
    %v2605 = vsub.s32 1, %v2604
    %v2606 = vrot.slane %v505, %v2605
    %v2607 = vlaneseq
    %v2608 = vshrl.u32 %v2607, 7
    %v2609 = vsub.s32 1, %v2608
    %v2610 = vrot.slane %v513, %v2609
    %v2611 = vlaneseq
    %v2612 = vshrl.u32 %v2611, 7
    %v2613 = vsub.s32 1, %v2612
    %v2614 = vrot.slane %v521, %v2613
    %v2615 = vlaneseq
    %v2616 = vshrl.u32 %v2615, 7
    %v2617 = vsub.s32 1, %v2616
    %v2618 = vrot.slane %v520, %v2617
    %v2619 = vlaneseq
    %v2620 = vshrl.u32 %v2619, 7
    %v2621 = vsub.s32 1, %v2620
    %v2622 = vrot.slane %v522, %v2621
    %v2623 = vsel %vm704, %v2598, %v2594
    %v2624 = vsel %vm706, %v2602, %v2623
    %v2625 = vsel %vm708, %v2606, %v2624
    %v2626 = vsel %vm710, %v2610, %v2625
    %v2627 = vsel %vm712, %v2614, %v2626
    %v2628 = vsel %vm714, %v2618, %v2627
    %v2629 = vsel %vm716, %v2622, %v2628
    %v2632 = vsel %vm757, %v2572, 0
    %2634 = vmatprep.subr.mxu0 0.0
    %2635 = vmatpush1.msra.mxu0 %v2629
    %2636 = vmatprep.subr.mxu0 0.0
    %2637 = vmatpush1.msra.mxu0 0.0
    %2638 = vmatprep.subr.mxu0 0.0
    %2639 = vmatpush1.msra.mxu0 0.0
    %2640 = vmatprep.subr.mxu0 0.0
    %2641 = vmatpush1.msra.mxu0 0.0
    %2642 = vmatprep.subr.mxu0 0.0
    %2643 = vmatpush1.msra.mxu0 0.0
    %2644 = vmatprep.subr.mxu0 0.0
    %2645 = vmatpush1.msra.mxu0 0.0
    %2646 = vmatprep.subr.mxu0 0.0
    %2647 = vmatpush1.msra.mxu0 0.0
    %2648 = vmatprep.subr.mxu0 0.0
    %2649 = vmatpush1.msra.mxu0 0.0
    %2650 = vmatprep.subr.mxu0 0.0
    %2651 = vmatpush1.msra.mxu0 0.0
    %2652 = vmatprep.subr.mxu0 0.0
    %2653 = vmatpush1.msra.mxu0 0.0
    %2654 = vmatprep.subr.mxu0 0.0
    %2655 = vmatpush1.msra.mxu0 0.0
    %2656 = vmatprep.subr.mxu0 0.0
    %2657 = vmatpush1.msra.mxu0 0.0
    %2658 = vmatprep.subr.mxu0 0.0
    %2659 = vmatpush1.msra.mxu0 0.0
    %2660 = vmatprep.subr.mxu0 0.0
    %2661 = vmatpush1.msra.mxu0 0.0
    %2662 = vmatprep.subr.mxu0 0.0
    %2663 = vmatpush1.msra.mxu0 0.0
    %2664 = vmatprep.subr.mxu0 0.0
    %2665 = vmatpush1.msra.mxu0 0.0
    %2666 = vmatprep.subr.mxu0 0.0
    %2667 = vmatpush1.msra.mxu0 0.0
    %2668 = vmatprep.subr.mxu0 0.0
    %2669 = vmatpush1.msra.mxu0 0.0
    %2670 = vmatprep.subr.mxu0 0.0
    %2671 = vmatpush1.msra.mxu0 0.0
    %2672 = vmatprep.subr.mxu0 0.0
    %2673 = vmatpush1.msra.mxu0 0.0
    %2674 = vmatprep.subr.mxu0 0.0
    %2675 = vmatpush1.msra.mxu0 0.0
    %2676 = vmatprep.subr.mxu0 0.0
    %2677 = vmatpush1.msra.mxu0 0.0
    %2678 = vmatprep.subr.mxu0 0.0
    %2679 = vmatpush1.msra.mxu0 0.0
    %2680 = vmatprep.subr.mxu0 0.0
    %2681 = vmatpush1.msra.mxu0 0.0
    %2682 = vmatprep.subr.mxu0 0.0
    %2683 = vmatpush1.msra.mxu0 0.0
    %2684 = vmatprep.subr.mxu0 0.0
    %2685 = vmatpush1.msra.mxu0 0.0
    %2686 = vmatprep.subr.mxu0 0.0
    %2687 = vmatpush1.msra.mxu0 0.0
    %2688 = vmatprep.subr.mxu0 0.0
    %2689 = vmatpush1.msra.mxu0 0.0
    %2690 = vmatprep.subr.mxu0 0.0
    %2691 = vmatpush1.msra.mxu0 0.0
    %2692 = vmatprep.subr.mxu0 0.0
    %2693 = vmatpush1.msra.mxu0 0.0
    %2694 = vmatprep.subr.mxu0 0.0
    %2695 = vmatpush1.msra.mxu0 0.0
    %2696 = vmatprep.subr.mxu0 0.0
    %2697 = vmatpush1.msra.mxu0 0.0
    %2698 = vmatprep.mubr.f32.mxu0 0.0
    %2699 = vmatmul.mubr.f32.gmra.mrb[0].mxu0 %v2632
    %v2700 = vpop.f32.mrb[0].mxu0
    %v2701 = vadd.f32 0.0, %v2700
    %v2702 = vpop.f32.mrb[0].mxu0
    %2703 = vdwg.mxu0
    %v2704 = vlaneseq
    %v2705 = vshrl.u32 %v2704, 7
    %v2706 = vsub.s32 1, %v2705
    %v2707 = vrot.slane %v625, %v2706
    %v2708 = vlaneseq
    %v2709 = vshrl.u32 %v2708, 7
    %v2710 = vsub.s32 1, %v2709
    %v2711 = vrot.slane %v627, %v2710
    %v2712 = vlaneseq
    %v2713 = vshrl.u32 %v2712, 7
    %v2714 = vsub.s32 1, %v2713
    %v2715 = vrot.slane %v629, %v2714
    %v2716 = vlaneseq
    %v2717 = vshrl.u32 %v2716, 7
    %v2718 = vsub.s32 1, %v2717
    %v2719 = vrot.slane %v631, %v2718
    %v2720 = vlaneseq
    %v2721 = vshrl.u32 %v2720, 7
    %v2722 = vsub.s32 1, %v2721
    %v2723 = vrot.slane %v633, %v2722
    %v2724 = vlaneseq
    %v2725 = vshrl.u32 %v2724, 7
    %v2726 = vsub.s32 1, %v2725
    %v2727 = vrot.slane %v635, %v2726
    %v2728 = vlaneseq
    %v2729 = vshrl.u32 %v2728, 7
    %v2730 = vsub.s32 1, %v2729
    %v2731 = vrot.slane %v637, %v2730
    %v2732 = vlaneseq
    %v2733 = vshrl.u32 %v2732, 7
    %v2734 = vsub.s32 1, %v2733
    %v2735 = vrot.slane %v639, %v2734
    %v2736 = vsel %vm704, %v2711, %v2707
    %v2737 = vsel %vm706, %v2715, %v2736
    %v2738 = vsel %vm708, %v2719, %v2737
    %v2739 = vsel %vm710, %v2723, %v2738
    %v2740 = vsel %vm712, %v2727, %v2739
    %v2741 = vsel %vm714, %v2731, %v2740
    %v2742 = vsel %vm716, %v2735, %v2741
    %v2745 = vsel %vm757, %v2574, 0
    %2747 = vmatprep.subr.mxu0 0.0
    %2748 = vmatpush1.msra.mxu0 %v2742
    %2749 = vmatprep.subr.mxu0 0.0
    %2750 = vmatpush1.msra.mxu0 0.0
    %2751 = vmatprep.subr.mxu0 0.0
    %2752 = vmatpush1.msra.mxu0 0.0
    %2753 = vmatprep.subr.mxu0 0.0
    %2754 = vmatpush1.msra.mxu0 0.0
    %2755 = vmatprep.subr.mxu0 0.0
    %2756 = vmatpush1.msra.mxu0 0.0
    %2757 = vmatprep.subr.mxu0 0.0
    %2758 = vmatpush1.msra.mxu0 0.0
    %2759 = vmatprep.subr.mxu0 0.0
    %2760 = vmatpush1.msra.mxu0 0.0
    %2761 = vmatprep.subr.mxu0 0.0
    %2762 = vmatpush1.msra.mxu0 0.0
    %2763 = vmatprep.subr.mxu0 0.0
    %2764 = vmatpush1.msra.mxu0 0.0
    %2765 = vmatprep.subr.mxu0 0.0
    %2766 = vmatpush1.msra.mxu0 0.0
    %2767 = vmatprep.subr.mxu0 0.0
    %2768 = vmatpush1.msra.mxu0 0.0
    %2769 = vmatprep.subr.mxu0 0.0
    %2770 = vmatpush1.msra.mxu0 0.0
    %2771 = vmatprep.subr.mxu0 0.0
    %2772 = vmatpush1.msra.mxu0 0.0
    %2773 = vmatprep.subr.mxu0 0.0
    %2774 = vmatpush1.msra.mxu0 0.0
    %2775 = vmatprep.subr.mxu0 0.0
    %2776 = vmatpush1.msra.mxu0 0.0
    %2777 = vmatprep.subr.mxu0 0.0
    %2778 = vmatpush1.msra.mxu0 0.0
    %2779 = vmatprep.subr.mxu0 0.0
    %2780 = vmatpush1.msra.mxu0 0.0
    %2781 = vmatprep.subr.mxu0 0.0
    %2782 = vmatpush1.msra.mxu0 0.0
    %2783 = vmatprep.subr.mxu0 0.0
    %2784 = vmatpush1.msra.mxu0 0.0
    %2785 = vmatprep.subr.mxu0 0.0
    %2786 = vmatpush1.msra.mxu0 0.0
    %2787 = vmatprep.subr.mxu0 0.0
    %2788 = vmatpush1.msra.mxu0 0.0
    %2789 = vmatprep.subr.mxu0 0.0
    %2790 = vmatpush1.msra.mxu0 0.0
    %2791 = vmatprep.subr.mxu0 0.0
    %2792 = vmatpush1.msra.mxu0 0.0
    %2793 = vmatprep.subr.mxu0 0.0
    %2794 = vmatpush1.msra.mxu0 0.0
    %2795 = vmatprep.subr.mxu0 0.0
    %2796 = vmatpush1.msra.mxu0 0.0
    %2797 = vmatprep.subr.mxu0 0.0
    %2798 = vmatpush1.msra.mxu0 0.0
    %2799 = vmatprep.subr.mxu0 0.0
    %2800 = vmatpush1.msra.mxu0 0.0
    %2801 = vmatprep.subr.mxu0 0.0
    %2802 = vmatpush1.msra.mxu0 0.0
    %2803 = vmatprep.subr.mxu0 0.0
    %2804 = vmatpush1.msra.mxu0 0.0
    %2805 = vmatprep.subr.mxu0 0.0
    %2806 = vmatpush1.msra.mxu0 0.0
    %2807 = vmatprep.subr.mxu0 0.0
    %2808 = vmatpush1.msra.mxu0 0.0
    %2809 = vmatprep.subr.mxu0 0.0
    %2810 = vmatpush1.msra.mxu0 0.0
    %2811 = vmatprep.mubr.f32.mxu0 0.0
    %2812 = vmatmul.mubr.f32.gmra.mrb[0].mxu0 %v2745
    %v2813 = vpop.f32.mrb[0].mxu0
    %v2814 = vadd.f32 0.0, %v2813
    %v2815 = vpop.f32.mrb[0].mxu0
    %2816 = vdwg.mxu0
    %v2817 = vlaneseq
    %v2818 = vshrl.u32 %v2817, 7
    %v2819 = vsub.s32 1, %v2818
    %v2820 = vrot.slane %v641, %v2819
    %v2821 = vlaneseq
    %v2822 = vshrl.u32 %v2821, 7
    %v2823 = vsub.s32 1, %v2822
    %v2824 = vrot.slane %v643, %v2823
    %v2825 = vlaneseq
    %v2826 = vshrl.u32 %v2825, 7
    %v2827 = vsub.s32 1, %v2826
    %v2828 = vrot.slane %v645, %v2827
    %v2829 = vlaneseq
    %v2830 = vshrl.u32 %v2829, 7
    %v2831 = vsub.s32 1, %v2830
    %v2832 = vrot.slane %v647, %v2831
    %v2833 = vlaneseq
    %v2834 = vshrl.u32 %v2833, 7
    %v2835 = vsub.s32 1, %v2834
    %v2836 = vrot.slane %v649, %v2835
    %v2837 = vlaneseq
    %v2838 = vshrl.u32 %v2837, 7
    %v2839 = vsub.s32 1, %v2838
    %v2840 = vrot.slane %v651, %v2839
    %v2841 = vlaneseq
    %v2842 = vshrl.u32 %v2841, 7
    %v2843 = vsub.s32 1, %v2842
    %v2844 = vrot.slane %v653, %v2843
    %v2845 = vlaneseq
    %v2846 = vshrl.u32 %v2845, 7
    %v2847 = vsub.s32 1, %v2846
    %v2848 = vrot.slane %v655, %v2847
    %v2849 = vsel %vm704, %v2824, %v2820
    %v2850 = vsel %vm706, %v2828, %v2849
    %v2851 = vsel %vm708, %v2832, %v2850
    %v2852 = vsel %vm710, %v2836, %v2851
    %v2853 = vsel %vm712, %v2840, %v2852
    %v2854 = vsel %vm714, %v2844, %v2853
    %v2855 = vsel %vm716, %v2848, %v2854
    %v2858 = vsel %vm757, %v2576, 0
    %2860 = vmatprep.subr.mxu0 0.0
    %2861 = vmatpush1.msra.mxu0 %v2855
    %2862 = vmatprep.subr.mxu0 0.0
    %2863 = vmatpush1.msra.mxu0 0.0
    %2864 = vmatprep.subr.mxu0 0.0
    %2865 = vmatpush1.msra.mxu0 0.0
    %2866 = vmatprep.subr.mxu0 0.0
    %2867 = vmatpush1.msra.mxu0 0.0
    %2868 = vmatprep.subr.mxu0 0.0
    %2869 = vmatpush1.msra.mxu0 0.0
    %2870 = vmatprep.subr.mxu0 0.0
    %2871 = vmatpush1.msra.mxu0 0.0
    %2872 = vmatprep.subr.mxu0 0.0
    %2873 = vmatpush1.msra.mxu0 0.0
    %2874 = vmatprep.subr.mxu0 0.0
    %2875 = vmatpush1.msra.mxu0 0.0
    %2876 = vmatprep.subr.mxu0 0.0
    %2877 = vmatpush1.msra.mxu0 0.0
    %2878 = vmatprep.subr.mxu0 0.0
    %2879 = vmatpush1.msra.mxu0 0.0
    %2880 = vmatprep.subr.mxu0 0.0
    %2881 = vmatpush1.msra.mxu0 0.0
    %2882 = vmatprep.subr.mxu0 0.0
    %2883 = vmatpush1.msra.mxu0 0.0
    %2884 = vmatprep.subr.mxu0 0.0
    %2885 = vmatpush1.msra.mxu0 0.0
    %2886 = vmatprep.subr.mxu0 0.0
    %2887 = vmatpush1.msra.mxu0 0.0
    %2888 = vmatprep.subr.mxu0 0.0
    %2889 = vmatpush1.msra.mxu0 0.0
    %2890 = vmatprep.subr.mxu0 0.0
    %2891 = vmatpush1.msra.mxu0 0.0
    %2892 = vmatprep.subr.mxu0 0.0
    %2893 = vmatpush1.msra.mxu0 0.0
    %2894 = vmatprep.subr.mxu0 0.0
    %2895 = vmatpush1.msra.mxu0 0.0
    %2896 = vmatprep.subr.mxu0 0.0
    %2897 = vmatpush1.msra.mxu0 0.0
    %2898 = vmatprep.subr.mxu0 0.0
    %2899 = vmatpush1.msra.mxu0 0.0
    %2900 = vmatprep.subr.mxu0 0.0
    %2901 = vmatpush1.msra.mxu0 0.0
    %2902 = vmatprep.subr.mxu0 0.0
    %2903 = vmatpush1.msra.mxu0 0.0
    %2904 = vmatprep.subr.mxu0 0.0
    %2905 = vmatpush1.msra.mxu0 0.0
    %2906 = vmatprep.subr.mxu0 0.0
    %2907 = vmatpush1.msra.mxu0 0.0
    %2908 = vmatprep.subr.mxu0 0.0
    %2909 = vmatpush1.msra.mxu0 0.0
    %2910 = vmatprep.subr.mxu0 0.0
    %2911 = vmatpush1.msra.mxu0 0.0
    %2912 = vmatprep.subr.mxu0 0.0
    %2913 = vmatpush1.msra.mxu0 0.0
    %2914 = vmatprep.subr.mxu0 0.0
    %2915 = vmatpush1.msra.mxu0 0.0
    %2916 = vmatprep.subr.mxu0 0.0
    %2917 = vmatpush1.msra.mxu0 0.0
    %2918 = vmatprep.subr.mxu0 0.0
    %2919 = vmatpush1.msra.mxu0 0.0
    %2920 = vmatprep.subr.mxu0 0.0
    %2921 = vmatpush1.msra.mxu0 0.0
    %2922 = vmatprep.subr.mxu0 0.0
    %2923 = vmatpush1.msra.mxu0 0.0
    %2924 = vmatprep.mubr.f32.mxu0 0.0
    %2925 = vmatmul.mubr.f32.gmra.mrb[0].mxu0 %v2858
    %v2926 = vpop.f32.mrb[0].mxu0
    %v2927 = vadd.f32 0.0, %v2926
    %v2928 = vpop.f32.mrb[0].mxu0
    %2929 = vdwg.mxu0
    %v2930 = vlaneseq
    %v2931 = vshrl.u32 %v2930, 7
    %v2932 = vsub.s32 1, %v2931
    %v2933 = vrot.slane %v657, %v2932
    %v2934 = vlaneseq
    %v2935 = vshrl.u32 %v2934, 7
    %v2936 = vsub.s32 1, %v2935
    %v2937 = vrot.slane %v659, %v2936
    %v2938 = vlaneseq
    %v2939 = vshrl.u32 %v2938, 7
    %v2940 = vsub.s32 1, %v2939
    %v2941 = vrot.slane %v661, %v2940
    %v2942 = vlaneseq
    %v2943 = vshrl.u32 %v2942, 7
    %v2944 = vsub.s32 1, %v2943
    %v2945 = vrot.slane %v663, %v2944
    %v2946 = vlaneseq
    %v2947 = vshrl.u32 %v2946, 7
    %v2948 = vsub.s32 1, %v2947
    %v2949 = vrot.slane %v665, %v2948
    %v2950 = vlaneseq
    %v2951 = vshrl.u32 %v2950, 7
    %v2952 = vsub.s32 1, %v2951
    %v2953 = vrot.slane %v667, %v2952
    %v2954 = vlaneseq
    %v2955 = vshrl.u32 %v2954, 7
    %v2956 = vsub.s32 1, %v2955
    %v2957 = vrot.slane %v669, %v2956
    %v2958 = vlaneseq
    %v2959 = vshrl.u32 %v2958, 7
    %v2960 = vsub.s32 1, %v2959
    %v2961 = vrot.slane %v671, %v2960
    %v2962 = vsel %vm704, %v2937, %v2933
    %v2963 = vsel %vm706, %v2941, %v2962
    %v2964 = vsel %vm708, %v2945, %v2963
    %v2965 = vsel %vm710, %v2949, %v2964
    %v2966 = vsel %vm712, %v2953, %v2965
    %v2967 = vsel %vm714, %v2957, %v2966
    %v2968 = vsel %vm716, %v2961, %v2967
    %v2971 = vsel %vm757, %v2578, 0
    %2973 = vmatprep.subr.mxu0 0.0
    %2974 = vmatpush1.msra.mxu0 %v2968
    %2975 = vmatprep.subr.mxu0 0.0
    %2976 = vmatpush1.msra.mxu0 0.0
    %2977 = vmatprep.subr.mxu0 0.0
    %2978 = vmatpush1.msra.mxu0 0.0
    %2979 = vmatprep.subr.mxu0 0.0
    %2980 = vmatpush1.msra.mxu0 0.0
    %2981 = vmatprep.subr.mxu0 0.0
    %2982 = vmatpush1.msra.mxu0 0.0
    %2983 = vmatprep.subr.mxu0 0.0
    %2984 = vmatpush1.msra.mxu0 0.0
    %2985 = vmatprep.subr.mxu0 0.0
    %2986 = vmatpush1.msra.mxu0 0.0
    %2987 = vmatprep.subr.mxu0 0.0
    %2988 = vmatpush1.msra.mxu0 0.0
    %2989 = vmatprep.subr.mxu0 0.0
    %2990 = vmatpush1.msra.mxu0 0.0
    %2991 = vmatprep.subr.mxu0 0.0
    %2992 = vmatpush1.msra.mxu0 0.0
    %2993 = vmatprep.subr.mxu0 0.0
    %2994 = vmatpush1.msra.mxu0 0.0
    %2995 = vmatprep.subr.mxu0 0.0
    %2996 = vmatpush1.msra.mxu0 0.0
    %2997 = vmatprep.subr.mxu0 0.0
    %2998 = vmatpush1.msra.mxu0 0.0
    %2999 = vmatprep.subr.mxu0 0.0
    %3000 = vmatpush1.msra.mxu0 0.0
    %3001 = vmatprep.subr.mxu0 0.0
    %3002 = vmatpush1.msra.mxu0 0.0
    %3003 = vmatprep.subr.mxu0 0.0
    %3004 = vmatpush1.msra.mxu0 0.0
    %3005 = vmatprep.subr.mxu0 0.0
    %3006 = vmatpush1.msra.mxu0 0.0
    %3007 = vmatprep.subr.mxu0 0.0
    %3008 = vmatpush1.msra.mxu0 0.0
    %3009 = vmatprep.subr.mxu0 0.0
    %3010 = vmatpush1.msra.mxu0 0.0
    %3011 = vmatprep.subr.mxu0 0.0
    %3012 = vmatpush1.msra.mxu0 0.0
    %3013 = vmatprep.subr.mxu0 0.0
    %3014 = vmatpush1.msra.mxu0 0.0
    %3015 = vmatprep.subr.mxu0 0.0
    %3016 = vmatpush1.msra.mxu0 0.0
    %3017 = vmatprep.subr.mxu0 0.0
    %3018 = vmatpush1.msra.mxu0 0.0
    %3019 = vmatprep.subr.mxu0 0.0
    %3020 = vmatpush1.msra.mxu0 0.0
    %3021 = vmatprep.subr.mxu0 0.0
    %3022 = vmatpush1.msra.mxu0 0.0
    %3023 = vmatprep.subr.mxu0 0.0
    %3024 = vmatpush1.msra.mxu0 0.0
    %3025 = vmatprep.subr.mxu0 0.0
    %3026 = vmatpush1.msra.mxu0 0.0
    %3027 = vmatprep.subr.mxu0 0.0
    %3028 = vmatpush1.msra.mxu0 0.0
    %3029 = vmatprep.subr.mxu0 0.0
    %3030 = vmatpush1.msra.mxu0 0.0
    %3031 = vmatprep.subr.mxu0 0.0
    %3032 = vmatpush1.msra.mxu0 0.0
    %3033 = vmatprep.subr.mxu0 0.0
    %3034 = vmatpush1.msra.mxu0 0.0
    %3035 = vmatprep.subr.mxu0 0.0
    %3036 = vmatpush1.msra.mxu0 0.0
    %3037 = vmatprep.mubr.f32.mxu0 0.0
    %3038 = vmatmul.mubr.f32.gmra.mrb[0].mxu0 %v2971
    %v3039 = vpop.f32.mrb[0].mxu0
    %v3040 = vadd.f32 0.0, %v3039
    %v3041 = vpop.f32.mrb[0].mxu0
    %3042 = vdwg.mxu0
    %v3043 = vrcp.pop %v2581
    %v3044 = vmul.f32 %v2701, %v3043
    %v3045 = vrcp.pop %v2584
    %v3046 = vmul.f32 %v2814, %v3045
    %v3047 = vrcp.pop %v2587
    %v3048 = vmul.f32 %v2927, %v3047
    %v3049 = vrcp.pop %v2590
    %v3050 = vmul.f32 %v3040, %v3049
    %3052 = vrot.lane.b32.xlu0 %v3046, 8
    %v3053 = vpop.permute.xlu0 %3052
    %3056 = vrot.lane.b32.xlu0 %v3048, 16
    %v3057 = vpop.permute.xlu0 %3056
    %3060 = vrot.lane.b32.xlu0 %v3050, 24
    %v3061 = vpop.permute.xlu0 %3060
    %v3063 = vsel %vm757, %v3044, %v3053
    %v3064 = vsel %vm1797, %v3063, %v3057
    %v3065 = vsel %vm1799, %v3064, %v3061
    %v3067 = vsel %vm149, %v3065, 0
    %3069 = vmatprep.subr.mxu0 0.0
    %3070 = vmatpush1.msra.mxu0 %v523
    %3071 = vmatprep.subr.mxu0 0.0
    %3072 = vmatpush1.msra.mxu0 %v524
    %3073 = vmatprep.subr.mxu0 0.0
    %3074 = vmatpush1.msra.mxu0 %v525
    %3075 = vmatprep.subr.mxu0 0.0
    %3076 = vmatpush1.msra.mxu0 %v526
    %3077 = vmatprep.subr.mxu0 0.0
    %3078 = vmatpush1.msra.mxu0 0.0
    %3079 = vmatprep.subr.mxu0 0.0
    %3080 = vmatpush1.msra.mxu0 0.0
    %3081 = vmatprep.subr.mxu0 0.0
    %3082 = vmatpush1.msra.mxu0 0.0
    %3083 = vmatprep.subr.mxu0 0.0
    %3084 = vmatpush1.msra.mxu0 0.0
    %3085 = vmatprep.subr.mxu0 0.0
    %3086 = vmatpush1.msra.mxu0 0.0
    %3087 = vmatprep.subr.mxu0 0.0
    %3088 = vmatpush1.msra.mxu0 0.0
    %3089 = vmatprep.subr.mxu0 0.0
    %3090 = vmatpush1.msra.mxu0 0.0
    %3091 = vmatprep.subr.mxu0 0.0
    %3092 = vmatpush1.msra.mxu0 0.0
    %3093 = vmatprep.subr.mxu0 0.0
    %3094 = vmatpush1.msra.mxu0 0.0
    %3095 = vmatprep.subr.mxu0 0.0
    %3096 = vmatpush1.msra.mxu0 0.0
    %3097 = vmatprep.subr.mxu0 0.0
    %3098 = vmatpush1.msra.mxu0 0.0
    %3099 = vmatprep.subr.mxu0 0.0
    %3100 = vmatpush1.msra.mxu0 0.0
    %3101 = vmatprep.subr.mxu0 0.0
    %3102 = vmatpush1.msra.mxu0 0.0
    %3103 = vmatprep.subr.mxu0 0.0
    %3104 = vmatpush1.msra.mxu0 0.0
    %3105 = vmatprep.subr.mxu0 0.0
    %3106 = vmatpush1.msra.mxu0 0.0
    %3107 = vmatprep.subr.mxu0 0.0
    %3108 = vmatpush1.msra.mxu0 0.0
    %3109 = vmatprep.subr.mxu0 0.0
    %3110 = vmatpush1.msra.mxu0 0.0
    %3111 = vmatprep.subr.mxu0 0.0
    %3112 = vmatpush1.msra.mxu0 0.0
    %3113 = vmatprep.subr.mxu0 0.0
    %3114 = vmatpush1.msra.mxu0 0.0
    %3115 = vmatprep.subr.mxu0 0.0
    %3116 = vmatpush1.msra.mxu0 0.0
    %3117 = vmatprep.subr.mxu0 0.0
    %3118 = vmatpush1.msra.mxu0 0.0
    %3119 = vmatprep.subr.mxu0 0.0
    %3120 = vmatpush1.msra.mxu0 0.0
    %3121 = vmatprep.subr.mxu0 0.0
    %3122 = vmatpush1.msra.mxu0 0.0
    %3123 = vmatprep.subr.mxu0 0.0
    %3124 = vmatpush1.msra.mxu0 0.0
    %3125 = vmatprep.subr.mxu0 0.0
    %3126 = vmatpush1.msra.mxu0 0.0
    %3127 = vmatprep.subr.mxu0 0.0
    %3128 = vmatpush1.msra.mxu0 0.0
    %3129 = vmatprep.subr.mxu0 0.0
    %3130 = vmatpush1.msra.mxu0 0.0
    %3131 = vmatprep.subr.mxu0 0.0
    %3132 = vmatpush1.msra.mxu0 0.0
    %3133 = vmatprep.mubr.f32.mxu0 0.0
    %3134 = vmatmul.mubr.f32.gmra.mrb[0].mxu0 %v3067
    %v3135 = vpop.f32.mrb[0].mxu0
    %v3136 = vadd.f32 %v1805, %v3135
    %v3137 = vpop.f32.mrb[0].mxu0
    %3138 = vdwg.mxu0
    %v3140 = vcombine.high %v3136, %v3136
    %v3142 = vunpack.c.l.s4 1966171168
    %v3143 = vunpack.c.0.s8 %v3142
    %v3144 = vlaneseq
    %v3145 = vshrl.u32 %v3144, 7
    %v3146 = vsub.s32 %v3143, %v3145
    %v3147 = vrot.slane %v3136, %v3146
    %v3149 = vunpack.c.l.s4 1966171168
    %v3150 = vunpack.c.0.s8 %v3149
    %v3151 = vlaneseq
    %v3152 = vshrl.u32 %v3151, 7
    %v3153 = vsub.s32 %v3150, %v3152
    %v3154 = vrot.slane %v3140, %v3153
    %v3155 = vcombine.high %v3147, %v3147
    %v3156 = vcombine.high %v3154, %v3154
    %v3158 = vunpack.c.l.s4 1966171168
    %v3159 = vunpack.c.0.s8 %v3158
    %v3160 = vlaneseq
    %v3161 = vshrl.u32 %v3160, 7
    %v3162 = vsub.s32 %v3159, %v3161
    %v3163 = vrot.slane %v3147, %v3162
    %v3165 = vunpack.c.l.s4 1966171168
    %v3166 = vunpack.c.0.s8 %v3165
    %v3167 = vlaneseq
    %v3168 = vshrl.u32 %v3167, 7
    %v3169 = vsub.s32 %v3166, %v3168
    %v3170 = vrot.slane %v3154, %v3169
    %v3172 = vunpack.c.l.s4 1966171168
    %v3173 = vunpack.c.0.s8 %v3172
    %v3174 = vlaneseq
    %v3175 = vshrl.u32 %v3174, 7
    %v3176 = vsub.s32 %v3173, %v3175
    %v3177 = vrot.slane %v3155, %v3176
    %v3179 = vunpack.c.l.s4 1966171168
    %v3180 = vunpack.c.0.s8 %v3179
    %v3181 = vlaneseq
    %v3182 = vshrl.u32 %v3181, 7
    %v3183 = vsub.s32 %v3180, %v3182
    %v3184 = vrot.slane %v3156, %v3183
    %v3185 = vcombine.high %v3163, %v3163
    %v3186 = vcombine.high %v3170, %v3170
    %v3187 = vcombine.high %v3177, %v3177
    %v3188 = vcombine.high %v3184, %v3184
    %3197 = vst.msk [vmem:[#allocation14 + $0x1] sm:$0x1] %vm1938, %v3163
    %3198 = vst.msk [vmem:[#allocation14 + $0x3] sm:$0x1] %vm1938, %v3177
    %3199 = vst.msk [vmem:[#allocation14 + $0x5] sm:$0x1] %vm1938, %v3185
    %3200 = vst.msk [vmem:[#allocation14 + $0x7] sm:$0x1] %vm1938, %v3187
    %3201 = vst.msk [vmem:[#allocation14 + $0x9] sm:$0x1] %vm1938, %v3170
    %3202 = vst.msk [vmem:[#allocation14 + $0xb] sm:$0x1] %vm1938, %v3184
    %3203 = vst.msk [vmem:[#allocation14 + $0xd] sm:$0x1] %vm1938, %v3186
    %3204 = vst.msk [vmem:[#allocation14 + $0xf] sm:$0x1] %vm1938, %v3188
    // Predicated region
    $region74: #{tpu_custom_call.1} parent=1 // pred_check
      _
    $region75: #{tpu_custom_call.1} parent=1 // pred_check_branch
      %3206 = sbr.rel (0) target = $region77
    $region76: #{tpu_custom_call.1} parent=1 // pred_region
      %s3208 = ssub.s32 256, 256
      %3209 = vsyncadd [#allocation4], %s3208
      %s3210 = sshll.u32 [#allocation14], 4
      %s3211 = int_to_ptr.vmem [resolvable:$true] %s3210
      %3216 = dma.vmem_to_hbm [thread:$0]  %s3211, 256, %s11, [#allocation4], 32, 32, 2
    $region77: #{tpu_custom_call.1} parent=1 // pred_fallthru
      _
    // Predicated region
    $region78: #{tpu_custom_call.1} parent=1 // pred_check
      _
    $region79: #{tpu_custom_call.1} parent=1 // pred_check_branch
      %3218 = sbr.rel (0) target = $region81
    $region80: #{tpu_custom_call.1} parent=1 // pred_region
      %3219 = dma.done [#allocation4], 256
    $region81: #{tpu_custom_call.1} parent=1 // pred_fallthru
      _
    %3220 = vsyncpa [#allocation3], 1
    %3221 = vsyncpa [#allocation6], 1
    %3222 = vsyncpa [#allocation9], 1
    %3223 = vsyncpa [#allocation12], 1
    %3224 = vsyncpa [#allocation4], 1

</llo_original>
